<compile_context>
chip_gen: v5e
topology: v5e:2x2
jax: 0.10.0
libtpu: 0.0.40
codegen_flags: <defaults>
</compile_context>

<pallas_src>
import functools

import jax
import jax.numpy as jnp
from jax import lax
from jax.experimental import pallas as pl
from jax.experimental.pallas import tpu as pltpu


def _round8(c):
    return ((c + 7) // 8) * 8


def inception_kernel(x_ref, row_ref, col_ref,
                     w1_ref, b1_ref,
                     w3r_ref, b3r_ref, w3_ref, b3_ref,
                     w5r_ref, b5r_ref, w5_ref, b5_ref,
                     wm_ref, bm_ref,
                     out_ref,
                     *, H, W, c3, c5):
    HW = H * W
    X = x_ref[0]                      # (Cp, HW)  f32, channel-padded input
    row = row_ref[...]                # (1, HW)   int32: i = idx // W
    col = col_ref[...]                # (1, HW)   int32: j = idx %  W

    relu = lambda v: jnp.maximum(v, 0.0)
    dot = lambda a, b: jnp.dot(a, b, preferred_element_type=jnp.float32)

    def shifted(v, a, b):
        """v is (C, HW) over the flattened HxW grid.  Returns r with
        r[c, i*W + j] = v[c, (i+a)*W + (j+b)] (circular wrap; out-of-range
        taps are masked by the caller)."""
        d = a * W + b
        if d == 0:
            return v
        return pltpu.roll(v, (-d) % HW, axis=1)

    def row_in(a, lo, hi):
        return (row + a >= lo) & (row + a <= hi)

    def col_in(b, lo, hi):
        return (col + b >= lo) & (col + b <= hi)

    # ---- branch 1: conv1 (1x1) + relu -------------------------------------
    y1 = relu(dot(w1_ref[...], X) + b1_ref[...])               # (c1, HW)

    # ---- branch 2: conv3_r (1x1, pad 1) + relu, conv3 (3x3 valid) + relu ---
    t_in = relu(dot(w3r_ref[...], X) + b3r_ref[...])           # interior values
    t_pad = relu(b3r_ref[...])                                 # (c3rp, 1) bias ring
    acc3 = jnp.zeros((c3, HW), jnp.float32)
    for a in (-1, 0, 1):
        r_ok = row_in(a, 0, H - 1)
        for b in (-1, 0, 1):
            m_in = r_ok & col_in(b, 0, W - 1)
            tap = jnp.where(m_in, shifted(t_in, a, b), t_pad)  # (c3rp, HW)
            acc3 = acc3 + dot(w3_ref[a + 1, b + 1], tap)
    y2 = relu(acc3 + b3_ref[...])                              # (c3, HW)

    # ---- branch 3: conv5_r (1x1, pad 1) + relu, conv5 (5x5, pad 1) + relu --
    u_in = relu(dot(w5r_ref[...], X) + b5r_ref[...])
    u_pad = relu(b5r_ref[...])
    acc5 = jnp.zeros((c5, HW), jnp.float32)
    for a in (-2, -1, 0, 1, 2):
        r_in = row_in(a, 0, H - 1)
        r_ring = row_in(a, -1, H)
        for b in (-2, -1, 0, 1, 2):
            m_in = r_in & col_in(b, 0, W - 1)      # inside conv5_r interior
            m_ring = r_ring & col_in(b, -1, W)     # inside conv5_r incl. its bias ring
            tap = jnp.where(m_in, shifted(u_in, a, b),
                            jnp.where(m_ring, u_pad, 0.0))     # outside: conv5 zero pad
            acc5 = acc5 + dot(w5_ref[a + 2, b + 2], tap)
    y3 = relu(acc5 + b5_ref[...])                              # (c5, HW)

    # ---- branch 4: maxpool 3x3/1 (valid), zero pad 1, conv1_m (1x1) + relu -
    pool = X
    for a in (-1, 0, 1):
        for b in (-1, 0, 1):
            if a == 0 and b == 0:
                continue
            pool = jnp.maximum(pool, shifted(X, a, b))
    # the (H-2, W-2) pooled map occupies rows/cols [1, H-2]x[1, W-2] of the
    # zero-padded conv1_m input; everything else is conv1_m's zero pad.
    inside = row_in(0, 1, H - 2) & col_in(0, 1, W - 2)
    pool = jnp.where(inside, pool, 0.0)
    y4 = relu(dot(wm_ref[...], pool) + bm_ref[...])            # (cm, HW)

    # ---- concat along channels: single lane-dense store --------------------
    out_ref[0] = jnp.concatenate([y1, y2, y3, y4], axis=0)     # (Ctot, HW)


def _prep_inputs(x_nchw, params, block):
    """Reshape/pad inputs and weights into the kernel's (C, H*W) layout."""
    Cin, c1, c3r, c3, c5r, c5, cm = block
    N, C, H, W = x_nchw.shape
    assert C == Cin and H >= 3 and W >= 3
    HW = H * W
    Cp, c3rp, c5rp = _round8(Cin), _round8(c3r), _round8(c5r)

    x = x_nchw.reshape(N, Cin, HW).astype(jnp.float32)
    x = jnp.pad(x, ((0, 0), (0, Cp - Cin), (0, 0)))            # zero channel pad

    idx = jnp.arange(HW, dtype=jnp.int32)
    row = (idx // W).reshape(1, HW)
    col = (idx % W).reshape(1, HW)

    def pw(w, rows, cols):
        return jnp.pad(w, ((0, rows - w.shape[0]), (0, cols - w.shape[1])))

    def pb(b, rows):
        b = b.reshape(-1, 1)
        return jnp.pad(b, ((0, rows - b.shape[0]), (0, 0)))

    w1k = pw(params["w1"].T, c1, Cp);      b1k = pb(params["b1"], c1)
    w3rk = pw(params["w3r"].T, c3rp, Cp);  b3rk = pb(params["b3r"], c3rp)
    w5rk = pw(params["w5r"].T, c5rp, Cp);  b5rk = pb(params["b5r"], c5rp)
    wmk = pw(params["wm"].T, cm, Cp);      bmk = pb(params["bm"], cm)
    # (kh, kw, Cin, Cout) -> (kh, kw, Cout, Cin padded to 8)
    w3k = jnp.pad(jnp.transpose(params["w3"], (0, 1, 3, 2)),
                  ((0, 0), (0, 0), (0, 0), (0, c3rp - c3r)))
    w5k = jnp.pad(jnp.transpose(params["w5"], (0, 1, 3, 2)),
                  ((0, 0), (0, 0), (0, 0), (0, c5rp - c5r)))
    b3k = pb(params["b3"], c3)
    b5k = pb(params["b5"], c5)
    return (x, row, col, w1k, b1k, w3rk, b3rk, w3k, b3k,
            w5rk, b5rk, w5k, b5k, wmk, bmk)


def inception_forward(x_nchw, params, block):
    Cin, c1, c3r, c3, c5r, c5, cm = block
    N, C, H, W = x_nchw.shape
    HW = H * W
    Ctot = c1 + c3 + c5 + cm
    Cp, c3rp, c5rp = _round8(Cin), _round8(c3r), _round8(c5r)

    args = _prep_inputs(x_nchw, params, block)
    kernel = functools.partial(inception_kernel, H=H, W=W, c3=c3, c5=c5)

    full2 = lambda n: (0, 0)
    full4 = lambda n: (0, 0, 0, 0)

    out = pl.pallas_call(
        kernel,
        out_shape=jax.ShapeDtypeStruct((N, Ctot, HW), jnp.float32),
        grid_spec=pltpu.PrefetchScalarGridSpec(
            num_scalar_prefetch=0,
            grid=(N,),
            in_specs=[
                pl.BlockSpec((1, Cp, HW), lambda n: (n, 0, 0)),   # x (per image)
                pl.BlockSpec((1, HW), full2),                     # row index
                pl.BlockSpec((1, HW), full2),                     # col index
                pl.BlockSpec((c1, Cp), full2),                    # w1
                pl.BlockSpec((c1, 1), full2),                     # b1
                pl.BlockSpec((c3rp, Cp), full2),                  # w3r
                pl.BlockSpec((c3rp, 1), full2),                   # b3r
                pl.BlockSpec((3, 3, c3, c3rp), full4),            # w3
                pl.BlockSpec((c3, 1), full2),                     # b3
                pl.BlockSpec((c5rp, Cp), full2),                  # w5r
                pl.BlockSpec((c5rp, 1), full2),                   # b5r
                pl.BlockSpec((5, 5, c5, c5rp), full4),            # w5
                pl.BlockSpec((c5, 1), full2),                     # b5
                pl.BlockSpec((cm, Cp), full2),                    # wm
                pl.BlockSpec((cm, 1), full2),                     # bm
            ],
            out_specs=pl.BlockSpec((1, Ctot, HW), lambda n: (n, 0, 0)),
        ),
        compiler_params=pltpu.CompilerParams(
            dimension_semantics=("parallel",)),
    )(*args)

    return out.reshape(N, Ctot, H, W)                           # back to NCHW


def init_params(key, block):
    Cin, c1, c3r, c3, c5r, c5, cm = block
    ks = jax.random.split(key, 12)
    mk = lambda k, shape, scale=0.2: (scale * jax.random.normal(k, shape)).astype(jnp.float32)
    return {
        "w1": mk(ks[0], (Cin, c1)),        "b1": mk(ks[1], (1, c1)),
        "w3r": mk(ks[2], (Cin, c3r)),      "b3r": mk(ks[3], (1, c3r)),
        "w3": mk(ks[4], (3, 3, c3r, c3)),  "b3": mk(ks[5], (1, c3)),
        "w5r": mk(ks[6], (Cin, c5r)),      "b5r": mk(ks[7], (1, c5r)),
        "w5": mk(ks[8], (5, 5, c5r, c5)),  "b5": mk(ks[9], (1, c5)),
        "wm": mk(ks[10], (Cin, cm)),       "bm": mk(ks[11], (1, cm)),
    }


def ref_forward(x_nchw, p):
    """Pure-JAX reference of the PyTorch forward (NHWC internally)."""
    x = jnp.transpose(x_nchw, (0, 2, 3, 1)).astype(jnp.float32)
    dn = ("NHWC", "HWIO", "NHWC")
    relu = lambda v: jnp.maximum(v, 0.0)

    def conv(inp, w, b, padding):
        y = lax.conv_general_dilated(inp, w, (1, 1), padding, dimension_numbers=dn)
        return y + b.reshape(1, 1, 1, -1)

    x1 = relu(conv(x, p["w1"][None, None], p["b1"], "VALID"))
    t = relu(conv(x, p["w3r"][None, None], p["b3r"], [(1, 1), (1, 1)]))
    x2 = relu(conv(t, p["w3"], p["b3"], "VALID"))
    u = relu(conv(x, p["w5r"][None, None], p["b5r"], [(1, 1), (1, 1)]))
    x3 = relu(conv(u, p["w5"], p["b5"], [(1, 1), (1, 1)]))
    # ceil_mode=True is identical to floor here: (H-3)/1 is integral.
    pool = lax.reduce_window(x, -jnp.inf, lax.max, (1, 3, 3, 1), (1, 1, 1, 1), "VALID")
    x4 = relu(conv(pool, p["wm"][None, None], p["bm"], [(1, 1), (1, 1)]))
    out = jnp.concatenate([x1, x2, x3, x4], axis=-1)
    return jnp.transpose(out, (0, 3, 1, 2))


if __name__ == "__main__":
    # inception_block = [in, conv1, conv3_reduce, conv3, conv5_reduce, conv5, pool_proj]
    block = (4, 8, 6, 8, 4, 8, 8)
    key = jax.random.PRNGKey(0)
    kx, kp = jax.random.split(key)
    x = jax.random.normal(kx, (2, block[0], 16, 16), dtype=jnp.float32)  # NCHW
    params = init_params(kp, block)

    out = jax.block_until_ready(inception_forward(x, params, block))
    ref = jax.block_until_ready(ref_forward(x, params))

    assert out.shape == (2, block[1] + block[3] + block[5] + block[6], 16, 16), out.shape
    err = float(jnp.abs(out - ref).max())
    assert jnp.allclose(out, ref, atol=1e-3, rtol=1e-3), err
    print("KERNEL_OK")
</pallas_src>

<mosaic_0001>
module attributes {stable_mosaic.version = 11 : i64} {
  func.func @inception_kernel(%arg0: i32, %arg1: memref<1x8x256xf32, #tpu.memory_space<vmem>>, %arg2: memref<1x256xi32, #tpu.memory_space<vmem>>, %arg3: memref<1x256xi32, #tpu.memory_space<vmem>>, %arg4: memref<8x8xf32, #tpu.memory_space<vmem>>, %arg5: memref<8x1xf32, #tpu.memory_space<vmem>>, %arg6: memref<8x8xf32, #tpu.memory_space<vmem>>, %arg7: memref<8x1xf32, #tpu.memory_space<vmem>>, %arg8: memref<3x3x8x8xf32, #tpu.memory_space<vmem>>, %arg9: memref<8x1xf32, #tpu.memory_space<vmem>>, %arg10: memref<8x8xf32, #tpu.memory_space<vmem>>, %arg11: memref<8x1xf32, #tpu.memory_space<vmem>>, %arg12: memref<5x5x8x8xf32, #tpu.memory_space<vmem>>, %arg13: memref<8x1xf32, #tpu.memory_space<vmem>>, %arg14: memref<8x8xf32, #tpu.memory_space<vmem>>, %arg15: memref<8x1xf32, #tpu.memory_space<vmem>>, %arg16: memref<1x32x256xf32, #tpu.memory_space<vmem>>) attributes {dimension_semantics = [#tpu.dimension_semantics<parallel>], iteration_bounds = array<i64: 2>, scalar_prefetch = 0 : i64, scratch_operands = 0 : i64, tpu.core_type = #tpu.core_type<tc>, window_params = [{transform_indices = @transform_0, window_bounds = array<i64: 1, 8, 256>}, {pipeline_mode = #tpu.pipeline_mode<synchronous>, transform_indices = @transform_1, window_bounds = array<i64: 1, 256>}, {pipeline_mode = #tpu.pipeline_mode<synchronous>, transform_indices = @transform_2, window_bounds = array<i64: 1, 256>}, {pipeline_mode = #tpu.pipeline_mode<synchronous>, transform_indices = @transform_3, window_bounds = array<i64: 8, 8>}, {pipeline_mode = #tpu.pipeline_mode<synchronous>, transform_indices = @transform_4, window_bounds = array<i64: 8, 1>}, {pipeline_mode = #tpu.pipeline_mode<synchronous>, transform_indices = @transform_5, window_bounds = array<i64: 8, 8>}, {pipeline_mode = #tpu.pipeline_mode<synchronous>, transform_indices = @transform_6, window_bounds = array<i64: 8, 1>}, {pipeline_mode = #tpu.pipeline_mode<synchronous>, transform_indices = @transform_7, window_bounds = array<i64: 3, 3, 8, 8>}, {pipeline_mode = #tpu.pipeline_mode<synchronous>, transform_indices = @transform_8, window_bounds = array<i64: 8, 1>}, {pipeline_mode = #tpu.pipeline_mode<synchronous>, transform_indices = @transform_9, window_bounds = array<i64: 8, 8>}, {pipeline_mode = #tpu.pipeline_mode<synchronous>, transform_indices = @transform_10, window_bounds = array<i64: 8, 1>}, {pipeline_mode = #tpu.pipeline_mode<synchronous>, transform_indices = @transform_11, window_bounds = array<i64: 5, 5, 8, 8>}, {pipeline_mode = #tpu.pipeline_mode<synchronous>, transform_indices = @transform_12, window_bounds = array<i64: 8, 1>}, {pipeline_mode = #tpu.pipeline_mode<synchronous>, transform_indices = @transform_13, window_bounds = array<i64: 8, 8>}, {pipeline_mode = #tpu.pipeline_mode<synchronous>, transform_indices = @transform_14, window_bounds = array<i64: 8, 1>}, {transform_indices = @transform_15, window_bounds = array<i64: 1, 32, 256>}]} {
    %c0 = arith.constant 0 : index
    %c0_0 = arith.constant 0 : index
    %c0_1 = arith.constant 0 : index
    %0 = vector.load %arg1[%c0, %c0_0, %c0_1] : memref<1x8x256xf32, #tpu.memory_space<vmem>>, vector<1x8x256xf32>
    %1 = vector.shape_cast %0 : vector<1x8x256xf32> to vector<8x256xf32>
    %c0_2 = arith.constant 0 : index
    %c0_3 = arith.constant 0 : index
    %2 = vector.load %arg2[%c0_2, %c0_3] : memref<1x256xi32, #tpu.memory_space<vmem>>, vector<1x256xi32>
    %c0_4 = arith.constant 0 : index
    %c0_5 = arith.constant 0 : index
    %3 = vector.load %arg3[%c0_4, %c0_5] : memref<1x256xi32, #tpu.memory_space<vmem>>, vector<1x256xi32>
    %c0_6 = arith.constant 0 : index
    %c0_7 = arith.constant 0 : index
    %4 = vector.load %arg4[%c0_6, %c0_7] : memref<8x8xf32, #tpu.memory_space<vmem>>, vector<8x8xf32>
    %cst = arith.constant dense<0.000000e+00> : vector<8x256xf32>
    %5 = tpu.matmul %4, %1, %cst {dimension_numbers = #tpu.dot_dimension_numbers<[1], [0], [0], [1], [0, 0, 1, 1], [], []>} : vector<8x8xf32>, vector<8x256xf32>, vector<8x256xf32> -> vector<8x256xf32>
    %c0_8 = arith.constant 0 : index
    %c0_9 = arith.constant 0 : index
    %6 = vector.load %arg5[%c0_8, %c0_9] : memref<8x1xf32, #tpu.memory_space<vmem>>, vector<8x1xf32>
    %7 = vector.broadcast %6 : vector<8x1xf32> to vector<8x256xf32>
    %8 = arith.addf %5, %7 : vector<8x256xf32>
    %cst_10 = arith.constant 0.000000e+00 : f32
    %9 = vector.broadcast %cst_10 : f32 to vector<8x256xf32>
    %10 = arith.maximumf %8, %9 : vector<8x256xf32>
    %c0_11 = arith.constant 0 : index
    %c0_12 = arith.constant 0 : index
    %11 = vector.load %arg6[%c0_11, %c0_12] : memref<8x8xf32, #tpu.memory_space<vmem>>, vector<8x8xf32>
    %cst_13 = arith.constant dense<0.000000e+00> : vector<8x256xf32>
    %12 = tpu.matmul %11, %1, %cst_13 {dimension_numbers = #tpu.dot_dimension_numbers<[1], [0], [0], [1], [0, 0, 1, 1], [], []>} : vector<8x8xf32>, vector<8x256xf32>, vector<8x256xf32> -> vector<8x256xf32>
    %c0_14 = arith.constant 0 : index
    %c0_15 = arith.constant 0 : index
    %13 = vector.load %arg7[%c0_14, %c0_15] : memref<8x1xf32, #tpu.memory_space<vmem>>, vector<8x1xf32>
    %14 = vector.broadcast %13 : vector<8x1xf32> to vector<8x256xf32>
    %15 = arith.addf %12, %14 : vector<8x256xf32>
    %cst_16 = arith.constant 0.000000e+00 : f32
    %16 = vector.broadcast %cst_16 : f32 to vector<8x256xf32>
    %17 = arith.maximumf %15, %16 : vector<8x256xf32>
    %c0_17 = arith.constant 0 : index
    %c0_18 = arith.constant 0 : index
    %18 = vector.load %arg7[%c0_17, %c0_18] : memref<8x1xf32, #tpu.memory_space<vmem>>, vector<8x1xf32>
    %cst_19 = arith.constant 0.000000e+00 : f32
    %19 = vector.broadcast %cst_19 : f32 to vector<8x1xf32>
    %20 = arith.maximumf %18, %19 : vector<8x1xf32>
    %cst_20 = arith.constant 0.000000e+00 : f32
    %21 = vector.broadcast %cst_20 : f32 to vector<8x256xf32>
    %c-1_i32 = arith.constant -1 : i32
    %22 = vector.broadcast %c-1_i32 : i32 to vector<1x256xi32>
    %23 = arith.addi %2, %22 : vector<1x256xi32>
    %c0_i32 = arith.constant 0 : i32
    %24 = vector.broadcast %c0_i32 : i32 to vector<1x256xi32>
    %25 = arith.cmpi sge, %23, %24 : vector<1x256xi32>
    %c-1_i32_21 = arith.constant -1 : i32
    %26 = vector.broadcast %c-1_i32_21 : i32 to vector<1x256xi32>
    %27 = arith.addi %2, %26 : vector<1x256xi32>
    %c15_i32 = arith.constant 15 : i32
    %28 = vector.broadcast %c15_i32 : i32 to vector<1x256xi32>
    %29 = arith.cmpi sle, %27, %28 : vector<1x256xi32>
    %30 = arith.andi %25, %29 : vector<1x256xi1>
    %c-1_i32_22 = arith.constant -1 : i32
    %31 = vector.broadcast %c-1_i32_22 : i32 to vector<1x256xi32>
    %32 = arith.addi %3, %31 : vector<1x256xi32>
    %c0_i32_23 = arith.constant 0 : i32
    %33 = vector.broadcast %c0_i32_23 : i32 to vector<1x256xi32>
    %34 = arith.cmpi sge, %32, %33 : vector<1x256xi32>
    %c-1_i32_24 = arith.constant -1 : i32
    %35 = vector.broadcast %c-1_i32_24 : i32 to vector<1x256xi32>
    %36 = arith.addi %3, %35 : vector<1x256xi32>
    %c15_i32_25 = arith.constant 15 : i32
    %37 = vector.broadcast %c15_i32_25 : i32 to vector<1x256xi32>
    %38 = arith.cmpi sle, %36, %37 : vector<1x256xi32>
    %39 = arith.andi %34, %38 : vector<1x256xi1>
    %40 = arith.andi %30, %39 : vector<1x256xi1>
    %c17_i32 = arith.constant 17 : i32
    %41 = tpu.dynamic_rotate %17 by %c17_i32 dim 1 : vector<8x256xf32>, i32 -> vector<8x256xf32>
    %42 = vector.shape_cast %40 : vector<1x256xi1> to vector<1x256xi1>
    %43 = vector.broadcast %42 : vector<1x256xi1> to vector<8x256xi1>
    %44 = vector.shape_cast %20 : vector<8x1xf32> to vector<8x1xf32>
    %45 = vector.broadcast %44 : vector<8x1xf32> to vector<8x256xf32>
    %46 = arith.select %43, %41, %45 : vector<8x256xi1>, vector<8x256xf32>
    %c0_26 = arith.constant 0 : index
    %c0_27 = arith.constant 0 : index
    %c0_28 = arith.constant 0 : index
    %c0_29 = arith.constant 0 : index
    %47 = vector.load %arg8[%c0_26, %c0_27, %c0_28, %c0_29] : memref<3x3x8x8xf32, #tpu.memory_space<vmem>>, vector<1x1x8x8xf32>
    %48 = vector.shape_cast %47 : vector<1x1x8x8xf32> to vector<8x8xf32>
    %cst_30 = arith.constant dense<0.000000e+00> : vector<8x256xf32>
    %49 = tpu.matmul %48, %46, %cst_30 {dimension_numbers = #tpu.dot_dimension_numbers<[1], [0], [0], [1], [0, 0, 1, 1], [], []>} : vector<8x8xf32>, vector<8x256xf32>, vector<8x256xf32> -> vector<8x256xf32>
    %50 = arith.addf %21, %49 : vector<8x256xf32>
    %c0_i32_31 = arith.constant 0 : i32
    %51 = vector.broadcast %c0_i32_31 : i32 to vector<1x256xi32>
    %52 = arith.addi %3, %51 : vector<1x256xi32>
    %c0_i32_32 = arith.constant 0 : i32
    %53 = vector.broadcast %c0_i32_32 : i32 to vector<1x256xi32>
    %54 = arith.cmpi sge, %52, %53 : vector<1x256xi32>
    %c0_i32_33 = arith.constant 0 : i32
    %55 = vector.broadcast %c0_i32_33 : i32 to vector<1x256xi32>
    %56 = arith.addi %3, %55 : vector<1x256xi32>
    %c15_i32_34 = arith.constant 15 : i32
    %57 = vector.broadcast %c15_i32_34 : i32 to vector<1x256xi32>
    %58 = arith.cmpi sle, %56, %57 : vector<1x256xi32>
    %59 = arith.andi %54, %58 : vector<1x256xi1>
    %60 = arith.andi %30, %59 : vector<1x256xi1>
    %c16_i32 = arith.constant 16 : i32
    %61 = tpu.dynamic_rotate %17 by %c16_i32 dim 1 : vector<8x256xf32>, i32 -> vector<8x256xf32>
    %62 = vector.shape_cast %60 : vector<1x256xi1> to vector<1x256xi1>
    %63 = vector.broadcast %62 : vector<1x256xi1> to vector<8x256xi1>
    %64 = vector.shape_cast %20 : vector<8x1xf32> to vector<8x1xf32>
    %65 = vector.broadcast %64 : vector<8x1xf32> to vector<8x256xf32>
    %66 = arith.select %63, %61, %65 : vector<8x256xi1>, vector<8x256xf32>
    %c0_35 = arith.constant 0 : index
    %c1 = arith.constant 1 : index
    %c0_36 = arith.constant 0 : index
    %c0_37 = arith.constant 0 : index
    %67 = vector.load %arg8[%c0_35, %c1, %c0_36, %c0_37] : memref<3x3x8x8xf32, #tpu.memory_space<vmem>>, vector<1x1x8x8xf32>
    %68 = vector.shape_cast %67 : vector<1x1x8x8xf32> to vector<8x8xf32>
    %cst_38 = arith.constant dense<0.000000e+00> : vector<8x256xf32>
    %69 = tpu.matmul %68, %66, %cst_38 {dimension_numbers = #tpu.dot_dimension_numbers<[1], [0], [0], [1], [0, 0, 1, 1], [], []>} : vector<8x8xf32>, vector<8x256xf32>, vector<8x256xf32> -> vector<8x256xf32>
    %70 = arith.addf %50, %69 : vector<8x256xf32>
    %c1_i32 = arith.constant 1 : i32
    %71 = vector.broadcast %c1_i32 : i32 to vector<1x256xi32>
    %72 = arith.addi %3, %71 : vector<1x256xi32>
    %c0_i32_39 = arith.constant 0 : i32
    %73 = vector.broadcast %c0_i32_39 : i32 to vector<1x256xi32>
    %74 = arith.cmpi sge, %72, %73 : vector<1x256xi32>
    %c1_i32_40 = arith.constant 1 : i32
    %75 = vector.broadcast %c1_i32_40 : i32 to vector<1x256xi32>
    %76 = arith.addi %3, %75 : vector<1x256xi32>
    %c15_i32_41 = arith.constant 15 : i32
    %77 = vector.broadcast %c15_i32_41 : i32 to vector<1x256xi32>
    %78 = arith.cmpi sle, %76, %77 : vector<1x256xi32>
    %79 = arith.andi %74, %78 : vector<1x256xi1>
    %80 = arith.andi %30, %79 : vector<1x256xi1>
    %c15_i32_42 = arith.constant 15 : i32
    %81 = tpu.dynamic_rotate %17 by %c15_i32_42 dim 1 : vector<8x256xf32>, i32 -> vector<8x256xf32>
    %82 = vector.shape_cast %80 : vector<1x256xi1> to vector<1x256xi1>
    %83 = vector.broadcast %82 : vector<1x256xi1> to vector<8x256xi1>
    %84 = vector.shape_cast %20 : vector<8x1xf32> to vector<8x1xf32>
    %85 = vector.broadcast %84 : vector<8x1xf32> to vector<8x256xf32>
    %86 = arith.select %83, %81, %85 : vector<8x256xi1>, vector<8x256xf32>
    %c0_43 = arith.constant 0 : index
    %c2 = arith.constant 2 : index
    %c0_44 = arith.constant 0 : index
    %c0_45 = arith.constant 0 : index
    %87 = vector.load %arg8[%c0_43, %c2, %c0_44, %c0_45] : memref<3x3x8x8xf32, #tpu.memory_space<vmem>>, vector<1x1x8x8xf32>
    %88 = vector.shape_cast %87 : vector<1x1x8x8xf32> to vector<8x8xf32>
    %cst_46 = arith.constant dense<0.000000e+00> : vector<8x256xf32>
    %89 = tpu.matmul %88, %86, %cst_46 {dimension_numbers = #tpu.dot_dimension_numbers<[1], [0], [0], [1], [0, 0, 1, 1], [], []>} : vector<8x8xf32>, vector<8x256xf32>, vector<8x256xf32> -> vector<8x256xf32>
    %90 = arith.addf %70, %89 : vector<8x256xf32>
    %c0_i32_47 = arith.constant 0 : i32
    %91 = vector.broadcast %c0_i32_47 : i32 to vector<1x256xi32>
    %92 = arith.addi %2, %91 : vector<1x256xi32>
    %c0_i32_48 = arith.constant 0 : i32
    %93 = vector.broadcast %c0_i32_48 : i32 to vector<1x256xi32>
    %94 = arith.cmpi sge, %92, %93 : vector<1x256xi32>
    %c0_i32_49 = arith.constant 0 : i32
    %95 = vector.broadcast %c0_i32_49 : i32 to vector<1x256xi32>
    %96 = arith.addi %2, %95 : vector<1x256xi32>
    %c15_i32_50 = arith.constant 15 : i32
    %97 = vector.broadcast %c15_i32_50 : i32 to vector<1x256xi32>
    %98 = arith.cmpi sle, %96, %97 : vector<1x256xi32>
    %99 = arith.andi %94, %98 : vector<1x256xi1>
    %c-1_i32_51 = arith.constant -1 : i32
    %100 = vector.broadcast %c-1_i32_51 : i32 to vector<1x256xi32>
    %101 = arith.addi %3, %100 : vector<1x256xi32>
    %c0_i32_52 = arith.constant 0 : i32
    %102 = vector.broadcast %c0_i32_52 : i32 to vector<1x256xi32>
    %103 = arith.cmpi sge, %101, %102 : vector<1x256xi32>
    %c-1_i32_53 = arith.constant -1 : i32
    %104 = vector.broadcast %c-1_i32_53 : i32 to vector<1x256xi32>
    %105 = arith.addi %3, %104 : vector<1x256xi32>
    %c15_i32_54 = arith.constant 15 : i32
    %106 = vector.broadcast %c15_i32_54 : i32 to vector<1x256xi32>
    %107 = arith.cmpi sle, %105, %106 : vector<1x256xi32>
    %108 = arith.andi %103, %107 : vector<1x256xi1>
    %109 = arith.andi %99, %108 : vector<1x256xi1>
    %c1_i32_55 = arith.constant 1 : i32
    %110 = tpu.dynamic_rotate %17 by %c1_i32_55 dim 1 : vector<8x256xf32>, i32 -> vector<8x256xf32>
    %111 = vector.shape_cast %109 : vector<1x256xi1> to vector<1x256xi1>
    %112 = vector.broadcast %111 : vector<1x256xi1> to vector<8x256xi1>
    %113 = vector.shape_cast %20 : vector<8x1xf32> to vector<8x1xf32>
    %114 = vector.broadcast %113 : vector<8x1xf32> to vector<8x256xf32>
    %115 = arith.select %112, %110, %114 : vector<8x256xi1>, vector<8x256xf32>
    %c1_56 = arith.constant 1 : index
    %c0_57 = arith.constant 0 : index
    %c0_58 = arith.constant 0 : index
    %c0_59 = arith.constant 0 : index
    %116 = vector.load %arg8[%c1_56, %c0_57, %c0_58, %c0_59] : memref<3x3x8x8xf32, #tpu.memory_space<vmem>>, vector<1x1x8x8xf32>
    %117 = vector.shape_cast %116 : vector<1x1x8x8xf32> to vector<8x8xf32>
    %cst_60 = arith.constant dense<0.000000e+00> : vector<8x256xf32>
    %118 = tpu.matmul %117, %115, %cst_60 {dimension_numbers = #tpu.dot_dimension_numbers<[1], [0], [0], [1], [0, 0, 1, 1], [], []>} : vector<8x8xf32>, vector<8x256xf32>, vector<8x256xf32> -> vector<8x256xf32>
    %119 = arith.addf %90, %118 : vector<8x256xf32>
    %c0_i32_61 = arith.constant 0 : i32
    %120 = vector.broadcast %c0_i32_61 : i32 to vector<1x256xi32>
    %121 = arith.addi %3, %120 : vector<1x256xi32>
    %c0_i32_62 = arith.constant 0 : i32
    %122 = vector.broadcast %c0_i32_62 : i32 to vector<1x256xi32>
    %123 = arith.cmpi sge, %121, %122 : vector<1x256xi32>
    %c0_i32_63 = arith.constant 0 : i32
    %124 = vector.broadcast %c0_i32_63 : i32 to vector<1x256xi32>
    %125 = arith.addi %3, %124 : vector<1x256xi32>
    %c15_i32_64 = arith.constant 15 : i32
    %126 = vector.broadcast %c15_i32_64 : i32 to vector<1x256xi32>
    %127 = arith.cmpi sle, %125, %126 : vector<1x256xi32>
    %128 = arith.andi %123, %127 : vector<1x256xi1>
    %129 = arith.andi %99, %128 : vector<1x256xi1>
    %130 = vector.shape_cast %129 : vector<1x256xi1> to vector<1x256xi1>
    %131 = vector.broadcast %130 : vector<1x256xi1> to vector<8x256xi1>
    %132 = vector.shape_cast %20 : vector<8x1xf32> to vector<8x1xf32>
    %133 = vector.broadcast %132 : vector<8x1xf32> to vector<8x256xf32>
    %134 = arith.select %131, %17, %133 : vector<8x256xi1>, vector<8x256xf32>
    %c1_65 = arith.constant 1 : index
    %c1_66 = arith.constant 1 : index
    %c0_67 = arith.constant 0 : index
    %c0_68 = arith.constant 0 : index
    %135 = vector.load %arg8[%c1_65, %c1_66, %c0_67, %c0_68] : memref<3x3x8x8xf32, #tpu.memory_space<vmem>>, vector<1x1x8x8xf32>
    %136 = vector.shape_cast %135 : vector<1x1x8x8xf32> to vector<8x8xf32>
    %cst_69 = arith.constant dense<0.000000e+00> : vector<8x256xf32>
    %137 = tpu.matmul %136, %134, %cst_69 {dimension_numbers = #tpu.dot_dimension_numbers<[1], [0], [0], [1], [0, 0, 1, 1], [], []>} : vector<8x8xf32>, vector<8x256xf32>, vector<8x256xf32> -> vector<8x256xf32>
    %138 = arith.addf %119, %137 : vector<8x256xf32>
    %c1_i32_70 = arith.constant 1 : i32
    %139 = vector.broadcast %c1_i32_70 : i32 to vector<1x256xi32>
    %140 = arith.addi %3, %139 : vector<1x256xi32>
    %c0_i32_71 = arith.constant 0 : i32
    %141 = vector.broadcast %c0_i32_71 : i32 to vector<1x256xi32>
    %142 = arith.cmpi sge, %140, %141 : vector<1x256xi32>
    %c1_i32_72 = arith.constant 1 : i32
    %143 = vector.broadcast %c1_i32_72 : i32 to vector<1x256xi32>
    %144 = arith.addi %3, %143 : vector<1x256xi32>
    %c15_i32_73 = arith.constant 15 : i32
    %145 = vector.broadcast %c15_i32_73 : i32 to vector<1x256xi32>
    %146 = arith.cmpi sle, %144, %145 : vector<1x256xi32>
    %147 = arith.andi %142, %146 : vector<1x256xi1>
    %148 = arith.andi %99, %147 : vector<1x256xi1>
    %c255_i32 = arith.constant 255 : i32
    %149 = tpu.dynamic_rotate %17 by %c255_i32 dim 1 : vector<8x256xf32>, i32 -> vector<8x256xf32>
    %150 = vector.shape_cast %148 : vector<1x256xi1> to vector<1x256xi1>
    %151 = vector.broadcast %150 : vector<1x256xi1> to vector<8x256xi1>
    %152 = vector.shape_cast %20 : vector<8x1xf32> to vector<8x1xf32>
    %153 = vector.broadcast %152 : vector<8x1xf32> to vector<8x256xf32>
    %154 = arith.select %151, %149, %153 : vector<8x256xi1>, vector<8x256xf32>
    %c1_74 = arith.constant 1 : index
    %c2_75 = arith.constant 2 : index
    %c0_76 = arith.constant 0 : index
    %c0_77 = arith.constant 0 : index
    %155 = vector.load %arg8[%c1_74, %c2_75, %c0_76, %c0_77] : memref<3x3x8x8xf32, #tpu.memory_space<vmem>>, vector<1x1x8x8xf32>
    %156 = vector.shape_cast %155 : vector<1x1x8x8xf32> to vector<8x8xf32>
    %cst_78 = arith.constant dense<0.000000e+00> : vector<8x256xf32>
    %157 = tpu.matmul %156, %154, %cst_78 {dimension_numbers = #tpu.dot_dimension_numbers<[1], [0], [0], [1], [0, 0, 1, 1], [], []>} : vector<8x8xf32>, vector<8x256xf32>, vector<8x256xf32> -> vector<8x256xf32>
    %158 = arith.addf %138, %157 : vector<8x256xf32>
    %c1_i32_79 = arith.constant 1 : i32
    %159 = vector.broadcast %c1_i32_79 : i32 to vector<1x256xi32>
    %160 = arith.addi %2, %159 : vector<1x256xi32>
    %c0_i32_80 = arith.constant 0 : i32
    %161 = vector.broadcast %c0_i32_80 : i32 to vector<1x256xi32>
    %162 = arith.cmpi sge, %160, %161 : vector<1x256xi32>
    %c1_i32_81 = arith.constant 1 : i32
    %163 = vector.broadcast %c1_i32_81 : i32 to vector<1x256xi32>
    %164 = arith.addi %2, %163 : vector<1x256xi32>
    %c15_i32_82 = arith.constant 15 : i32
    %165 = vector.broadcast %c15_i32_82 : i32 to vector<1x256xi32>
    %166 = arith.cmpi sle, %164, %165 : vector<1x256xi32>
    %167 = arith.andi %162, %166 : vector<1x256xi1>
    %c-1_i32_83 = arith.constant -1 : i32
    %168 = vector.broadcast %c-1_i32_83 : i32 to vector<1x256xi32>
    %169 = arith.addi %3, %168 : vector<1x256xi32>
    %c0_i32_84 = arith.constant 0 : i32
    %170 = vector.broadcast %c0_i32_84 : i32 to vector<1x256xi32>
    %171 = arith.cmpi sge, %169, %170 : vector<1x256xi32>
    %c-1_i32_85 = arith.constant -1 : i32
    %172 = vector.broadcast %c-1_i32_85 : i32 to vector<1x256xi32>
    %173 = arith.addi %3, %172 : vector<1x256xi32>
    %c15_i32_86 = arith.constant 15 : i32
    %174 = vector.broadcast %c15_i32_86 : i32 to vector<1x256xi32>
    %175 = arith.cmpi sle, %173, %174 : vector<1x256xi32>
    %176 = arith.andi %171, %175 : vector<1x256xi1>
    %177 = arith.andi %167, %176 : vector<1x256xi1>
    %c241_i32 = arith.constant 241 : i32
    %178 = tpu.dynamic_rotate %17 by %c241_i32 dim 1 : vector<8x256xf32>, i32 -> vector<8x256xf32>
    %179 = vector.shape_cast %177 : vector<1x256xi1> to vector<1x256xi1>
    %180 = vector.broadcast %179 : vector<1x256xi1> to vector<8x256xi1>
    %181 = vector.shape_cast %20 : vector<8x1xf32> to vector<8x1xf32>
    %182 = vector.broadcast %181 : vector<8x1xf32> to vector<8x256xf32>
    %183 = arith.select %180, %178, %182 : vector<8x256xi1>, vector<8x256xf32>
    %c2_87 = arith.constant 2 : index
    %c0_88 = arith.constant 0 : index
    %c0_89 = arith.constant 0 : index
    %c0_90 = arith.constant 0 : index
    %184 = vector.load %arg8[%c2_87, %c0_88, %c0_89, %c0_90] : memref<3x3x8x8xf32, #tpu.memory_space<vmem>>, vector<1x1x8x8xf32>
    %185 = vector.shape_cast %184 : vector<1x1x8x8xf32> to vector<8x8xf32>
    %cst_91 = arith.constant dense<0.000000e+00> : vector<8x256xf32>
    %186 = tpu.matmul %185, %183, %cst_91 {dimension_numbers = #tpu.dot_dimension_numbers<[1], [0], [0], [1], [0, 0, 1, 1], [], []>} : vector<8x8xf32>, vector<8x256xf32>, vector<8x256xf32> -> vector<8x256xf32>
    %187 = arith.addf %158, %186 : vector<8x256xf32>
    %c0_i32_92 = arith.constant 0 : i32
    %188 = vector.broadcast %c0_i32_92 : i32 to vector<1x256xi32>
    %189 = arith.addi %3, %188 : vector<1x256xi32>
    %c0_i32_93 = arith.constant 0 : i32
    %190 = vector.broadcast %c0_i32_93 : i32 to vector<1x256xi32>
    %191 = arith.cmpi sge, %189, %190 : vector<1x256xi32>
    %c0_i32_94 = arith.constant 0 : i32
    %192 = vector.broadcast %c0_i32_94 : i32 to vector<1x256xi32>
    %193 = arith.addi %3, %192 : vector<1x256xi32>
    %c15_i32_95 = arith.constant 15 : i32
    %194 = vector.broadcast %c15_i32_95 : i32 to vector<1x256xi32>
    %195 = arith.cmpi sle, %193, %194 : vector<1x256xi32>
    %196 = arith.andi %191, %195 : vector<1x256xi1>
    %197 = arith.andi %167, %196 : vector<1x256xi1>
    %c240_i32 = arith.constant 240 : i32
    %198 = tpu.dynamic_rotate %17 by %c240_i32 dim 1 : vector<8x256xf32>, i32 -> vector<8x256xf32>
    %199 = vector.shape_cast %197 : vector<1x256xi1> to vector<1x256xi1>
    %200 = vector.broadcast %199 : vector<1x256xi1> to vector<8x256xi1>
    %201 = vector.shape_cast %20 : vector<8x1xf32> to vector<8x1xf32>
    %202 = vector.broadcast %201 : vector<8x1xf32> to vector<8x256xf32>
    %203 = arith.select %200, %198, %202 : vector<8x256xi1>, vector<8x256xf32>
    %c2_96 = arith.constant 2 : index
    %c1_97 = arith.constant 1 : index
    %c0_98 = arith.constant 0 : index
    %c0_99 = arith.constant 0 : index
    %204 = vector.load %arg8[%c2_96, %c1_97, %c0_98, %c0_99] : memref<3x3x8x8xf32, #tpu.memory_space<vmem>>, vector<1x1x8x8xf32>
    %205 = vector.shape_cast %204 : vector<1x1x8x8xf32> to vector<8x8xf32>
    %cst_100 = arith.constant dense<0.000000e+00> : vector<8x256xf32>
    %206 = tpu.matmul %205, %203, %cst_100 {dimension_numbers = #tpu.dot_dimension_numbers<[1], [0], [0], [1], [0, 0, 1, 1], [], []>} : vector<8x8xf32>, vector<8x256xf32>, vector<8x256xf32> -> vector<8x256xf32>
    %207 = arith.addf %187, %206 : vector<8x256xf32>
    %c1_i32_101 = arith.constant 1 : i32
    %208 = vector.broadcast %c1_i32_101 : i32 to vector<1x256xi32>
    %209 = arith.addi %3, %208 : vector<1x256xi32>
    %c0_i32_102 = arith.constant 0 : i32
    %210 = vector.broadcast %c0_i32_102 : i32 to vector<1x256xi32>
    %211 = arith.cmpi sge, %209, %210 : vector<1x256xi32>
    %c1_i32_103 = arith.constant 1 : i32
    %212 = vector.broadcast %c1_i32_103 : i32 to vector<1x256xi32>
    %213 = arith.addi %3, %212 : vector<1x256xi32>
    %c15_i32_104 = arith.constant 15 : i32
    %214 = vector.broadcast %c15_i32_104 : i32 to vector<1x256xi32>
    %215 = arith.cmpi sle, %213, %214 : vector<1x256xi32>
    %216 = arith.andi %211, %215 : vector<1x256xi1>
    %217 = arith.andi %167, %216 : vector<1x256xi1>
    %c239_i32 = arith.constant 239 : i32
    %218 = tpu.dynamic_rotate %17 by %c239_i32 dim 1 : vector<8x256xf32>, i32 -> vector<8x256xf32>
    %219 = vector.shape_cast %217 : vector<1x256xi1> to vector<1x256xi1>
    %220 = vector.broadcast %219 : vector<1x256xi1> to vector<8x256xi1>
    %221 = vector.shape_cast %20 : vector<8x1xf32> to vector<8x1xf32>
    %222 = vector.broadcast %221 : vector<8x1xf32> to vector<8x256xf32>
    %223 = arith.select %220, %218, %222 : vector<8x256xi1>, vector<8x256xf32>
    %c2_105 = arith.constant 2 : index
    %c2_106 = arith.constant 2 : index
    %c0_107 = arith.constant 0 : index
    %c0_108 = arith.constant 0 : index
    %224 = vector.load %arg8[%c2_105, %c2_106, %c0_107, %c0_108] : memref<3x3x8x8xf32, #tpu.memory_space<vmem>>, vector<1x1x8x8xf32>
    %225 = vector.shape_cast %224 : vector<1x1x8x8xf32> to vector<8x8xf32>
    %cst_109 = arith.constant dense<0.000000e+00> : vector<8x256xf32>
    %226 = tpu.matmul %225, %223, %cst_109 {dimension_numbers = #tpu.dot_dimension_numbers<[1], [0], [0], [1], [0, 0, 1, 1], [], []>} : vector<8x8xf32>, vector<8x256xf32>, vector<8x256xf32> -> vector<8x256xf32>
    %227 = arith.addf %207, %226 : vector<8x256xf32>
    %c0_110 = arith.constant 0 : index
    %c0_111 = arith.constant 0 : index
    %228 = vector.load %arg9[%c0_110, %c0_111] : memref<8x1xf32, #tpu.memory_space<vmem>>, vector<8x1xf32>
    %229 = vector.broadcast %228 : vector<8x1xf32> to vector<8x256xf32>
    %230 = arith.addf %227, %229 : vector<8x256xf32>
    %cst_112 = arith.constant 0.000000e+00 : f32
    %231 = vector.broadcast %cst_112 : f32 to vector<8x256xf32>
    %232 = arith.maximumf %230, %231 : vector<8x256xf32>
    %c0_113 = arith.constant 0 : index
    %c0_114 = arith.constant 0 : index
    %233 = vector.load %arg10[%c0_113, %c0_114] : memref<8x8xf32, #tpu.memory_space<vmem>>, vector<8x8xf32>
    %cst_115 = arith.constant dense<0.000000e+00> : vector<8x256xf32>
    %234 = tpu.matmul %233, %1, %cst_115 {dimension_numbers = #tpu.dot_dimension_numbers<[1], [0], [0], [1], [0, 0, 1, 1], [], []>} : vector<8x8xf32>, vector<8x256xf32>, vector<8x256xf32> -> vector<8x256xf32>
    %c0_116 = arith.constant 0 : index
    %c0_117 = arith.constant 0 : index
    %235 = vector.load %arg11[%c0_116, %c0_117] : memref<8x1xf32, #tpu.memory_space<vmem>>, vector<8x1xf32>
    %236 = vector.broadcast %235 : vector<8x1xf32> to vector<8x256xf32>
    %237 = arith.addf %234, %236 : vector<8x256xf32>
    %cst_118 = arith.constant 0.000000e+00 : f32
    %238 = vector.broadcast %cst_118 : f32 to vector<8x256xf32>
    %239 = arith.maximumf %237, %238 : vector<8x256xf32>
    %c0_119 = arith.constant 0 : index
    %c0_120 = arith.constant 0 : index
    %240 = vector.load %arg11[%c0_119, %c0_120] : memref<8x1xf32, #tpu.memory_space<vmem>>, vector<8x1xf32>
    %cst_121 = arith.constant 0.000000e+00 : f32
    %241 = vector.broadcast %cst_121 : f32 to vector<8x1xf32>
    %242 = arith.maximumf %240, %241 : vector<8x1xf32>
    %cst_122 = arith.constant 0.000000e+00 : f32
    %243 = vector.broadcast %cst_122 : f32 to vector<8x256xf32>
    %c-2_i32 = arith.constant -2 : i32
    %244 = vector.broadcast %c-2_i32 : i32 to vector<1x256xi32>
    %245 = arith.addi %2, %244 : vector<1x256xi32>
    %c0_i32_123 = arith.constant 0 : i32
    %246 = vector.broadcast %c0_i32_123 : i32 to vector<1x256xi32>
    %247 = arith.cmpi sge, %245, %246 : vector<1x256xi32>
    %c-2_i32_124 = arith.constant -2 : i32
    %248 = vector.broadcast %c-2_i32_124 : i32 to vector<1x256xi32>
    %249 = arith.addi %2, %248 : vector<1x256xi32>
    %c15_i32_125 = arith.constant 15 : i32
    %250 = vector.broadcast %c15_i32_125 : i32 to vector<1x256xi32>
    %251 = arith.cmpi sle, %249, %250 : vector<1x256xi32>
    %252 = arith.andi %247, %251 : vector<1x256xi1>
    %c-2_i32_126 = arith.constant -2 : i32
    %253 = vector.broadcast %c-2_i32_126 : i32 to vector<1x256xi32>
    %254 = arith.addi %2, %253 : vector<1x256xi32>
    %c-1_i32_127 = arith.constant -1 : i32
    %255 = vector.broadcast %c-1_i32_127 : i32 to vector<1x256xi32>
    %256 = arith.cmpi sge, %254, %255 : vector<1x256xi32>
    %c-2_i32_128 = arith.constant -2 : i32
    %257 = vector.broadcast %c-2_i32_128 : i32 to vector<1x256xi32>
    %258 = arith.addi %2, %257 : vector<1x256xi32>
    %c16_i32_129 = arith.constant 16 : i32
    %259 = vector.broadcast %c16_i32_129 : i32 to vector<1x256xi32>
    %260 = arith.cmpi sle, %258, %259 : vector<1x256xi32>
    %261 = arith.andi %256, %260 : vector<1x256xi1>
    %c-2_i32_130 = arith.constant -2 : i32
    %262 = vector.broadcast %c-2_i32_130 : i32 to vector<1x256xi32>
    %263 = arith.addi %3, %262 : vector<1x256xi32>
    %c0_i32_131 = arith.constant 0 : i32
    %264 = vector.broadcast %c0_i32_131 : i32 to vector<1x256xi32>
    %265 = arith.cmpi sge, %263, %264 : vector<1x256xi32>
    %c-2_i32_132 = arith.constant -2 : i32
    %266 = vector.broadcast %c-2_i32_132 : i32 to vector<1x256xi32>
    %267 = arith.addi %3, %266 : vector<1x256xi32>
    %c15_i32_133 = arith.constant 15 : i32
    %268 = vector.broadcast %c15_i32_133 : i32 to vector<1x256xi32>
    %269 = arith.cmpi sle, %267, %268 : vector<1x256xi32>
    %270 = arith.andi %265, %269 : vector<1x256xi1>
    %271 = arith.andi %252, %270 : vector<1x256xi1>
    %c-2_i32_134 = arith.constant -2 : i32
    %272 = vector.broadcast %c-2_i32_134 : i32 to vector<1x256xi32>
    %273 = arith.addi %3, %272 : vector<1x256xi32>
    %c-1_i32_135 = arith.constant -1 : i32
    %274 = vector.broadcast %c-1_i32_135 : i32 to vector<1x256xi32>
    %275 = arith.cmpi sge, %273, %274 : vector<1x256xi32>
    %c-2_i32_136 = arith.constant -2 : i32
    %276 = vector.broadcast %c-2_i32_136 : i32 to vector<1x256xi32>
    %277 = arith.addi %3, %276 : vector<1x256xi32>
    %c16_i32_137 = arith.constant 16 : i32
    %278 = vector.broadcast %c16_i32_137 : i32 to vector<1x256xi32>
    %279 = arith.cmpi sle, %277, %278 : vector<1x256xi32>
    %280 = arith.andi %275, %279 : vector<1x256xi1>
    %281 = arith.andi %261, %280 : vector<1x256xi1>
    %c34_i32 = arith.constant 34 : i32
    %282 = tpu.dynamic_rotate %239 by %c34_i32 dim 1 : vector<8x256xf32>, i32 -> vector<8x256xf32>
    %cst_138 = arith.constant 0.000000e+00 : f32
    %283 = vector.shape_cast %281 : vector<1x256xi1> to vector<1x256xi1>
    %284 = vector.broadcast %283 : vector<1x256xi1> to vector<8x256xi1>
    %285 = vector.shape_cast %242 : vector<8x1xf32> to vector<8x1xf32>
    %286 = vector.broadcast %285 : vector<8x1xf32> to vector<8x256xf32>
    %287 = vector.broadcast %cst_138 : f32 to vector<8x256xf32>
    %288 = arith.select %284, %286, %287 : vector<8x256xi1>, vector<8x256xf32>
    %289 = vector.shape_cast %271 : vector<1x256xi1> to vector<1x256xi1>
    %290 = vector.broadcast %289 : vector<1x256xi1> to vector<8x256xi1>
    %291 = arith.select %290, %282, %288 : vector<8x256xi1>, vector<8x256xf32>
    %c0_139 = arith.constant 0 : index
    %c0_140 = arith.constant 0 : index
    %c0_141 = arith.constant 0 : index
    %c0_142 = arith.constant 0 : index
    %292 = vector.load %arg12[%c0_139, %c0_140, %c0_141, %c0_142] : memref<5x5x8x8xf32, #tpu.memory_space<vmem>>, vector<1x1x8x8xf32>
    %293 = vector.shape_cast %292 : vector<1x1x8x8xf32> to vector<8x8xf32>
    %cst_143 = arith.constant dense<0.000000e+00> : vector<8x256xf32>
    %294 = tpu.matmul %293, %291, %cst_143 {dimension_numbers = #tpu.dot_dimension_numbers<[1], [0], [0], [1], [0, 0, 1, 1], [], []>} : vector<8x8xf32>, vector<8x256xf32>, vector<8x256xf32> -> vector<8x256xf32>
    %295 = arith.addf %243, %294 : vector<8x256xf32>
    %c-1_i32_144 = arith.constant -1 : i32
    %296 = vector.broadcast %c-1_i32_144 : i32 to vector<1x256xi32>
    %297 = arith.addi %3, %296 : vector<1x256xi32>
    %c0_i32_145 = arith.constant 0 : i32
    %298 = vector.broadcast %c0_i32_145 : i32 to vector<1x256xi32>
    %299 = arith.cmpi sge, %297, %298 : vector<1x256xi32>
    %c-1_i32_146 = arith.constant -1 : i32
    %300 = vector.broadcast %c-1_i32_146 : i32 to vector<1x256xi32>
    %301 = arith.addi %3, %300 : vector<1x256xi32>
    %c15_i32_147 = arith.constant 15 : i32
    %302 = vector.broadcast %c15_i32_147 : i32 to vector<1x256xi32>
    %303 = arith.cmpi sle, %301, %302 : vector<1x256xi32>
    %304 = arith.andi %299, %303 : vector<1x256xi1>
    %305 = arith.andi %252, %304 : vector<1x256xi1>
    %c-1_i32_148 = arith.constant -1 : i32
    %306 = vector.broadcast %c-1_i32_148 : i32 to vector<1x256xi32>
    %307 = arith.addi %3, %306 : vector<1x256xi32>
    %c-1_i32_149 = arith.constant -1 : i32
    %308 = vector.broadcast %c-1_i32_149 : i32 to vector<1x256xi32>
    %309 = arith.cmpi sge, %307, %308 : vector<1x256xi32>
    %c-1_i32_150 = arith.constant -1 : i32
    %310 = vector.broadcast %c-1_i32_150 : i32 to vector<1x256xi32>
    %311 = arith.addi %3, %310 : vector<1x256xi32>
    %c16_i32_151 = arith.constant 16 : i32
    %312 = vector.broadcast %c16_i32_151 : i32 to vector<1x256xi32>
    %313 = arith.cmpi sle, %311, %312 : vector<1x256xi32>
    %314 = arith.andi %309, %313 : vector<1x256xi1>
    %315 = arith.andi %261, %314 : vector<1x256xi1>
    %c33_i32 = arith.constant 33 : i32
    %316 = tpu.dynamic_rotate %239 by %c33_i32 dim 1 : vector<8x256xf32>, i32 -> vector<8x256xf32>
    %cst_152 = arith.constant 0.000000e+00 : f32
    %317 = vector.shape_cast %315 : vector<1x256xi1> to vector<1x256xi1>
    %318 = vector.broadcast %317 : vector<1x256xi1> to vector<8x256xi1>
    %319 = vector.shape_cast %242 : vector<8x1xf32> to vector<8x1xf32>
    %320 = vector.broadcast %319 : vector<8x1xf32> to vector<8x256xf32>
    %321 = vector.broadcast %cst_152 : f32 to vector<8x256xf32>
    %322 = arith.select %318, %320, %321 : vector<8x256xi1>, vector<8x256xf32>
    %323 = vector.shape_cast %305 : vector<1x256xi1> to vector<1x256xi1>
    %324 = vector.broadcast %323 : vector<1x256xi1> to vector<8x256xi1>
    %325 = arith.select %324, %316, %322 : vector<8x256xi1>, vector<8x256xf32>
    %c0_153 = arith.constant 0 : index
    %c1_154 = arith.constant 1 : index
    %c0_155 = arith.constant 0 : index
    %c0_156 = arith.constant 0 : index
    %326 = vector.load %arg12[%c0_153, %c1_154, %c0_155, %c0_156] : memref<5x5x8x8xf32, #tpu.memory_space<vmem>>, vector<1x1x8x8xf32>
    %327 = vector.shape_cast %326 : vector<1x1x8x8xf32> to vector<8x8xf32>
    %cst_157 = arith.constant dense<0.000000e+00> : vector<8x256xf32>
    %328 = tpu.matmul %327, %325, %cst_157 {dimension_numbers = #tpu.dot_dimension_numbers<[1], [0], [0], [1], [0, 0, 1, 1], [], []>} : vector<8x8xf32>, vector<8x256xf32>, vector<8x256xf32> -> vector<8x256xf32>
    %329 = arith.addf %295, %328 : vector<8x256xf32>
    %c0_i32_158 = arith.constant 0 : i32
    %330 = vector.broadcast %c0_i32_158 : i32 to vector<1x256xi32>
    %331 = arith.addi %3, %330 : vector<1x256xi32>
    %c0_i32_159 = arith.constant 0 : i32
    %332 = vector.broadcast %c0_i32_159 : i32 to vector<1x256xi32>
    %333 = arith.cmpi sge, %331, %332 : vector<1x256xi32>
    %c0_i32_160 = arith.constant 0 : i32
    %334 = vector.broadcast %c0_i32_160 : i32 to vector<1x256xi32>
    %335 = arith.addi %3, %334 : vector<1x256xi32>
    %c15_i32_161 = arith.constant 15 : i32
    %336 = vector.broadcast %c15_i32_161 : i32 to vector<1x256xi32>
    %337 = arith.cmpi sle, %335, %336 : vector<1x256xi32>
    %338 = arith.andi %333, %337 : vector<1x256xi1>
    %339 = arith.andi %252, %338 : vector<1x256xi1>
    %c0_i32_162 = arith.constant 0 : i32
    %340 = vector.broadcast %c0_i32_162 : i32 to vector<1x256xi32>
    %341 = arith.addi %3, %340 : vector<1x256xi32>
    %c-1_i32_163 = arith.constant -1 : i32
    %342 = vector.broadcast %c-1_i32_163 : i32 to vector<1x256xi32>
    %343 = arith.cmpi sge, %341, %342 : vector<1x256xi32>
    %c0_i32_164 = arith.constant 0 : i32
    %344 = vector.broadcast %c0_i32_164 : i32 to vector<1x256xi32>
    %345 = arith.addi %3, %344 : vector<1x256xi32>
    %c16_i32_165 = arith.constant 16 : i32
    %346 = vector.broadcast %c16_i32_165 : i32 to vector<1x256xi32>
    %347 = arith.cmpi sle, %345, %346 : vector<1x256xi32>
    %348 = arith.andi %343, %347 : vector<1x256xi1>
    %349 = arith.andi %261, %348 : vector<1x256xi1>
    %c32_i32 = arith.constant 32 : i32
    %350 = tpu.dynamic_rotate %239 by %c32_i32 dim 1 : vector<8x256xf32>, i32 -> vector<8x256xf32>
    %cst_166 = arith.constant 0.000000e+00 : f32
    %351 = vector.shape_cast %349 : vector<1x256xi1> to vector<1x256xi1>
    %352 = vector.broadcast %351 : vector<1x256xi1> to vector<8x256xi1>
    %353 = vector.shape_cast %242 : vector<8x1xf32> to vector<8x1xf32>
    %354 = vector.broadcast %353 : vector<8x1xf32> to vector<8x256xf32>
    %355 = vector.broadcast %cst_166 : f32 to vector<8x256xf32>
    %356 = arith.select %352, %354, %355 : vector<8x256xi1>, vector<8x256xf32>
    %357 = vector.shape_cast %339 : vector<1x256xi1> to vector<1x256xi1>
    %358 = vector.broadcast %357 : vector<1x256xi1> to vector<8x256xi1>
    %359 = arith.select %358, %350, %356 : vector<8x256xi1>, vector<8x256xf32>
    %c0_167 = arith.constant 0 : index
    %c2_168 = arith.constant 2 : index
    %c0_169 = arith.constant 0 : index
    %c0_170 = arith.constant 0 : index
    %360 = vector.load %arg12[%c0_167, %c2_168, %c0_169, %c0_170] : memref<5x5x8x8xf32, #tpu.memory_space<vmem>>, vector<1x1x8x8xf32>
    %361 = vector.shape_cast %360 : vector<1x1x8x8xf32> to vector<8x8xf32>
    %cst_171 = arith.constant dense<0.000000e+00> : vector<8x256xf32>
    %362 = tpu.matmul %361, %359, %cst_171 {dimension_numbers = #tpu.dot_dimension_numbers<[1], [0], [0], [1], [0, 0, 1, 1], [], []>} : vector<8x8xf32>, vector<8x256xf32>, vector<8x256xf32> -> vector<8x256xf32>
    %363 = arith.addf %329, %362 : vector<8x256xf32>
    %c1_i32_172 = arith.constant 1 : i32
    %364 = vector.broadcast %c1_i32_172 : i32 to vector<1x256xi32>
    %365 = arith.addi %3, %364 : vector<1x256xi32>
    %c0_i32_173 = arith.constant 0 : i32
    %366 = vector.broadcast %c0_i32_173 : i32 to vector<1x256xi32>
    %367 = arith.cmpi sge, %365, %366 : vector<1x256xi32>
    %c1_i32_174 = arith.constant 1 : i32
    %368 = vector.broadcast %c1_i32_174 : i32 to vector<1x256xi32>
    %369 = arith.addi %3, %368 : vector<1x256xi32>
    %c15_i32_175 = arith.constant 15 : i32
    %370 = vector.broadcast %c15_i32_175 : i32 to vector<1x256xi32>
    %371 = arith.cmpi sle, %369, %370 : vector<1x256xi32>
    %372 = arith.andi %367, %371 : vector<1x256xi1>
    %373 = arith.andi %252, %372 : vector<1x256xi1>
    %c1_i32_176 = arith.constant 1 : i32
    %374 = vector.broadcast %c1_i32_176 : i32 to vector<1x256xi32>
    %375 = arith.addi %3, %374 : vector<1x256xi32>
    %c-1_i32_177 = arith.constant -1 : i32
    %376 = vector.broadcast %c-1_i32_177 : i32 to vector<1x256xi32>
    %377 = arith.cmpi sge, %375, %376 : vector<1x256xi32>
    %c1_i32_178 = arith.constant 1 : i32
    %378 = vector.broadcast %c1_i32_178 : i32 to vector<1x256xi32>
    %379 = arith.addi %3, %378 : vector<1x256xi32>
    %c16_i32_179 = arith.constant 16 : i32
    %380 = vector.broadcast %c16_i32_179 : i32 to vector<1x256xi32>
    %381 = arith.cmpi sle, %379, %380 : vector<1x256xi32>
    %382 = arith.andi %377, %381 : vector<1x256xi1>
    %383 = arith.andi %261, %382 : vector<1x256xi1>
    %c31_i32 = arith.constant 31 : i32
    %384 = tpu.dynamic_rotate %239 by %c31_i32 dim 1 : vector<8x256xf32>, i32 -> vector<8x256xf32>
    %cst_180 = arith.constant 0.000000e+00 : f32
    %385 = vector.shape_cast %383 : vector<1x256xi1> to vector<1x256xi1>
    %386 = vector.broadcast %385 : vector<1x256xi1> to vector<8x256xi1>
    %387 = vector.shape_cast %242 : vector<8x1xf32> to vector<8x1xf32>
    %388 = vector.broadcast %387 : vector<8x1xf32> to vector<8x256xf32>
    %389 = vector.broadcast %cst_180 : f32 to vector<8x256xf32>
    %390 = arith.select %386, %388, %389 : vector<8x256xi1>, vector<8x256xf32>
    %391 = vector.shape_cast %373 : vector<1x256xi1> to vector<1x256xi1>
    %392 = vector.broadcast %391 : vector<1x256xi1> to vector<8x256xi1>
    %393 = arith.select %392, %384, %390 : vector<8x256xi1>, vector<8x256xf32>
    %c0_181 = arith.constant 0 : index
    %c3 = arith.constant 3 : index
    %c0_182 = arith.constant 0 : index
    %c0_183 = arith.constant 0 : index
    %394 = vector.load %arg12[%c0_181, %c3, %c0_182, %c0_183] : memref<5x5x8x8xf32, #tpu.memory_space<vmem>>, vector<1x1x8x8xf32>
    %395 = vector.shape_cast %394 : vector<1x1x8x8xf32> to vector<8x8xf32>
    %cst_184 = arith.constant dense<0.000000e+00> : vector<8x256xf32>
    %396 = tpu.matmul %395, %393, %cst_184 {dimension_numbers = #tpu.dot_dimension_numbers<[1], [0], [0], [1], [0, 0, 1, 1], [], []>} : vector<8x8xf32>, vector<8x256xf32>, vector<8x256xf32> -> vector<8x256xf32>
    %397 = arith.addf %363, %396 : vector<8x256xf32>
    %c2_i32 = arith.constant 2 : i32
    %398 = vector.broadcast %c2_i32 : i32 to vector<1x256xi32>
    %399 = arith.addi %3, %398 : vector<1x256xi32>
    %c0_i32_185 = arith.constant 0 : i32
    %400 = vector.broadcast %c0_i32_185 : i32 to vector<1x256xi32>
    %401 = arith.cmpi sge, %399, %400 : vector<1x256xi32>
    %c2_i32_186 = arith.constant 2 : i32
    %402 = vector.broadcast %c2_i32_186 : i32 to vector<1x256xi32>
    %403 = arith.addi %3, %402 : vector<1x256xi32>
    %c15_i32_187 = arith.constant 15 : i32
    %404 = vector.broadcast %c15_i32_187 : i32 to vector<1x256xi32>
    %405 = arith.cmpi sle, %403, %404 : vector<1x256xi32>
    %406 = arith.andi %401, %405 : vector<1x256xi1>
    %407 = arith.andi %252, %406 : vector<1x256xi1>
    %c2_i32_188 = arith.constant 2 : i32
    %408 = vector.broadcast %c2_i32_188 : i32 to vector<1x256xi32>
    %409 = arith.addi %3, %408 : vector<1x256xi32>
    %c-1_i32_189 = arith.constant -1 : i32
    %410 = vector.broadcast %c-1_i32_189 : i32 to vector<1x256xi32>
    %411 = arith.cmpi sge, %409, %410 : vector<1x256xi32>
    %c2_i32_190 = arith.constant 2 : i32
    %412 = vector.broadcast %c2_i32_190 : i32 to vector<1x256xi32>
    %413 = arith.addi %3, %412 : vector<1x256xi32>
    %c16_i32_191 = arith.constant 16 : i32
    %414 = vector.broadcast %c16_i32_191 : i32 to vector<1x256xi32>
    %415 = arith.cmpi sle, %413, %414 : vector<1x256xi32>
    %416 = arith.andi %411, %415 : vector<1x256xi1>
    %417 = arith.andi %261, %416 : vector<1x256xi1>
    %c30_i32 = arith.constant 30 : i32
    %418 = tpu.dynamic_rotate %239 by %c30_i32 dim 1 : vector<8x256xf32>, i32 -> vector<8x256xf32>
    %cst_192 = arith.constant 0.000000e+00 : f32
    %419 = vector.shape_cast %417 : vector<1x256xi1> to vector<1x256xi1>
    %420 = vector.broadcast %419 : vector<1x256xi1> to vector<8x256xi1>
    %421 = vector.shape_cast %242 : vector<8x1xf32> to vector<8x1xf32>
    %422 = vector.broadcast %421 : vector<8x1xf32> to vector<8x256xf32>
    %423 = vector.broadcast %cst_192 : f32 to vector<8x256xf32>
    %424 = arith.select %420, %422, %423 : vector<8x256xi1>, vector<8x256xf32>
    %425 = vector.shape_cast %407 : vector<1x256xi1> to vector<1x256xi1>
    %426 = vector.broadcast %425 : vector<1x256xi1> to vector<8x256xi1>
    %427 = arith.select %426, %418, %424 : vector<8x256xi1>, vector<8x256xf32>
    %c0_193 = arith.constant 0 : index
    %c4 = arith.constant 4 : index
    %c0_194 = arith.constant 0 : index
    %c0_195 = arith.constant 0 : index
    %428 = vector.load %arg12[%c0_193, %c4, %c0_194, %c0_195] : memref<5x5x8x8xf32, #tpu.memory_space<vmem>>, vector<1x1x8x8xf32>
    %429 = vector.shape_cast %428 : vector<1x1x8x8xf32> to vector<8x8xf32>
    %cst_196 = arith.constant dense<0.000000e+00> : vector<8x256xf32>
    %430 = tpu.matmul %429, %427, %cst_196 {dimension_numbers = #tpu.dot_dimension_numbers<[1], [0], [0], [1], [0, 0, 1, 1], [], []>} : vector<8x8xf32>, vector<8x256xf32>, vector<8x256xf32> -> vector<8x256xf32>
    %431 = arith.addf %397, %430 : vector<8x256xf32>
    %c-1_i32_197 = arith.constant -1 : i32
    %432 = vector.broadcast %c-1_i32_197 : i32 to vector<1x256xi32>
    %433 = arith.addi %2, %432 : vector<1x256xi32>
    %c0_i32_198 = arith.constant 0 : i32
    %434 = vector.broadcast %c0_i32_198 : i32 to vector<1x256xi32>
    %435 = arith.cmpi sge, %433, %434 : vector<1x256xi32>
    %c-1_i32_199 = arith.constant -1 : i32
    %436 = vector.broadcast %c-1_i32_199 : i32 to vector<1x256xi32>
    %437 = arith.addi %2, %436 : vector<1x256xi32>
    %c15_i32_200 = arith.constant 15 : i32
    %438 = vector.broadcast %c15_i32_200 : i32 to vector<1x256xi32>
    %439 = arith.cmpi sle, %437, %438 : vector<1x256xi32>
    %440 = arith.andi %435, %439 : vector<1x256xi1>
    %c-1_i32_201 = arith.constant -1 : i32
    %441 = vector.broadcast %c-1_i32_201 : i32 to vector<1x256xi32>
    %442 = arith.addi %2, %441 : vector<1x256xi32>
    %c-1_i32_202 = arith.constant -1 : i32
    %443 = vector.broadcast %c-1_i32_202 : i32 to vector<1x256xi32>
    %444 = arith.cmpi sge, %442, %443 : vector<1x256xi32>
    %c-1_i32_203 = arith.constant -1 : i32
    %445 = vector.broadcast %c-1_i32_203 : i32 to vector<1x256xi32>
    %446 = arith.addi %2, %445 : vector<1x256xi32>
    %c16_i32_204 = arith.constant 16 : i32
    %447 = vector.broadcast %c16_i32_204 : i32 to vector<1x256xi32>
    %448 = arith.cmpi sle, %446, %447 : vector<1x256xi32>
    %449 = arith.andi %444, %448 : vector<1x256xi1>
    %c-2_i32_205 = arith.constant -2 : i32
    %450 = vector.broadcast %c-2_i32_205 : i32 to vector<1x256xi32>
    %451 = arith.addi %3, %450 : vector<1x256xi32>
    %c0_i32_206 = arith.constant 0 : i32
    %452 = vector.broadcast %c0_i32_206 : i32 to vector<1x256xi32>
    %453 = arith.cmpi sge, %451, %452 : vector<1x256xi32>
    %c-2_i32_207 = arith.constant -2 : i32
    %454 = vector.broadcast %c-2_i32_207 : i32 to vector<1x256xi32>
    %455 = arith.addi %3, %454 : vector<1x256xi32>
    %c15_i32_208 = arith.constant 15 : i32
    %456 = vector.broadcast %c15_i32_208 : i32 to vector<1x256xi32>
    %457 = arith.cmpi sle, %455, %456 : vector<1x256xi32>
    %458 = arith.andi %453, %457 : vector<1x256xi1>
    %459 = arith.andi %440, %458 : vector<1x256xi1>
    %c-2_i32_209 = arith.constant -2 : i32
    %460 = vector.broadcast %c-2_i32_209 : i32 to vector<1x256xi32>
    %461 = arith.addi %3, %460 : vector<1x256xi32>
    %c-1_i32_210 = arith.constant -1 : i32
    %462 = vector.broadcast %c-1_i32_210 : i32 to vector<1x256xi32>
    %463 = arith.cmpi sge, %461, %462 : vector<1x256xi32>
    %c-2_i32_211 = arith.constant -2 : i32
    %464 = vector.broadcast %c-2_i32_211 : i32 to vector<1x256xi32>
    %465 = arith.addi %3, %464 : vector<1x256xi32>
    %c16_i32_212 = arith.constant 16 : i32
    %466 = vector.broadcast %c16_i32_212 : i32 to vector<1x256xi32>
    %467 = arith.cmpi sle, %465, %466 : vector<1x256xi32>
    %468 = arith.andi %463, %467 : vector<1x256xi1>
    %469 = arith.andi %449, %468 : vector<1x256xi1>
    %c18_i32 = arith.constant 18 : i32
    %470 = tpu.dynamic_rotate %239 by %c18_i32 dim 1 : vector<8x256xf32>, i32 -> vector<8x256xf32>
    %cst_213 = arith.constant 0.000000e+00 : f32
    %471 = vector.shape_cast %469 : vector<1x256xi1> to vector<1x256xi1>
    %472 = vector.broadcast %471 : vector<1x256xi1> to vector<8x256xi1>
    %473 = vector.shape_cast %242 : vector<8x1xf32> to vector<8x1xf32>
    %474 = vector.broadcast %473 : vector<8x1xf32> to vector<8x256xf32>
    %475 = vector.broadcast %cst_213 : f32 to vector<8x256xf32>
    %476 = arith.select %472, %474, %475 : vector<8x256xi1>, vector<8x256xf32>
    %477 = vector.shape_cast %459 : vector<1x256xi1> to vector<1x256xi1>
    %478 = vector.broadcast %477 : vector<1x256xi1> to vector<8x256xi1>
    %479 = arith.select %478, %470, %476 : vector<8x256xi1>, vector<8x256xf32>
    %c1_214 = arith.constant 1 : index
    %c0_215 = arith.constant 0 : index
    %c0_216 = arith.constant 0 : index
    %c0_217 = arith.constant 0 : index
    %480 = vector.load %arg12[%c1_214, %c0_215, %c0_216, %c0_217] : memref<5x5x8x8xf32, #tpu.memory_space<vmem>>, vector<1x1x8x8xf32>
    %481 = vector.shape_cast %480 : vector<1x1x8x8xf32> to vector<8x8xf32>
    %cst_218 = arith.constant dense<0.000000e+00> : vector<8x256xf32>
    %482 = tpu.matmul %481, %479, %cst_218 {dimension_numbers = #tpu.dot_dimension_numbers<[1], [0], [0], [1], [0, 0, 1, 1], [], []>} : vector<8x8xf32>, vector<8x256xf32>, vector<8x256xf32> -> vector<8x256xf32>
    %483 = arith.addf %431, %482 : vector<8x256xf32>
    %c-1_i32_219 = arith.constant -1 : i32
    %484 = vector.broadcast %c-1_i32_219 : i32 to vector<1x256xi32>
    %485 = arith.addi %3, %484 : vector<1x256xi32>
    %c0_i32_220 = arith.constant 0 : i32
    %486 = vector.broadcast %c0_i32_220 : i32 to vector<1x256xi32>
    %487 = arith.cmpi sge, %485, %486 : vector<1x256xi32>
    %c-1_i32_221 = arith.constant -1 : i32
    %488 = vector.broadcast %c-1_i32_221 : i32 to vector<1x256xi32>
    %489 = arith.addi %3, %488 : vector<1x256xi32>
    %c15_i32_222 = arith.constant 15 : i32
    %490 = vector.broadcast %c15_i32_222 : i32 to vector<1x256xi32>
    %491 = arith.cmpi sle, %489, %490 : vector<1x256xi32>
    %492 = arith.andi %487, %491 : vector<1x256xi1>
    %493 = arith.andi %440, %492 : vector<1x256xi1>
    %c-1_i32_223 = arith.constant -1 : i32
    %494 = vector.broadcast %c-1_i32_223 : i32 to vector<1x256xi32>
    %495 = arith.addi %3, %494 : vector<1x256xi32>
    %c-1_i32_224 = arith.constant -1 : i32
    %496 = vector.broadcast %c-1_i32_224 : i32 to vector<1x256xi32>
    %497 = arith.cmpi sge, %495, %496 : vector<1x256xi32>
    %c-1_i32_225 = arith.constant -1 : i32
    %498 = vector.broadcast %c-1_i32_225 : i32 to vector<1x256xi32>
    %499 = arith.addi %3, %498 : vector<1x256xi32>
    %c16_i32_226 = arith.constant 16 : i32
    %500 = vector.broadcast %c16_i32_226 : i32 to vector<1x256xi32>
    %501 = arith.cmpi sle, %499, %500 : vector<1x256xi32>
    %502 = arith.andi %497, %501 : vector<1x256xi1>
    %503 = arith.andi %449, %502 : vector<1x256xi1>
    %c17_i32_227 = arith.constant 17 : i32
    %504 = tpu.dynamic_rotate %239 by %c17_i32_227 dim 1 : vector<8x256xf32>, i32 -> vector<8x256xf32>
    %cst_228 = arith.constant 0.000000e+00 : f32
    %505 = vector.shape_cast %503 : vector<1x256xi1> to vector<1x256xi1>
    %506 = vector.broadcast %505 : vector<1x256xi1> to vector<8x256xi1>
    %507 = vector.shape_cast %242 : vector<8x1xf32> to vector<8x1xf32>
    %508 = vector.broadcast %507 : vector<8x1xf32> to vector<8x256xf32>
    %509 = vector.broadcast %cst_228 : f32 to vector<8x256xf32>
    %510 = arith.select %506, %508, %509 : vector<8x256xi1>, vector<8x256xf32>
    %511 = vector.shape_cast %493 : vector<1x256xi1> to vector<1x256xi1>
    %512 = vector.broadcast %511 : vector<1x256xi1> to vector<8x256xi1>
    %513 = arith.select %512, %504, %510 : vector<8x256xi1>, vector<8x256xf32>
    %c1_229 = arith.constant 1 : index
    %c1_230 = arith.constant 1 : index
    %c0_231 = arith.constant 0 : index
    %c0_232 = arith.constant 0 : index
    %514 = vector.load %arg12[%c1_229, %c1_230, %c0_231, %c0_232] : memref<5x5x8x8xf32, #tpu.memory_space<vmem>>, vector<1x1x8x8xf32>
    %515 = vector.shape_cast %514 : vector<1x1x8x8xf32> to vector<8x8xf32>
    %cst_233 = arith.constant dense<0.000000e+00> : vector<8x256xf32>
    %516 = tpu.matmul %515, %513, %cst_233 {dimension_numbers = #tpu.dot_dimension_numbers<[1], [0], [0], [1], [0, 0, 1, 1], [], []>} : vector<8x8xf32>, vector<8x256xf32>, vector<8x256xf32> -> vector<8x256xf32>
    %517 = arith.addf %483, %516 : vector<8x256xf32>
    %c0_i32_234 = arith.constant 0 : i32
    %518 = vector.broadcast %c0_i32_234 : i32 to vector<1x256xi32>
    %519 = arith.addi %3, %518 : vector<1x256xi32>
    %c0_i32_235 = arith.constant 0 : i32
    %520 = vector.broadcast %c0_i32_235 : i32 to vector<1x256xi32>
    %521 = arith.cmpi sge, %519, %520 : vector<1x256xi32>
    %c0_i32_236 = arith.constant 0 : i32
    %522 = vector.broadcast %c0_i32_236 : i32 to vector<1x256xi32>
    %523 = arith.addi %3, %522 : vector<1x256xi32>
    %c15_i32_237 = arith.constant 15 : i32
    %524 = vector.broadcast %c15_i32_237 : i32 to vector<1x256xi32>
    %525 = arith.cmpi sle, %523, %524 : vector<1x256xi32>
    %526 = arith.andi %521, %525 : vector<1x256xi1>
    %527 = arith.andi %440, %526 : vector<1x256xi1>
    %c0_i32_238 = arith.constant 0 : i32
    %528 = vector.broadcast %c0_i32_238 : i32 to vector<1x256xi32>
    %529 = arith.addi %3, %528 : vector<1x256xi32>
    %c-1_i32_239 = arith.constant -1 : i32
    %530 = vector.broadcast %c-1_i32_239 : i32 to vector<1x256xi32>
    %531 = arith.cmpi sge, %529, %530 : vector<1x256xi32>
    %c0_i32_240 = arith.constant 0 : i32
    %532 = vector.broadcast %c0_i32_240 : i32 to vector<1x256xi32>
    %533 = arith.addi %3, %532 : vector<1x256xi32>
    %c16_i32_241 = arith.constant 16 : i32
    %534 = vector.broadcast %c16_i32_241 : i32 to vector<1x256xi32>
    %535 = arith.cmpi sle, %533, %534 : vector<1x256xi32>
    %536 = arith.andi %531, %535 : vector<1x256xi1>
    %537 = arith.andi %449, %536 : vector<1x256xi1>
    %c16_i32_242 = arith.constant 16 : i32
    %538 = tpu.dynamic_rotate %239 by %c16_i32_242 dim 1 : vector<8x256xf32>, i32 -> vector<8x256xf32>
    %cst_243 = arith.constant 0.000000e+00 : f32
    %539 = vector.shape_cast %537 : vector<1x256xi1> to vector<1x256xi1>
    %540 = vector.broadcast %539 : vector<1x256xi1> to vector<8x256xi1>
    %541 = vector.shape_cast %242 : vector<8x1xf32> to vector<8x1xf32>
    %542 = vector.broadcast %541 : vector<8x1xf32> to vector<8x256xf32>
    %543 = vector.broadcast %cst_243 : f32 to vector<8x256xf32>
    %544 = arith.select %540, %542, %543 : vector<8x256xi1>, vector<8x256xf32>
    %545 = vector.shape_cast %527 : vector<1x256xi1> to vector<1x256xi1>
    %546 = vector.broadcast %545 : vector<1x256xi1> to vector<8x256xi1>
    %547 = arith.select %546, %538, %544 : vector<8x256xi1>, vector<8x256xf32>
    %c1_244 = arith.constant 1 : index
    %c2_245 = arith.constant 2 : index
    %c0_246 = arith.constant 0 : index
    %c0_247 = arith.constant 0 : index
    %548 = vector.load %arg12[%c1_244, %c2_245, %c0_246, %c0_247] : memref<5x5x8x8xf32, #tpu.memory_space<vmem>>, vector<1x1x8x8xf32>
    %549 = vector.shape_cast %548 : vector<1x1x8x8xf32> to vector<8x8xf32>
    %cst_248 = arith.constant dense<0.000000e+00> : vector<8x256xf32>
    %550 = tpu.matmul %549, %547, %cst_248 {dimension_numbers = #tpu.dot_dimension_numbers<[1], [0], [0], [1], [0, 0, 1, 1], [], []>} : vector<8x8xf32>, vector<8x256xf32>, vector<8x256xf32> -> vector<8x256xf32>
    %551 = arith.addf %517, %550 : vector<8x256xf32>
    %c1_i32_249 = arith.constant 1 : i32
    %552 = vector.broadcast %c1_i32_249 : i32 to vector<1x256xi32>
    %553 = arith.addi %3, %552 : vector<1x256xi32>
    %c0_i32_250 = arith.constant 0 : i32
    %554 = vector.broadcast %c0_i32_250 : i32 to vector<1x256xi32>
    %555 = arith.cmpi sge, %553, %554 : vector<1x256xi32>
    %c1_i32_251 = arith.constant 1 : i32
    %556 = vector.broadcast %c1_i32_251 : i32 to vector<1x256xi32>
    %557 = arith.addi %3, %556 : vector<1x256xi32>
    %c15_i32_252 = arith.constant 15 : i32
    %558 = vector.broadcast %c15_i32_252 : i32 to vector<1x256xi32>
    %559 = arith.cmpi sle, %557, %558 : vector<1x256xi32>
    %560 = arith.andi %555, %559 : vector<1x256xi1>
    %561 = arith.andi %440, %560 : vector<1x256xi1>
    %c1_i32_253 = arith.constant 1 : i32
    %562 = vector.broadcast %c1_i32_253 : i32 to vector<1x256xi32>
    %563 = arith.addi %3, %562 : vector<1x256xi32>
    %c-1_i32_254 = arith.constant -1 : i32
    %564 = vector.broadcast %c-1_i32_254 : i32 to vector<1x256xi32>
    %565 = arith.cmpi sge, %563, %564 : vector<1x256xi32>
    %c1_i32_255 = arith.constant 1 : i32
    %566 = vector.broadcast %c1_i32_255 : i32 to vector<1x256xi32>
    %567 = arith.addi %3, %566 : vector<1x256xi32>
    %c16_i32_256 = arith.constant 16 : i32
    %568 = vector.broadcast %c16_i32_256 : i32 to vector<1x256xi32>
    %569 = arith.cmpi sle, %567, %568 : vector<1x256xi32>
    %570 = arith.andi %565, %569 : vector<1x256xi1>
    %571 = arith.andi %449, %570 : vector<1x256xi1>
    %c15_i32_257 = arith.constant 15 : i32
    %572 = tpu.dynamic_rotate %239 by %c15_i32_257 dim 1 : vector<8x256xf32>, i32 -> vector<8x256xf32>
    %cst_258 = arith.constant 0.000000e+00 : f32
    %573 = vector.shape_cast %571 : vector<1x256xi1> to vector<1x256xi1>
    %574 = vector.broadcast %573 : vector<1x256xi1> to vector<8x256xi1>
    %575 = vector.shape_cast %242 : vector<8x1xf32> to vector<8x1xf32>
    %576 = vector.broadcast %575 : vector<8x1xf32> to vector<8x256xf32>
    %577 = vector.broadcast %cst_258 : f32 to vector<8x256xf32>
    %578 = arith.select %574, %576, %577 : vector<8x256xi1>, vector<8x256xf32>
    %579 = vector.shape_cast %561 : vector<1x256xi1> to vector<1x256xi1>
    %580 = vector.broadcast %579 : vector<1x256xi1> to vector<8x256xi1>
    %581 = arith.select %580, %572, %578 : vector<8x256xi1>, vector<8x256xf32>
    %c1_259 = arith.constant 1 : index
    %c3_260 = arith.constant 3 : index
    %c0_261 = arith.constant 0 : index
    %c0_262 = arith.constant 0 : index
    %582 = vector.load %arg12[%c1_259, %c3_260, %c0_261, %c0_262] : memref<5x5x8x8xf32, #tpu.memory_space<vmem>>, vector<1x1x8x8xf32>
    %583 = vector.shape_cast %582 : vector<1x1x8x8xf32> to vector<8x8xf32>
    %cst_263 = arith.constant dense<0.000000e+00> : vector<8x256xf32>
    %584 = tpu.matmul %583, %581, %cst_263 {dimension_numbers = #tpu.dot_dimension_numbers<[1], [0], [0], [1], [0, 0, 1, 1], [], []>} : vector<8x8xf32>, vector<8x256xf32>, vector<8x256xf32> -> vector<8x256xf32>
    %585 = arith.addf %551, %584 : vector<8x256xf32>
    %c2_i32_264 = arith.constant 2 : i32
    %586 = vector.broadcast %c2_i32_264 : i32 to vector<1x256xi32>
    %587 = arith.addi %3, %586 : vector<1x256xi32>
    %c0_i32_265 = arith.constant 0 : i32
    %588 = vector.broadcast %c0_i32_265 : i32 to vector<1x256xi32>
    %589 = arith.cmpi sge, %587, %588 : vector<1x256xi32>
    %c2_i32_266 = arith.constant 2 : i32
    %590 = vector.broadcast %c2_i32_266 : i32 to vector<1x256xi32>
    %591 = arith.addi %3, %590 : vector<1x256xi32>
    %c15_i32_267 = arith.constant 15 : i32
    %592 = vector.broadcast %c15_i32_267 : i32 to vector<1x256xi32>
    %593 = arith.cmpi sle, %591, %592 : vector<1x256xi32>
    %594 = arith.andi %589, %593 : vector<1x256xi1>
    %595 = arith.andi %440, %594 : vector<1x256xi1>
    %c2_i32_268 = arith.constant 2 : i32
    %596 = vector.broadcast %c2_i32_268 : i32 to vector<1x256xi32>
    %597 = arith.addi %3, %596 : vector<1x256xi32>
    %c-1_i32_269 = arith.constant -1 : i32
    %598 = vector.broadcast %c-1_i32_269 : i32 to vector<1x256xi32>
    %599 = arith.cmpi sge, %597, %598 : vector<1x256xi32>
    %c2_i32_270 = arith.constant 2 : i32
    %600 = vector.broadcast %c2_i32_270 : i32 to vector<1x256xi32>
    %601 = arith.addi %3, %600 : vector<1x256xi32>
    %c16_i32_271 = arith.constant 16 : i32
    %602 = vector.broadcast %c16_i32_271 : i32 to vector<1x256xi32>
    %603 = arith.cmpi sle, %601, %602 : vector<1x256xi32>
    %604 = arith.andi %599, %603 : vector<1x256xi1>
    %605 = arith.andi %449, %604 : vector<1x256xi1>
    %c14_i32 = arith.constant 14 : i32
    %606 = tpu.dynamic_rotate %239 by %c14_i32 dim 1 : vector<8x256xf32>, i32 -> vector<8x256xf32>
    %cst_272 = arith.constant 0.000000e+00 : f32
    %607 = vector.shape_cast %605 : vector<1x256xi1> to vector<1x256xi1>
    %608 = vector.broadcast %607 : vector<1x256xi1> to vector<8x256xi1>
    %609 = vector.shape_cast %242 : vector<8x1xf32> to vector<8x1xf32>
    %610 = vector.broadcast %609 : vector<8x1xf32> to vector<8x256xf32>
    %611 = vector.broadcast %cst_272 : f32 to vector<8x256xf32>
    %612 = arith.select %608, %610, %611 : vector<8x256xi1>, vector<8x256xf32>
    %613 = vector.shape_cast %595 : vector<1x256xi1> to vector<1x256xi1>
    %614 = vector.broadcast %613 : vector<1x256xi1> to vector<8x256xi1>
    %615 = arith.select %614, %606, %612 : vector<8x256xi1>, vector<8x256xf32>
    %c1_273 = arith.constant 1 : index
    %c4_274 = arith.constant 4 : index
    %c0_275 = arith.constant 0 : index
    %c0_276 = arith.constant 0 : index
    %616 = vector.load %arg12[%c1_273, %c4_274, %c0_275, %c0_276] : memref<5x5x8x8xf32, #tpu.memory_space<vmem>>, vector<1x1x8x8xf32>
    %617 = vector.shape_cast %616 : vector<1x1x8x8xf32> to vector<8x8xf32>
    %cst_277 = arith.constant dense<0.000000e+00> : vector<8x256xf32>
    %618 = tpu.matmul %617, %615, %cst_277 {dimension_numbers = #tpu.dot_dimension_numbers<[1], [0], [0], [1], [0, 0, 1, 1], [], []>} : vector<8x8xf32>, vector<8x256xf32>, vector<8x256xf32> -> vector<8x256xf32>
    %619 = arith.addf %585, %618 : vector<8x256xf32>
    %c0_i32_278 = arith.constant 0 : i32
    %620 = vector.broadcast %c0_i32_278 : i32 to vector<1x256xi32>
    %621 = arith.addi %2, %620 : vector<1x256xi32>
    %c0_i32_279 = arith.constant 0 : i32
    %622 = vector.broadcast %c0_i32_279 : i32 to vector<1x256xi32>
    %623 = arith.cmpi sge, %621, %622 : vector<1x256xi32>
    %c0_i32_280 = arith.constant 0 : i32
    %624 = vector.broadcast %c0_i32_280 : i32 to vector<1x256xi32>
    %625 = arith.addi %2, %624 : vector<1x256xi32>
    %c15_i32_281 = arith.constant 15 : i32
    %626 = vector.broadcast %c15_i32_281 : i32 to vector<1x256xi32>
    %627 = arith.cmpi sle, %625, %626 : vector<1x256xi32>
    %628 = arith.andi %623, %627 : vector<1x256xi1>
    %c0_i32_282 = arith.constant 0 : i32
    %629 = vector.broadcast %c0_i32_282 : i32 to vector<1x256xi32>
    %630 = arith.addi %2, %629 : vector<1x256xi32>
    %c-1_i32_283 = arith.constant -1 : i32
    %631 = vector.broadcast %c-1_i32_283 : i32 to vector<1x256xi32>
    %632 = arith.cmpi sge, %630, %631 : vector<1x256xi32>
    %c0_i32_284 = arith.constant 0 : i32
    %633 = vector.broadcast %c0_i32_284 : i32 to vector<1x256xi32>
    %634 = arith.addi %2, %633 : vector<1x256xi32>
    %c16_i32_285 = arith.constant 16 : i32
    %635 = vector.broadcast %c16_i32_285 : i32 to vector<1x256xi32>
    %636 = arith.cmpi sle, %634, %635 : vector<1x256xi32>
    %637 = arith.andi %632, %636 : vector<1x256xi1>
    %c-2_i32_286 = arith.constant -2 : i32
    %638 = vector.broadcast %c-2_i32_286 : i32 to vector<1x256xi32>
    %639 = arith.addi %3, %638 : vector<1x256xi32>
    %c0_i32_287 = arith.constant 0 : i32
    %640 = vector.broadcast %c0_i32_287 : i32 to vector<1x256xi32>
    %641 = arith.cmpi sge, %639, %640 : vector<1x256xi32>
    %c-2_i32_288 = arith.constant -2 : i32
    %642 = vector.broadcast %c-2_i32_288 : i32 to vector<1x256xi32>
    %643 = arith.addi %3, %642 : vector<1x256xi32>
    %c15_i32_289 = arith.constant 15 : i32
    %644 = vector.broadcast %c15_i32_289 : i32 to vector<1x256xi32>
    %645 = arith.cmpi sle, %643, %644 : vector<1x256xi32>
    %646 = arith.andi %641, %645 : vector<1x256xi1>
    %647 = arith.andi %628, %646 : vector<1x256xi1>
    %c-2_i32_290 = arith.constant -2 : i32
    %648 = vector.broadcast %c-2_i32_290 : i32 to vector<1x256xi32>
    %649 = arith.addi %3, %648 : vector<1x256xi32>
    %c-1_i32_291 = arith.constant -1 : i32
    %650 = vector.broadcast %c-1_i32_291 : i32 to vector<1x256xi32>
    %651 = arith.cmpi sge, %649, %650 : vector<1x256xi32>
    %c-2_i32_292 = arith.constant -2 : i32
    %652 = vector.broadcast %c-2_i32_292 : i32 to vector<1x256xi32>
    %653 = arith.addi %3, %652 : vector<1x256xi32>
    %c16_i32_293 = arith.constant 16 : i32
    %654 = vector.broadcast %c16_i32_293 : i32 to vector<1x256xi32>
    %655 = arith.cmpi sle, %653, %654 : vector<1x256xi32>
    %656 = arith.andi %651, %655 : vector<1x256xi1>
    %657 = arith.andi %637, %656 : vector<1x256xi1>
    %c2_i32_294 = arith.constant 2 : i32
    %658 = tpu.dynamic_rotate %239 by %c2_i32_294 dim 1 : vector<8x256xf32>, i32 -> vector<8x256xf32>
    %cst_295 = arith.constant 0.000000e+00 : f32
    %659 = vector.shape_cast %657 : vector<1x256xi1> to vector<1x256xi1>
    %660 = vector.broadcast %659 : vector<1x256xi1> to vector<8x256xi1>
    %661 = vector.shape_cast %242 : vector<8x1xf32> to vector<8x1xf32>
    %662 = vector.broadcast %661 : vector<8x1xf32> to vector<8x256xf32>
    %663 = vector.broadcast %cst_295 : f32 to vector<8x256xf32>
    %664 = arith.select %660, %662, %663 : vector<8x256xi1>, vector<8x256xf32>
    %665 = vector.shape_cast %647 : vector<1x256xi1> to vector<1x256xi1>
    %666 = vector.broadcast %665 : vector<1x256xi1> to vector<8x256xi1>
    %667 = arith.select %666, %658, %664 : vector<8x256xi1>, vector<8x256xf32>
    %c2_296 = arith.constant 2 : index
    %c0_297 = arith.constant 0 : index
    %c0_298 = arith.constant 0 : index
    %c0_299 = arith.constant 0 : index
    %668 = vector.load %arg12[%c2_296, %c0_297, %c0_298, %c0_299] : memref<5x5x8x8xf32, #tpu.memory_space<vmem>>, vector<1x1x8x8xf32>
    %669 = vector.shape_cast %668 : vector<1x1x8x8xf32> to vector<8x8xf32>
    %cst_300 = arith.constant dense<0.000000e+00> : vector<8x256xf32>
    %670 = tpu.matmul %669, %667, %cst_300 {dimension_numbers = #tpu.dot_dimension_numbers<[1], [0], [0], [1], [0, 0, 1, 1], [], []>} : vector<8x8xf32>, vector<8x256xf32>, vector<8x256xf32> -> vector<8x256xf32>
    %671 = arith.addf %619, %670 : vector<8x256xf32>
    %c-1_i32_301 = arith.constant -1 : i32
    %672 = vector.broadcast %c-1_i32_301 : i32 to vector<1x256xi32>
    %673 = arith.addi %3, %672 : vector<1x256xi32>
    %c0_i32_302 = arith.constant 0 : i32
    %674 = vector.broadcast %c0_i32_302 : i32 to vector<1x256xi32>
    %675 = arith.cmpi sge, %673, %674 : vector<1x256xi32>
    %c-1_i32_303 = arith.constant -1 : i32
    %676 = vector.broadcast %c-1_i32_303 : i32 to vector<1x256xi32>
    %677 = arith.addi %3, %676 : vector<1x256xi32>
    %c15_i32_304 = arith.constant 15 : i32
    %678 = vector.broadcast %c15_i32_304 : i32 to vector<1x256xi32>
    %679 = arith.cmpi sle, %677, %678 : vector<1x256xi32>
    %680 = arith.andi %675, %679 : vector<1x256xi1>
    %681 = arith.andi %628, %680 : vector<1x256xi1>
    %c-1_i32_305 = arith.constant -1 : i32
    %682 = vector.broadcast %c-1_i32_305 : i32 to vector<1x256xi32>
    %683 = arith.addi %3, %682 : vector<1x256xi32>
    %c-1_i32_306 = arith.constant -1 : i32
    %684 = vector.broadcast %c-1_i32_306 : i32 to vector<1x256xi32>
    %685 = arith.cmpi sge, %683, %684 : vector<1x256xi32>
    %c-1_i32_307 = arith.constant -1 : i32
    %686 = vector.broadcast %c-1_i32_307 : i32 to vector<1x256xi32>
    %687 = arith.addi %3, %686 : vector<1x256xi32>
    %c16_i32_308 = arith.constant 16 : i32
    %688 = vector.broadcast %c16_i32_308 : i32 to vector<1x256xi32>
    %689 = arith.cmpi sle, %687, %688 : vector<1x256xi32>
    %690 = arith.andi %685, %689 : vector<1x256xi1>
    %691 = arith.andi %637, %690 : vector<1x256xi1>
    %c1_i32_309 = arith.constant 1 : i32
    %692 = tpu.dynamic_rotate %239 by %c1_i32_309 dim 1 : vector<8x256xf32>, i32 -> vector<8x256xf32>
    %cst_310 = arith.constant 0.000000e+00 : f32
    %693 = vector.shape_cast %691 : vector<1x256xi1> to vector<1x256xi1>
    %694 = vector.broadcast %693 : vector<1x256xi1> to vector<8x256xi1>
    %695 = vector.shape_cast %242 : vector<8x1xf32> to vector<8x1xf32>
    %696 = vector.broadcast %695 : vector<8x1xf32> to vector<8x256xf32>
    %697 = vector.broadcast %cst_310 : f32 to vector<8x256xf32>
    %698 = arith.select %694, %696, %697 : vector<8x256xi1>, vector<8x256xf32>
    %699 = vector.shape_cast %681 : vector<1x256xi1> to vector<1x256xi1>
    %700 = vector.broadcast %699 : vector<1x256xi1> to vector<8x256xi1>
    %701 = arith.select %700, %692, %698 : vector<8x256xi1>, vector<8x256xf32>
    %c2_311 = arith.constant 2 : index
    %c1_312 = arith.constant 1 : index
    %c0_313 = arith.constant 0 : index
    %c0_314 = arith.constant 0 : index
    %702 = vector.load %arg12[%c2_311, %c1_312, %c0_313, %c0_314] : memref<5x5x8x8xf32, #tpu.memory_space<vmem>>, vector<1x1x8x8xf32>
    %703 = vector.shape_cast %702 : vector<1x1x8x8xf32> to vector<8x8xf32>
    %cst_315 = arith.constant dense<0.000000e+00> : vector<8x256xf32>
    %704 = tpu.matmul %703, %701, %cst_315 {dimension_numbers = #tpu.dot_dimension_numbers<[1], [0], [0], [1], [0, 0, 1, 1], [], []>} : vector<8x8xf32>, vector<8x256xf32>, vector<8x256xf32> -> vector<8x256xf32>
    %705 = arith.addf %671, %704 : vector<8x256xf32>
    %c0_i32_316 = arith.constant 0 : i32
    %706 = vector.broadcast %c0_i32_316 : i32 to vector<1x256xi32>
    %707 = arith.addi %3, %706 : vector<1x256xi32>
    %c0_i32_317 = arith.constant 0 : i32
    %708 = vector.broadcast %c0_i32_317 : i32 to vector<1x256xi32>
    %709 = arith.cmpi sge, %707, %708 : vector<1x256xi32>
    %c0_i32_318 = arith.constant 0 : i32
    %710 = vector.broadcast %c0_i32_318 : i32 to vector<1x256xi32>
    %711 = arith.addi %3, %710 : vector<1x256xi32>
    %c15_i32_319 = arith.constant 15 : i32
    %712 = vector.broadcast %c15_i32_319 : i32 to vector<1x256xi32>
    %713 = arith.cmpi sle, %711, %712 : vector<1x256xi32>
    %714 = arith.andi %709, %713 : vector<1x256xi1>
    %715 = arith.andi %628, %714 : vector<1x256xi1>
    %c0_i32_320 = arith.constant 0 : i32
    %716 = vector.broadcast %c0_i32_320 : i32 to vector<1x256xi32>
    %717 = arith.addi %3, %716 : vector<1x256xi32>
    %c-1_i32_321 = arith.constant -1 : i32
    %718 = vector.broadcast %c-1_i32_321 : i32 to vector<1x256xi32>
    %719 = arith.cmpi sge, %717, %718 : vector<1x256xi32>
    %c0_i32_322 = arith.constant 0 : i32
    %720 = vector.broadcast %c0_i32_322 : i32 to vector<1x256xi32>
    %721 = arith.addi %3, %720 : vector<1x256xi32>
    %c16_i32_323 = arith.constant 16 : i32
    %722 = vector.broadcast %c16_i32_323 : i32 to vector<1x256xi32>
    %723 = arith.cmpi sle, %721, %722 : vector<1x256xi32>
    %724 = arith.andi %719, %723 : vector<1x256xi1>
    %725 = arith.andi %637, %724 : vector<1x256xi1>
    %cst_324 = arith.constant 0.000000e+00 : f32
    %726 = vector.shape_cast %725 : vector<1x256xi1> to vector<1x256xi1>
    %727 = vector.broadcast %726 : vector<1x256xi1> to vector<8x256xi1>
    %728 = vector.shape_cast %242 : vector<8x1xf32> to vector<8x1xf32>
    %729 = vector.broadcast %728 : vector<8x1xf32> to vector<8x256xf32>
    %730 = vector.broadcast %cst_324 : f32 to vector<8x256xf32>
    %731 = arith.select %727, %729, %730 : vector<8x256xi1>, vector<8x256xf32>
    %732 = vector.shape_cast %715 : vector<1x256xi1> to vector<1x256xi1>
    %733 = vector.broadcast %732 : vector<1x256xi1> to vector<8x256xi1>
    %734 = arith.select %733, %239, %731 : vector<8x256xi1>, vector<8x256xf32>
    %c2_325 = arith.constant 2 : index
    %c2_326 = arith.constant 2 : index
    %c0_327 = arith.constant 0 : index
    %c0_328 = arith.constant 0 : index
    %735 = vector.load %arg12[%c2_325, %c2_326, %c0_327, %c0_328] : memref<5x5x8x8xf32, #tpu.memory_space<vmem>>, vector<1x1x8x8xf32>
    %736 = vector.shape_cast %735 : vector<1x1x8x8xf32> to vector<8x8xf32>
    %cst_329 = arith.constant dense<0.000000e+00> : vector<8x256xf32>
    %737 = tpu.matmul %736, %734, %cst_329 {dimension_numbers = #tpu.dot_dimension_numbers<[1], [0], [0], [1], [0, 0, 1, 1], [], []>} : vector<8x8xf32>, vector<8x256xf32>, vector<8x256xf32> -> vector<8x256xf32>
    %738 = arith.addf %705, %737 : vector<8x256xf32>
    %c1_i32_330 = arith.constant 1 : i32
    %739 = vector.broadcast %c1_i32_330 : i32 to vector<1x256xi32>
    %740 = arith.addi %3, %739 : vector<1x256xi32>
    %c0_i32_331 = arith.constant 0 : i32
    %741 = vector.broadcast %c0_i32_331 : i32 to vector<1x256xi32>
    %742 = arith.cmpi sge, %740, %741 : vector<1x256xi32>
    %c1_i32_332 = arith.constant 1 : i32
    %743 = vector.broadcast %c1_i32_332 : i32 to vector<1x256xi32>
    %744 = arith.addi %3, %743 : vector<1x256xi32>
    %c15_i32_333 = arith.constant 15 : i32
    %745 = vector.broadcast %c15_i32_333 : i32 to vector<1x256xi32>
    %746 = arith.cmpi sle, %744, %745 : vector<1x256xi32>
    %747 = arith.andi %742, %746 : vector<1x256xi1>
    %748 = arith.andi %628, %747 : vector<1x256xi1>
    %c1_i32_334 = arith.constant 1 : i32
    %749 = vector.broadcast %c1_i32_334 : i32 to vector<1x256xi32>
    %750 = arith.addi %3, %749 : vector<1x256xi32>
    %c-1_i32_335 = arith.constant -1 : i32
    %751 = vector.broadcast %c-1_i32_335 : i32 to vector<1x256xi32>
    %752 = arith.cmpi sge, %750, %751 : vector<1x256xi32>
    %c1_i32_336 = arith.constant 1 : i32
    %753 = vector.broadcast %c1_i32_336 : i32 to vector<1x256xi32>
    %754 = arith.addi %3, %753 : vector<1x256xi32>
    %c16_i32_337 = arith.constant 16 : i32
    %755 = vector.broadcast %c16_i32_337 : i32 to vector<1x256xi32>
    %756 = arith.cmpi sle, %754, %755 : vector<1x256xi32>
    %757 = arith.andi %752, %756 : vector<1x256xi1>
    %758 = arith.andi %637, %757 : vector<1x256xi1>
    %c255_i32_338 = arith.constant 255 : i32
    %759 = tpu.dynamic_rotate %239 by %c255_i32_338 dim 1 : vector<8x256xf32>, i32 -> vector<8x256xf32>
    %cst_339 = arith.constant 0.000000e+00 : f32
    %760 = vector.shape_cast %758 : vector<1x256xi1> to vector<1x256xi1>
    %761 = vector.broadcast %760 : vector<1x256xi1> to vector<8x256xi1>
    %762 = vector.shape_cast %242 : vector<8x1xf32> to vector<8x1xf32>
    %763 = vector.broadcast %762 : vector<8x1xf32> to vector<8x256xf32>
    %764 = vector.broadcast %cst_339 : f32 to vector<8x256xf32>
    %765 = arith.select %761, %763, %764 : vector<8x256xi1>, vector<8x256xf32>
    %766 = vector.shape_cast %748 : vector<1x256xi1> to vector<1x256xi1>
    %767 = vector.broadcast %766 : vector<1x256xi1> to vector<8x256xi1>
    %768 = arith.select %767, %759, %765 : vector<8x256xi1>, vector<8x256xf32>
    %c2_340 = arith.constant 2 : index
    %c3_341 = arith.constant 3 : index
    %c0_342 = arith.constant 0 : index
    %c0_343 = arith.constant 0 : index
    %769 = vector.load %arg12[%c2_340, %c3_341, %c0_342, %c0_343] : memref<5x5x8x8xf32, #tpu.memory_space<vmem>>, vector<1x1x8x8xf32>
    %770 = vector.shape_cast %769 : vector<1x1x8x8xf32> to vector<8x8xf32>
    %cst_344 = arith.constant dense<0.000000e+00> : vector<8x256xf32>
    %771 = tpu.matmul %770, %768, %cst_344 {dimension_numbers = #tpu.dot_dimension_numbers<[1], [0], [0], [1], [0, 0, 1, 1], [], []>} : vector<8x8xf32>, vector<8x256xf32>, vector<8x256xf32> -> vector<8x256xf32>
    %772 = arith.addf %738, %771 : vector<8x256xf32>
    %c2_i32_345 = arith.constant 2 : i32
    %773 = vector.broadcast %c2_i32_345 : i32 to vector<1x256xi32>
    %774 = arith.addi %3, %773 : vector<1x256xi32>
    %c0_i32_346 = arith.constant 0 : i32
    %775 = vector.broadcast %c0_i32_346 : i32 to vector<1x256xi32>
    %776 = arith.cmpi sge, %774, %775 : vector<1x256xi32>
    %c2_i32_347 = arith.constant 2 : i32
    %777 = vector.broadcast %c2_i32_347 : i32 to vector<1x256xi32>
    %778 = arith.addi %3, %777 : vector<1x256xi32>
    %c15_i32_348 = arith.constant 15 : i32
    %779 = vector.broadcast %c15_i32_348 : i32 to vector<1x256xi32>
    %780 = arith.cmpi sle, %778, %779 : vector<1x256xi32>
    %781 = arith.andi %776, %780 : vector<1x256xi1>
    %782 = arith.andi %628, %781 : vector<1x256xi1>
    %c2_i32_349 = arith.constant 2 : i32
    %783 = vector.broadcast %c2_i32_349 : i32 to vector<1x256xi32>
    %784 = arith.addi %3, %783 : vector<1x256xi32>
    %c-1_i32_350 = arith.constant -1 : i32
    %785 = vector.broadcast %c-1_i32_350 : i32 to vector<1x256xi32>
    %786 = arith.cmpi sge, %784, %785 : vector<1x256xi32>
    %c2_i32_351 = arith.constant 2 : i32
    %787 = vector.broadcast %c2_i32_351 : i32 to vector<1x256xi32>
    %788 = arith.addi %3, %787 : vector<1x256xi32>
    %c16_i32_352 = arith.constant 16 : i32
    %789 = vector.broadcast %c16_i32_352 : i32 to vector<1x256xi32>
    %790 = arith.cmpi sle, %788, %789 : vector<1x256xi32>
    %791 = arith.andi %786, %790 : vector<1x256xi1>
    %792 = arith.andi %637, %791 : vector<1x256xi1>
    %c254_i32 = arith.constant 254 : i32
    %793 = tpu.dynamic_rotate %239 by %c254_i32 dim 1 : vector<8x256xf32>, i32 -> vector<8x256xf32>
    %cst_353 = arith.constant 0.000000e+00 : f32
    %794 = vector.shape_cast %792 : vector<1x256xi1> to vector<1x256xi1>
    %795 = vector.broadcast %794 : vector<1x256xi1> to vector<8x256xi1>
    %796 = vector.shape_cast %242 : vector<8x1xf32> to vector<8x1xf32>
    %797 = vector.broadcast %796 : vector<8x1xf32> to vector<8x256xf32>
    %798 = vector.broadcast %cst_353 : f32 to vector<8x256xf32>
    %799 = arith.select %795, %797, %798 : vector<8x256xi1>, vector<8x256xf32>
    %800 = vector.shape_cast %782 : vector<1x256xi1> to vector<1x256xi1>
    %801 = vector.broadcast %800 : vector<1x256xi1> to vector<8x256xi1>
    %802 = arith.select %801, %793, %799 : vector<8x256xi1>, vector<8x256xf32>
    %c2_354 = arith.constant 2 : index
    %c4_355 = arith.constant 4 : index
    %c0_356 = arith.constant 0 : index
    %c0_357 = arith.constant 0 : index
    %803 = vector.load %arg12[%c2_354, %c4_355, %c0_356, %c0_357] : memref<5x5x8x8xf32, #tpu.memory_space<vmem>>, vector<1x1x8x8xf32>
    %804 = vector.shape_cast %803 : vector<1x1x8x8xf32> to vector<8x8xf32>
    %cst_358 = arith.constant dense<0.000000e+00> : vector<8x256xf32>
    %805 = tpu.matmul %804, %802, %cst_358 {dimension_numbers = #tpu.dot_dimension_numbers<[1], [0], [0], [1], [0, 0, 1, 1], [], []>} : vector<8x8xf32>, vector<8x256xf32>, vector<8x256xf32> -> vector<8x256xf32>
    %806 = arith.addf %772, %805 : vector<8x256xf32>
    %c1_i32_359 = arith.constant 1 : i32
    %807 = vector.broadcast %c1_i32_359 : i32 to vector<1x256xi32>
    %808 = arith.addi %2, %807 : vector<1x256xi32>
    %c0_i32_360 = arith.constant 0 : i32
    %809 = vector.broadcast %c0_i32_360 : i32 to vector<1x256xi32>
    %810 = arith.cmpi sge, %808, %809 : vector<1x256xi32>
    %c1_i32_361 = arith.constant 1 : i32
    %811 = vector.broadcast %c1_i32_361 : i32 to vector<1x256xi32>
    %812 = arith.addi %2, %811 : vector<1x256xi32>
    %c15_i32_362 = arith.constant 15 : i32
    %813 = vector.broadcast %c15_i32_362 : i32 to vector<1x256xi32>
    %814 = arith.cmpi sle, %812, %813 : vector<1x256xi32>
    %815 = arith.andi %810, %814 : vector<1x256xi1>
    %c1_i32_363 = arith.constant 1 : i32
    %816 = vector.broadcast %c1_i32_363 : i32 to vector<1x256xi32>
    %817 = arith.addi %2, %816 : vector<1x256xi32>
    %c-1_i32_364 = arith.constant -1 : i32
    %818 = vector.broadcast %c-1_i32_364 : i32 to vector<1x256xi32>
    %819 = arith.cmpi sge, %817, %818 : vector<1x256xi32>
    %c1_i32_365 = arith.constant 1 : i32
    %820 = vector.broadcast %c1_i32_365 : i32 to vector<1x256xi32>
    %821 = arith.addi %2, %820 : vector<1x256xi32>
    %c16_i32_366 = arith.constant 16 : i32
    %822 = vector.broadcast %c16_i32_366 : i32 to vector<1x256xi32>
    %823 = arith.cmpi sle, %821, %822 : vector<1x256xi32>
    %824 = arith.andi %819, %823 : vector<1x256xi1>
    %c-2_i32_367 = arith.constant -2 : i32
    %825 = vector.broadcast %c-2_i32_367 : i32 to vector<1x256xi32>
    %826 = arith.addi %3, %825 : vector<1x256xi32>
    %c0_i32_368 = arith.constant 0 : i32
    %827 = vector.broadcast %c0_i32_368 : i32 to vector<1x256xi32>
    %828 = arith.cmpi sge, %826, %827 : vector<1x256xi32>
    %c-2_i32_369 = arith.constant -2 : i32
    %829 = vector.broadcast %c-2_i32_369 : i32 to vector<1x256xi32>
    %830 = arith.addi %3, %829 : vector<1x256xi32>
    %c15_i32_370 = arith.constant 15 : i32
    %831 = vector.broadcast %c15_i32_370 : i32 to vector<1x256xi32>
    %832 = arith.cmpi sle, %830, %831 : vector<1x256xi32>
    %833 = arith.andi %828, %832 : vector<1x256xi1>
    %834 = arith.andi %815, %833 : vector<1x256xi1>
    %c-2_i32_371 = arith.constant -2 : i32
    %835 = vector.broadcast %c-2_i32_371 : i32 to vector<1x256xi32>
    %836 = arith.addi %3, %835 : vector<1x256xi32>
    %c-1_i32_372 = arith.constant -1 : i32
    %837 = vector.broadcast %c-1_i32_372 : i32 to vector<1x256xi32>
    %838 = arith.cmpi sge, %836, %837 : vector<1x256xi32>
    %c-2_i32_373 = arith.constant -2 : i32
    %839 = vector.broadcast %c-2_i32_373 : i32 to vector<1x256xi32>
    %840 = arith.addi %3, %839 : vector<1x256xi32>
    %c16_i32_374 = arith.constant 16 : i32
    %841 = vector.broadcast %c16_i32_374 : i32 to vector<1x256xi32>
    %842 = arith.cmpi sle, %840, %841 : vector<1x256xi32>
    %843 = arith.andi %838, %842 : vector<1x256xi1>
    %844 = arith.andi %824, %843 : vector<1x256xi1>
    %c242_i32 = arith.constant 242 : i32
    %845 = tpu.dynamic_rotate %239 by %c242_i32 dim 1 : vector<8x256xf32>, i32 -> vector<8x256xf32>
    %cst_375 = arith.constant 0.000000e+00 : f32
    %846 = vector.shape_cast %844 : vector<1x256xi1> to vector<1x256xi1>
    %847 = vector.broadcast %846 : vector<1x256xi1> to vector<8x256xi1>
    %848 = vector.shape_cast %242 : vector<8x1xf32> to vector<8x1xf32>
    %849 = vector.broadcast %848 : vector<8x1xf32> to vector<8x256xf32>
    %850 = vector.broadcast %cst_375 : f32 to vector<8x256xf32>
    %851 = arith.select %847, %849, %850 : vector<8x256xi1>, vector<8x256xf32>
    %852 = vector.shape_cast %834 : vector<1x256xi1> to vector<1x256xi1>
    %853 = vector.broadcast %852 : vector<1x256xi1> to vector<8x256xi1>
    %854 = arith.select %853, %845, %851 : vector<8x256xi1>, vector<8x256xf32>
    %c3_376 = arith.constant 3 : index
    %c0_377 = arith.constant 0 : index
    %c0_378 = arith.constant 0 : index
    %c0_379 = arith.constant 0 : index
    %855 = vector.load %arg12[%c3_376, %c0_377, %c0_378, %c0_379] : memref<5x5x8x8xf32, #tpu.memory_space<vmem>>, vector<1x1x8x8xf32>
    %856 = vector.shape_cast %855 : vector<1x1x8x8xf32> to vector<8x8xf32>
    %cst_380 = arith.constant dense<0.000000e+00> : vector<8x256xf32>
    %857 = tpu.matmul %856, %854, %cst_380 {dimension_numbers = #tpu.dot_dimension_numbers<[1], [0], [0], [1], [0, 0, 1, 1], [], []>} : vector<8x8xf32>, vector<8x256xf32>, vector<8x256xf32> -> vector<8x256xf32>
    %858 = arith.addf %806, %857 : vector<8x256xf32>
    %c-1_i32_381 = arith.constant -1 : i32
    %859 = vector.broadcast %c-1_i32_381 : i32 to vector<1x256xi32>
    %860 = arith.addi %3, %859 : vector<1x256xi32>
    %c0_i32_382 = arith.constant 0 : i32
    %861 = vector.broadcast %c0_i32_382 : i32 to vector<1x256xi32>
    %862 = arith.cmpi sge, %860, %861 : vector<1x256xi32>
    %c-1_i32_383 = arith.constant -1 : i32
    %863 = vector.broadcast %c-1_i32_383 : i32 to vector<1x256xi32>
    %864 = arith.addi %3, %863 : vector<1x256xi32>
    %c15_i32_384 = arith.constant 15 : i32
    %865 = vector.broadcast %c15_i32_384 : i32 to vector<1x256xi32>
    %866 = arith.cmpi sle, %864, %865 : vector<1x256xi32>
    %867 = arith.andi %862, %866 : vector<1x256xi1>
    %868 = arith.andi %815, %867 : vector<1x256xi1>
    %c-1_i32_385 = arith.constant -1 : i32
    %869 = vector.broadcast %c-1_i32_385 : i32 to vector<1x256xi32>
    %870 = arith.addi %3, %869 : vector<1x256xi32>
    %c-1_i32_386 = arith.constant -1 : i32
    %871 = vector.broadcast %c-1_i32_386 : i32 to vector<1x256xi32>
    %872 = arith.cmpi sge, %870, %871 : vector<1x256xi32>
    %c-1_i32_387 = arith.constant -1 : i32
    %873 = vector.broadcast %c-1_i32_387 : i32 to vector<1x256xi32>
    %874 = arith.addi %3, %873 : vector<1x256xi32>
    %c16_i32_388 = arith.constant 16 : i32
    %875 = vector.broadcast %c16_i32_388 : i32 to vector<1x256xi32>
    %876 = arith.cmpi sle, %874, %875 : vector<1x256xi32>
    %877 = arith.andi %872, %876 : vector<1x256xi1>
    %878 = arith.andi %824, %877 : vector<1x256xi1>
    %c241_i32_389 = arith.constant 241 : i32
    %879 = tpu.dynamic_rotate %239 by %c241_i32_389 dim 1 : vector<8x256xf32>, i32 -> vector<8x256xf32>
    %cst_390 = arith.constant 0.000000e+00 : f32
    %880 = vector.shape_cast %878 : vector<1x256xi1> to vector<1x256xi1>
    %881 = vector.broadcast %880 : vector<1x256xi1> to vector<8x256xi1>
    %882 = vector.shape_cast %242 : vector<8x1xf32> to vector<8x1xf32>
    %883 = vector.broadcast %882 : vector<8x1xf32> to vector<8x256xf32>
    %884 = vector.broadcast %cst_390 : f32 to vector<8x256xf32>
    %885 = arith.select %881, %883, %884 : vector<8x256xi1>, vector<8x256xf32>
    %886 = vector.shape_cast %868 : vector<1x256xi1> to vector<1x256xi1>
    %887 = vector.broadcast %886 : vector<1x256xi1> to vector<8x256xi1>
    %888 = arith.select %887, %879, %885 : vector<8x256xi1>, vector<8x256xf32>
    %c3_391 = arith.constant 3 : index
    %c1_392 = arith.constant 1 : index
    %c0_393 = arith.constant 0 : index
    %c0_394 = arith.constant 0 : index
    %889 = vector.load %arg12[%c3_391, %c1_392, %c0_393, %c0_394] : memref<5x5x8x8xf32, #tpu.memory_space<vmem>>, vector<1x1x8x8xf32>
    %890 = vector.shape_cast %889 : vector<1x1x8x8xf32> to vector<8x8xf32>
    %cst_395 = arith.constant dense<0.000000e+00> : vector<8x256xf32>
    %891 = tpu.matmul %890, %888, %cst_395 {dimension_numbers = #tpu.dot_dimension_numbers<[1], [0], [0], [1], [0, 0, 1, 1], [], []>} : vector<8x8xf32>, vector<8x256xf32>, vector<8x256xf32> -> vector<8x256xf32>
    %892 = arith.addf %858, %891 : vector<8x256xf32>
    %c0_i32_396 = arith.constant 0 : i32
    %893 = vector.broadcast %c0_i32_396 : i32 to vector<1x256xi32>
    %894 = arith.addi %3, %893 : vector<1x256xi32>
    %c0_i32_397 = arith.constant 0 : i32
    %895 = vector.broadcast %c0_i32_397 : i32 to vector<1x256xi32>
    %896 = arith.cmpi sge, %894, %895 : vector<1x256xi32>
    %c0_i32_398 = arith.constant 0 : i32
    %897 = vector.broadcast %c0_i32_398 : i32 to vector<1x256xi32>
    %898 = arith.addi %3, %897 : vector<1x256xi32>
    %c15_i32_399 = arith.constant 15 : i32
    %899 = vector.broadcast %c15_i32_399 : i32 to vector<1x256xi32>
    %900 = arith.cmpi sle, %898, %899 : vector<1x256xi32>
    %901 = arith.andi %896, %900 : vector<1x256xi1>
    %902 = arith.andi %815, %901 : vector<1x256xi1>
    %c0_i32_400 = arith.constant 0 : i32
    %903 = vector.broadcast %c0_i32_400 : i32 to vector<1x256xi32>
    %904 = arith.addi %3, %903 : vector<1x256xi32>
    %c-1_i32_401 = arith.constant -1 : i32
    %905 = vector.broadcast %c-1_i32_401 : i32 to vector<1x256xi32>
    %906 = arith.cmpi sge, %904, %905 : vector<1x256xi32>
    %c0_i32_402 = arith.constant 0 : i32
    %907 = vector.broadcast %c0_i32_402 : i32 to vector<1x256xi32>
    %908 = arith.addi %3, %907 : vector<1x256xi32>
    %c16_i32_403 = arith.constant 16 : i32
    %909 = vector.broadcast %c16_i32_403 : i32 to vector<1x256xi32>
    %910 = arith.cmpi sle, %908, %909 : vector<1x256xi32>
    %911 = arith.andi %906, %910 : vector<1x256xi1>
    %912 = arith.andi %824, %911 : vector<1x256xi1>
    %c240_i32_404 = arith.constant 240 : i32
    %913 = tpu.dynamic_rotate %239 by %c240_i32_404 dim 1 : vector<8x256xf32>, i32 -> vector<8x256xf32>
    %cst_405 = arith.constant 0.000000e+00 : f32
    %914 = vector.shape_cast %912 : vector<1x256xi1> to vector<1x256xi1>
    %915 = vector.broadcast %914 : vector<1x256xi1> to vector<8x256xi1>
    %916 = vector.shape_cast %242 : vector<8x1xf32> to vector<8x1xf32>
    %917 = vector.broadcast %916 : vector<8x1xf32> to vector<8x256xf32>
    %918 = vector.broadcast %cst_405 : f32 to vector<8x256xf32>
    %919 = arith.select %915, %917, %918 : vector<8x256xi1>, vector<8x256xf32>
    %920 = vector.shape_cast %902 : vector<1x256xi1> to vector<1x256xi1>
    %921 = vector.broadcast %920 : vector<1x256xi1> to vector<8x256xi1>
    %922 = arith.select %921, %913, %919 : vector<8x256xi1>, vector<8x256xf32>
    %c3_406 = arith.constant 3 : index
    %c2_407 = arith.constant 2 : index
    %c0_408 = arith.constant 0 : index
    %c0_409 = arith.constant 0 : index
    %923 = vector.load %arg12[%c3_406, %c2_407, %c0_408, %c0_409] : memref<5x5x8x8xf32, #tpu.memory_space<vmem>>, vector<1x1x8x8xf32>
    %924 = vector.shape_cast %923 : vector<1x1x8x8xf32> to vector<8x8xf32>
    %cst_410 = arith.constant dense<0.000000e+00> : vector<8x256xf32>
    %925 = tpu.matmul %924, %922, %cst_410 {dimension_numbers = #tpu.dot_dimension_numbers<[1], [0], [0], [1], [0, 0, 1, 1], [], []>} : vector<8x8xf32>, vector<8x256xf32>, vector<8x256xf32> -> vector<8x256xf32>
    %926 = arith.addf %892, %925 : vector<8x256xf32>
    %c1_i32_411 = arith.constant 1 : i32
    %927 = vector.broadcast %c1_i32_411 : i32 to vector<1x256xi32>
    %928 = arith.addi %3, %927 : vector<1x256xi32>
    %c0_i32_412 = arith.constant 0 : i32
    %929 = vector.broadcast %c0_i32_412 : i32 to vector<1x256xi32>
    %930 = arith.cmpi sge, %928, %929 : vector<1x256xi32>
    %c1_i32_413 = arith.constant 1 : i32
    %931 = vector.broadcast %c1_i32_413 : i32 to vector<1x256xi32>
    %932 = arith.addi %3, %931 : vector<1x256xi32>
    %c15_i32_414 = arith.constant 15 : i32
    %933 = vector.broadcast %c15_i32_414 : i32 to vector<1x256xi32>
    %934 = arith.cmpi sle, %932, %933 : vector<1x256xi32>
    %935 = arith.andi %930, %934 : vector<1x256xi1>
    %936 = arith.andi %815, %935 : vector<1x256xi1>
    %c1_i32_415 = arith.constant 1 : i32
    %937 = vector.broadcast %c1_i32_415 : i32 to vector<1x256xi32>
    %938 = arith.addi %3, %937 : vector<1x256xi32>
    %c-1_i32_416 = arith.constant -1 : i32
    %939 = vector.broadcast %c-1_i32_416 : i32 to vector<1x256xi32>
    %940 = arith.cmpi sge, %938, %939 : vector<1x256xi32>
    %c1_i32_417 = arith.constant 1 : i32
    %941 = vector.broadcast %c1_i32_417 : i32 to vector<1x256xi32>
    %942 = arith.addi %3, %941 : vector<1x256xi32>
    %c16_i32_418 = arith.constant 16 : i32
    %943 = vector.broadcast %c16_i32_418 : i32 to vector<1x256xi32>
    %944 = arith.cmpi sle, %942, %943 : vector<1x256xi32>
    %945 = arith.andi %940, %944 : vector<1x256xi1>
    %946 = arith.andi %824, %945 : vector<1x256xi1>
    %c239_i32_419 = arith.constant 239 : i32
    %947 = tpu.dynamic_rotate %239 by %c239_i32_419 dim 1 : vector<8x256xf32>, i32 -> vector<8x256xf32>
    %cst_420 = arith.constant 0.000000e+00 : f32
    %948 = vector.shape_cast %946 : vector<1x256xi1> to vector<1x256xi1>
    %949 = vector.broadcast %948 : vector<1x256xi1> to vector<8x256xi1>
    %950 = vector.shape_cast %242 : vector<8x1xf32> to vector<8x1xf32>
    %951 = vector.broadcast %950 : vector<8x1xf32> to vector<8x256xf32>
    %952 = vector.broadcast %cst_420 : f32 to vector<8x256xf32>
    %953 = arith.select %949, %951, %952 : vector<8x256xi1>, vector<8x256xf32>
    %954 = vector.shape_cast %936 : vector<1x256xi1> to vector<1x256xi1>
    %955 = vector.broadcast %954 : vector<1x256xi1> to vector<8x256xi1>
    %956 = arith.select %955, %947, %953 : vector<8x256xi1>, vector<8x256xf32>
    %c3_421 = arith.constant 3 : index
    %c3_422 = arith.constant 3 : index
    %c0_423 = arith.constant 0 : index
    %c0_424 = arith.constant 0 : index
    %957 = vector.load %arg12[%c3_421, %c3_422, %c0_423, %c0_424] : memref<5x5x8x8xf32, #tpu.memory_space<vmem>>, vector<1x1x8x8xf32>
    %958 = vector.shape_cast %957 : vector<1x1x8x8xf32> to vector<8x8xf32>
    %cst_425 = arith.constant dense<0.000000e+00> : vector<8x256xf32>
    %959 = tpu.matmul %958, %956, %cst_425 {dimension_numbers = #tpu.dot_dimension_numbers<[1], [0], [0], [1], [0, 0, 1, 1], [], []>} : vector<8x8xf32>, vector<8x256xf32>, vector<8x256xf32> -> vector<8x256xf32>
    %960 = arith.addf %926, %959 : vector<8x256xf32>
    %c2_i32_426 = arith.constant 2 : i32
    %961 = vector.broadcast %c2_i32_426 : i32 to vector<1x256xi32>
    %962 = arith.addi %3, %961 : vector<1x256xi32>
    %c0_i32_427 = arith.constant 0 : i32
    %963 = vector.broadcast %c0_i32_427 : i32 to vector<1x256xi32>
    %964 = arith.cmpi sge, %962, %963 : vector<1x256xi32>
    %c2_i32_428 = arith.constant 2 : i32
    %965 = vector.broadcast %c2_i32_428 : i32 to vector<1x256xi32>
    %966 = arith.addi %3, %965 : vector<1x256xi32>
    %c15_i32_429 = arith.constant 15 : i32
    %967 = vector.broadcast %c15_i32_429 : i32 to vector<1x256xi32>
    %968 = arith.cmpi sle, %966, %967 : vector<1x256xi32>
    %969 = arith.andi %964, %968 : vector<1x256xi1>
    %970 = arith.andi %815, %969 : vector<1x256xi1>
    %c2_i32_430 = arith.constant 2 : i32
    %971 = vector.broadcast %c2_i32_430 : i32 to vector<1x256xi32>
    %972 = arith.addi %3, %971 : vector<1x256xi32>
    %c-1_i32_431 = arith.constant -1 : i32
    %973 = vector.broadcast %c-1_i32_431 : i32 to vector<1x256xi32>
    %974 = arith.cmpi sge, %972, %973 : vector<1x256xi32>
    %c2_i32_432 = arith.constant 2 : i32
    %975 = vector.broadcast %c2_i32_432 : i32 to vector<1x256xi32>
    %976 = arith.addi %3, %975 : vector<1x256xi32>
    %c16_i32_433 = arith.constant 16 : i32
    %977 = vector.broadcast %c16_i32_433 : i32 to vector<1x256xi32>
    %978 = arith.cmpi sle, %976, %977 : vector<1x256xi32>
    %979 = arith.andi %974, %978 : vector<1x256xi1>
    %980 = arith.andi %824, %979 : vector<1x256xi1>
    %c238_i32 = arith.constant 238 : i32
    %981 = tpu.dynamic_rotate %239 by %c238_i32 dim 1 : vector<8x256xf32>, i32 -> vector<8x256xf32>
    %cst_434 = arith.constant 0.000000e+00 : f32
    %982 = vector.shape_cast %980 : vector<1x256xi1> to vector<1x256xi1>
    %983 = vector.broadcast %982 : vector<1x256xi1> to vector<8x256xi1>
    %984 = vector.shape_cast %242 : vector<8x1xf32> to vector<8x1xf32>
    %985 = vector.broadcast %984 : vector<8x1xf32> to vector<8x256xf32>
    %986 = vector.broadcast %cst_434 : f32 to vector<8x256xf32>
    %987 = arith.select %983, %985, %986 : vector<8x256xi1>, vector<8x256xf32>
    %988 = vector.shape_cast %970 : vector<1x256xi1> to vector<1x256xi1>
    %989 = vector.broadcast %988 : vector<1x256xi1> to vector<8x256xi1>
    %990 = arith.select %989, %981, %987 : vector<8x256xi1>, vector<8x256xf32>
    %c3_435 = arith.constant 3 : index
    %c4_436 = arith.constant 4 : index
    %c0_437 = arith.constant 0 : index
    %c0_438 = arith.constant 0 : index
    %991 = vector.load %arg12[%c3_435, %c4_436, %c0_437, %c0_438] : memref<5x5x8x8xf32, #tpu.memory_space<vmem>>, vector<1x1x8x8xf32>
    %992 = vector.shape_cast %991 : vector<1x1x8x8xf32> to vector<8x8xf32>
    %cst_439 = arith.constant dense<0.000000e+00> : vector<8x256xf32>
    %993 = tpu.matmul %992, %990, %cst_439 {dimension_numbers = #tpu.dot_dimension_numbers<[1], [0], [0], [1], [0, 0, 1, 1], [], []>} : vector<8x8xf32>, vector<8x256xf32>, vector<8x256xf32> -> vector<8x256xf32>
    %994 = arith.addf %960, %993 : vector<8x256xf32>
    %c2_i32_440 = arith.constant 2 : i32
    %995 = vector.broadcast %c2_i32_440 : i32 to vector<1x256xi32>
    %996 = arith.addi %2, %995 : vector<1x256xi32>
    %c0_i32_441 = arith.constant 0 : i32
    %997 = vector.broadcast %c0_i32_441 : i32 to vector<1x256xi32>
    %998 = arith.cmpi sge, %996, %997 : vector<1x256xi32>
    %c2_i32_442 = arith.constant 2 : i32
    %999 = vector.broadcast %c2_i32_442 : i32 to vector<1x256xi32>
    %1000 = arith.addi %2, %999 : vector<1x256xi32>
    %c15_i32_443 = arith.constant 15 : i32
    %1001 = vector.broadcast %c15_i32_443 : i32 to vector<1x256xi32>
    %1002 = arith.cmpi sle, %1000, %1001 : vector<1x256xi32>
    %1003 = arith.andi %998, %1002 : vector<1x256xi1>
    %c2_i32_444 = arith.constant 2 : i32
    %1004 = vector.broadcast %c2_i32_444 : i32 to vector<1x256xi32>
    %1005 = arith.addi %2, %1004 : vector<1x256xi32>
    %c-1_i32_445 = arith.constant -1 : i32
    %1006 = vector.broadcast %c-1_i32_445 : i32 to vector<1x256xi32>
    %1007 = arith.cmpi sge, %1005, %1006 : vector<1x256xi32>
    %c2_i32_446 = arith.constant 2 : i32
    %1008 = vector.broadcast %c2_i32_446 : i32 to vector<1x256xi32>
    %1009 = arith.addi %2, %1008 : vector<1x256xi32>
    %c16_i32_447 = arith.constant 16 : i32
    %1010 = vector.broadcast %c16_i32_447 : i32 to vector<1x256xi32>
    %1011 = arith.cmpi sle, %1009, %1010 : vector<1x256xi32>
    %1012 = arith.andi %1007, %1011 : vector<1x256xi1>
    %c-2_i32_448 = arith.constant -2 : i32
    %1013 = vector.broadcast %c-2_i32_448 : i32 to vector<1x256xi32>
    %1014 = arith.addi %3, %1013 : vector<1x256xi32>
    %c0_i32_449 = arith.constant 0 : i32
    %1015 = vector.broadcast %c0_i32_449 : i32 to vector<1x256xi32>
    %1016 = arith.cmpi sge, %1014, %1015 : vector<1x256xi32>
    %c-2_i32_450 = arith.constant -2 : i32
    %1017 = vector.broadcast %c-2_i32_450 : i32 to vector<1x256xi32>
    %1018 = arith.addi %3, %1017 : vector<1x256xi32>
    %c15_i32_451 = arith.constant 15 : i32
    %1019 = vector.broadcast %c15_i32_451 : i32 to vector<1x256xi32>
    %1020 = arith.cmpi sle, %1018, %1019 : vector<1x256xi32>
    %1021 = arith.andi %1016, %1020 : vector<1x256xi1>
    %1022 = arith.andi %1003, %1021 : vector<1x256xi1>
    %c-2_i32_452 = arith.constant -2 : i32
    %1023 = vector.broadcast %c-2_i32_452 : i32 to vector<1x256xi32>
    %1024 = arith.addi %3, %1023 : vector<1x256xi32>
    %c-1_i32_453 = arith.constant -1 : i32
    %1025 = vector.broadcast %c-1_i32_453 : i32 to vector<1x256xi32>
    %1026 = arith.cmpi sge, %1024, %1025 : vector<1x256xi32>
    %c-2_i32_454 = arith.constant -2 : i32
    %1027 = vector.broadcast %c-2_i32_454 : i32 to vector<1x256xi32>
    %1028 = arith.addi %3, %1027 : vector<1x256xi32>
    %c16_i32_455 = arith.constant 16 : i32
    %1029 = vector.broadcast %c16_i32_455 : i32 to vector<1x256xi32>
    %1030 = arith.cmpi sle, %1028, %1029 : vector<1x256xi32>
    %1031 = arith.andi %1026, %1030 : vector<1x256xi1>
    %1032 = arith.andi %1012, %1031 : vector<1x256xi1>
    %c226_i32 = arith.constant 226 : i32
    %1033 = tpu.dynamic_rotate %239 by %c226_i32 dim 1 : vector<8x256xf32>, i32 -> vector<8x256xf32>
    %cst_456 = arith.constant 0.000000e+00 : f32
    %1034 = vector.shape_cast %1032 : vector<1x256xi1> to vector<1x256xi1>
    %1035 = vector.broadcast %1034 : vector<1x256xi1> to vector<8x256xi1>
    %1036 = vector.shape_cast %242 : vector<8x1xf32> to vector<8x1xf32>
    %1037 = vector.broadcast %1036 : vector<8x1xf32> to vector<8x256xf32>
    %1038 = vector.broadcast %cst_456 : f32 to vector<8x256xf32>
    %1039 = arith.select %1035, %1037, %1038 : vector<8x256xi1>, vector<8x256xf32>
    %1040 = vector.shape_cast %1022 : vector<1x256xi1> to vector<1x256xi1>
    %1041 = vector.broadcast %1040 : vector<1x256xi1> to vector<8x256xi1>
    %1042 = arith.select %1041, %1033, %1039 : vector<8x256xi1>, vector<8x256xf32>
    %c4_457 = arith.constant 4 : index
    %c0_458 = arith.constant 0 : index
    %c0_459 = arith.constant 0 : index
    %c0_460 = arith.constant 0 : index
    %1043 = vector.load %arg12[%c4_457, %c0_458, %c0_459, %c0_460] : memref<5x5x8x8xf32, #tpu.memory_space<vmem>>, vector<1x1x8x8xf32>
    %1044 = vector.shape_cast %1043 : vector<1x1x8x8xf32> to vector<8x8xf32>
    %cst_461 = arith.constant dense<0.000000e+00> : vector<8x256xf32>
    %1045 = tpu.matmul %1044, %1042, %cst_461 {dimension_numbers = #tpu.dot_dimension_numbers<[1], [0], [0], [1], [0, 0, 1, 1], [], []>} : vector<8x8xf32>, vector<8x256xf32>, vector<8x256xf32> -> vector<8x256xf32>
    %1046 = arith.addf %994, %1045 : vector<8x256xf32>
    %c-1_i32_462 = arith.constant -1 : i32
    %1047 = vector.broadcast %c-1_i32_462 : i32 to vector<1x256xi32>
    %1048 = arith.addi %3, %1047 : vector<1x256xi32>
    %c0_i32_463 = arith.constant 0 : i32
    %1049 = vector.broadcast %c0_i32_463 : i32 to vector<1x256xi32>
    %1050 = arith.cmpi sge, %1048, %1049 : vector<1x256xi32>
    %c-1_i32_464 = arith.constant -1 : i32
    %1051 = vector.broadcast %c-1_i32_464 : i32 to vector<1x256xi32>
    %1052 = arith.addi %3, %1051 : vector<1x256xi32>
    %c15_i32_465 = arith.constant 15 : i32
    %1053 = vector.broadcast %c15_i32_465 : i32 to vector<1x256xi32>
    %1054 = arith.cmpi sle, %1052, %1053 : vector<1x256xi32>
    %1055 = arith.andi %1050, %1054 : vector<1x256xi1>
    %1056 = arith.andi %1003, %1055 : vector<1x256xi1>
    %c-1_i32_466 = arith.constant -1 : i32
    %1057 = vector.broadcast %c-1_i32_466 : i32 to vector<1x256xi32>
    %1058 = arith.addi %3, %1057 : vector<1x256xi32>
    %c-1_i32_467 = arith.constant -1 : i32
    %1059 = vector.broadcast %c-1_i32_467 : i32 to vector<1x256xi32>
    %1060 = arith.cmpi sge, %1058, %1059 : vector<1x256xi32>
    %c-1_i32_468 = arith.constant -1 : i32
    %1061 = vector.broadcast %c-1_i32_468 : i32 to vector<1x256xi32>
    %1062 = arith.addi %3, %1061 : vector<1x256xi32>
    %c16_i32_469 = arith.constant 16 : i32
    %1063 = vector.broadcast %c16_i32_469 : i32 to vector<1x256xi32>
    %1064 = arith.cmpi sle, %1062, %1063 : vector<1x256xi32>
    %1065 = arith.andi %1060, %1064 : vector<1x256xi1>
    %1066 = arith.andi %1012, %1065 : vector<1x256xi1>
    %c225_i32 = arith.constant 225 : i32
    %1067 = tpu.dynamic_rotate %239 by %c225_i32 dim 1 : vector<8x256xf32>, i32 -> vector<8x256xf32>
    %cst_470 = arith.constant 0.000000e+00 : f32
    %1068 = vector.shape_cast %1066 : vector<1x256xi1> to vector<1x256xi1>
    %1069 = vector.broadcast %1068 : vector<1x256xi1> to vector<8x256xi1>
    %1070 = vector.shape_cast %242 : vector<8x1xf32> to vector<8x1xf32>
    %1071 = vector.broadcast %1070 : vector<8x1xf32> to vector<8x256xf32>
    %1072 = vector.broadcast %cst_470 : f32 to vector<8x256xf32>
    %1073 = arith.select %1069, %1071, %1072 : vector<8x256xi1>, vector<8x256xf32>
    %1074 = vector.shape_cast %1056 : vector<1x256xi1> to vector<1x256xi1>
    %1075 = vector.broadcast %1074 : vector<1x256xi1> to vector<8x256xi1>
    %1076 = arith.select %1075, %1067, %1073 : vector<8x256xi1>, vector<8x256xf32>
    %c4_471 = arith.constant 4 : index
    %c1_472 = arith.constant 1 : index
    %c0_473 = arith.constant 0 : index
    %c0_474 = arith.constant 0 : index
    %1077 = vector.load %arg12[%c4_471, %c1_472, %c0_473, %c0_474] : memref<5x5x8x8xf32, #tpu.memory_space<vmem>>, vector<1x1x8x8xf32>
    %1078 = vector.shape_cast %1077 : vector<1x1x8x8xf32> to vector<8x8xf32>
    %cst_475 = arith.constant dense<0.000000e+00> : vector<8x256xf32>
    %1079 = tpu.matmul %1078, %1076, %cst_475 {dimension_numbers = #tpu.dot_dimension_numbers<[1], [0], [0], [1], [0, 0, 1, 1], [], []>} : vector<8x8xf32>, vector<8x256xf32>, vector<8x256xf32> -> vector<8x256xf32>
    %1080 = arith.addf %1046, %1079 : vector<8x256xf32>
    %c0_i32_476 = arith.constant 0 : i32
    %1081 = vector.broadcast %c0_i32_476 : i32 to vector<1x256xi32>
    %1082 = arith.addi %3, %1081 : vector<1x256xi32>
    %c0_i32_477 = arith.constant 0 : i32
    %1083 = vector.broadcast %c0_i32_477 : i32 to vector<1x256xi32>
    %1084 = arith.cmpi sge, %1082, %1083 : vector<1x256xi32>
    %c0_i32_478 = arith.constant 0 : i32
    %1085 = vector.broadcast %c0_i32_478 : i32 to vector<1x256xi32>
    %1086 = arith.addi %3, %1085 : vector<1x256xi32>
    %c15_i32_479 = arith.constant 15 : i32
    %1087 = vector.broadcast %c15_i32_479 : i32 to vector<1x256xi32>
    %1088 = arith.cmpi sle, %1086, %1087 : vector<1x256xi32>
    %1089 = arith.andi %1084, %1088 : vector<1x256xi1>
    %1090 = arith.andi %1003, %1089 : vector<1x256xi1>
    %c0_i32_480 = arith.constant 0 : i32
    %1091 = vector.broadcast %c0_i32_480 : i32 to vector<1x256xi32>
    %1092 = arith.addi %3, %1091 : vector<1x256xi32>
    %c-1_i32_481 = arith.constant -1 : i32
    %1093 = vector.broadcast %c-1_i32_481 : i32 to vector<1x256xi32>
    %1094 = arith.cmpi sge, %1092, %1093 : vector<1x256xi32>
    %c0_i32_482 = arith.constant 0 : i32
    %1095 = vector.broadcast %c0_i32_482 : i32 to vector<1x256xi32>
    %1096 = arith.addi %3, %1095 : vector<1x256xi32>
    %c16_i32_483 = arith.constant 16 : i32
    %1097 = vector.broadcast %c16_i32_483 : i32 to vector<1x256xi32>
    %1098 = arith.cmpi sle, %1096, %1097 : vector<1x256xi32>
    %1099 = arith.andi %1094, %1098 : vector<1x256xi1>
    %1100 = arith.andi %1012, %1099 : vector<1x256xi1>
    %c224_i32 = arith.constant 224 : i32
    %1101 = tpu.dynamic_rotate %239 by %c224_i32 dim 1 : vector<8x256xf32>, i32 -> vector<8x256xf32>
    %cst_484 = arith.constant 0.000000e+00 : f32
    %1102 = vector.shape_cast %1100 : vector<1x256xi1> to vector<1x256xi1>
    %1103 = vector.broadcast %1102 : vector<1x256xi1> to vector<8x256xi1>
    %1104 = vector.shape_cast %242 : vector<8x1xf32> to vector<8x1xf32>
    %1105 = vector.broadcast %1104 : vector<8x1xf32> to vector<8x256xf32>
    %1106 = vector.broadcast %cst_484 : f32 to vector<8x256xf32>
    %1107 = arith.select %1103, %1105, %1106 : vector<8x256xi1>, vector<8x256xf32>
    %1108 = vector.shape_cast %1090 : vector<1x256xi1> to vector<1x256xi1>
    %1109 = vector.broadcast %1108 : vector<1x256xi1> to vector<8x256xi1>
    %1110 = arith.select %1109, %1101, %1107 : vector<8x256xi1>, vector<8x256xf32>
    %c4_485 = arith.constant 4 : index
    %c2_486 = arith.constant 2 : index
    %c0_487 = arith.constant 0 : index
    %c0_488 = arith.constant 0 : index
    %1111 = vector.load %arg12[%c4_485, %c2_486, %c0_487, %c0_488] : memref<5x5x8x8xf32, #tpu.memory_space<vmem>>, vector<1x1x8x8xf32>
    %1112 = vector.shape_cast %1111 : vector<1x1x8x8xf32> to vector<8x8xf32>
    %cst_489 = arith.constant dense<0.000000e+00> : vector<8x256xf32>
    %1113 = tpu.matmul %1112, %1110, %cst_489 {dimension_numbers = #tpu.dot_dimension_numbers<[1], [0], [0], [1], [0, 0, 1, 1], [], []>} : vector<8x8xf32>, vector<8x256xf32>, vector<8x256xf32> -> vector<8x256xf32>
    %1114 = arith.addf %1080, %1113 : vector<8x256xf32>
    %c1_i32_490 = arith.constant 1 : i32
    %1115 = vector.broadcast %c1_i32_490 : i32 to vector<1x256xi32>
    %1116 = arith.addi %3, %1115 : vector<1x256xi32>
    %c0_i32_491 = arith.constant 0 : i32
    %1117 = vector.broadcast %c0_i32_491 : i32 to vector<1x256xi32>
    %1118 = arith.cmpi sge, %1116, %1117 : vector<1x256xi32>
    %c1_i32_492 = arith.constant 1 : i32
    %1119 = vector.broadcast %c1_i32_492 : i32 to vector<1x256xi32>
    %1120 = arith.addi %3, %1119 : vector<1x256xi32>
    %c15_i32_493 = arith.constant 15 : i32
    %1121 = vector.broadcast %c15_i32_493 : i32 to vector<1x256xi32>
    %1122 = arith.cmpi sle, %1120, %1121 : vector<1x256xi32>
    %1123 = arith.andi %1118, %1122 : vector<1x256xi1>
    %1124 = arith.andi %1003, %1123 : vector<1x256xi1>
    %c1_i32_494 = arith.constant 1 : i32
    %1125 = vector.broadcast %c1_i32_494 : i32 to vector<1x256xi32>
    %1126 = arith.addi %3, %1125 : vector<1x256xi32>
    %c-1_i32_495 = arith.constant -1 : i32
    %1127 = vector.broadcast %c-1_i32_495 : i32 to vector<1x256xi32>
    %1128 = arith.cmpi sge, %1126, %1127 : vector<1x256xi32>
    %c1_i32_496 = arith.constant 1 : i32
    %1129 = vector.broadcast %c1_i32_496 : i32 to vector<1x256xi32>
    %1130 = arith.addi %3, %1129 : vector<1x256xi32>
    %c16_i32_497 = arith.constant 16 : i32
    %1131 = vector.broadcast %c16_i32_497 : i32 to vector<1x256xi32>
    %1132 = arith.cmpi sle, %1130, %1131 : vector<1x256xi32>
    %1133 = arith.andi %1128, %1132 : vector<1x256xi1>
    %1134 = arith.andi %1012, %1133 : vector<1x256xi1>
    %c223_i32 = arith.constant 223 : i32
    %1135 = tpu.dynamic_rotate %239 by %c223_i32 dim 1 : vector<8x256xf32>, i32 -> vector<8x256xf32>
    %cst_498 = arith.constant 0.000000e+00 : f32
    %1136 = vector.shape_cast %1134 : vector<1x256xi1> to vector<1x256xi1>
    %1137 = vector.broadcast %1136 : vector<1x256xi1> to vector<8x256xi1>
    %1138 = vector.shape_cast %242 : vector<8x1xf32> to vector<8x1xf32>
    %1139 = vector.broadcast %1138 : vector<8x1xf32> to vector<8x256xf32>
    %1140 = vector.broadcast %cst_498 : f32 to vector<8x256xf32>
    %1141 = arith.select %1137, %1139, %1140 : vector<8x256xi1>, vector<8x256xf32>
    %1142 = vector.shape_cast %1124 : vector<1x256xi1> to vector<1x256xi1>
    %1143 = vector.broadcast %1142 : vector<1x256xi1> to vector<8x256xi1>
    %1144 = arith.select %1143, %1135, %1141 : vector<8x256xi1>, vector<8x256xf32>
    %c4_499 = arith.constant 4 : index
    %c3_500 = arith.constant 3 : index
    %c0_501 = arith.constant 0 : index
    %c0_502 = arith.constant 0 : index
    %1145 = vector.load %arg12[%c4_499, %c3_500, %c0_501, %c0_502] : memref<5x5x8x8xf32, #tpu.memory_space<vmem>>, vector<1x1x8x8xf32>
    %1146 = vector.shape_cast %1145 : vector<1x1x8x8xf32> to vector<8x8xf32>
    %cst_503 = arith.constant dense<0.000000e+00> : vector<8x256xf32>
    %1147 = tpu.matmul %1146, %1144, %cst_503 {dimension_numbers = #tpu.dot_dimension_numbers<[1], [0], [0], [1], [0, 0, 1, 1], [], []>} : vector<8x8xf32>, vector<8x256xf32>, vector<8x256xf32> -> vector<8x256xf32>
    %1148 = arith.addf %1114, %1147 : vector<8x256xf32>
    %c2_i32_504 = arith.constant 2 : i32
    %1149 = vector.broadcast %c2_i32_504 : i32 to vector<1x256xi32>
    %1150 = arith.addi %3, %1149 : vector<1x256xi32>
    %c0_i32_505 = arith.constant 0 : i32
    %1151 = vector.broadcast %c0_i32_505 : i32 to vector<1x256xi32>
    %1152 = arith.cmpi sge, %1150, %1151 : vector<1x256xi32>
    %c2_i32_506 = arith.constant 2 : i32
    %1153 = vector.broadcast %c2_i32_506 : i32 to vector<1x256xi32>
    %1154 = arith.addi %3, %1153 : vector<1x256xi32>
    %c15_i32_507 = arith.constant 15 : i32
    %1155 = vector.broadcast %c15_i32_507 : i32 to vector<1x256xi32>
    %1156 = arith.cmpi sle, %1154, %1155 : vector<1x256xi32>
    %1157 = arith.andi %1152, %1156 : vector<1x256xi1>
    %1158 = arith.andi %1003, %1157 : vector<1x256xi1>
    %c2_i32_508 = arith.constant 2 : i32
    %1159 = vector.broadcast %c2_i32_508 : i32 to vector<1x256xi32>
    %1160 = arith.addi %3, %1159 : vector<1x256xi32>
    %c-1_i32_509 = arith.constant -1 : i32
    %1161 = vector.broadcast %c-1_i32_509 : i32 to vector<1x256xi32>
    %1162 = arith.cmpi sge, %1160, %1161 : vector<1x256xi32>
    %c2_i32_510 = arith.constant 2 : i32
    %1163 = vector.broadcast %c2_i32_510 : i32 to vector<1x256xi32>
    %1164 = arith.addi %3, %1163 : vector<1x256xi32>
    %c16_i32_511 = arith.constant 16 : i32
    %1165 = vector.broadcast %c16_i32_511 : i32 to vector<1x256xi32>
    %1166 = arith.cmpi sle, %1164, %1165 : vector<1x256xi32>
    %1167 = arith.andi %1162, %1166 : vector<1x256xi1>
    %1168 = arith.andi %1012, %1167 : vector<1x256xi1>
    %c222_i32 = arith.constant 222 : i32
    %1169 = tpu.dynamic_rotate %239 by %c222_i32 dim 1 : vector<8x256xf32>, i32 -> vector<8x256xf32>
    %cst_512 = arith.constant 0.000000e+00 : f32
    %1170 = vector.shape_cast %1168 : vector<1x256xi1> to vector<1x256xi1>
    %1171 = vector.broadcast %1170 : vector<1x256xi1> to vector<8x256xi1>
    %1172 = vector.shape_cast %242 : vector<8x1xf32> to vector<8x1xf32>
    %1173 = vector.broadcast %1172 : vector<8x1xf32> to vector<8x256xf32>
    %1174 = vector.broadcast %cst_512 : f32 to vector<8x256xf32>
    %1175 = arith.select %1171, %1173, %1174 : vector<8x256xi1>, vector<8x256xf32>
    %1176 = vector.shape_cast %1158 : vector<1x256xi1> to vector<1x256xi1>
    %1177 = vector.broadcast %1176 : vector<1x256xi1> to vector<8x256xi1>
    %1178 = arith.select %1177, %1169, %1175 : vector<8x256xi1>, vector<8x256xf32>
    %c4_513 = arith.constant 4 : index
    %c4_514 = arith.constant 4 : index
    %c0_515 = arith.constant 0 : index
    %c0_516 = arith.constant 0 : index
    %1179 = vector.load %arg12[%c4_513, %c4_514, %c0_515, %c0_516] : memref<5x5x8x8xf32, #tpu.memory_space<vmem>>, vector<1x1x8x8xf32>
    %1180 = vector.shape_cast %1179 : vector<1x1x8x8xf32> to vector<8x8xf32>
    %cst_517 = arith.constant dense<0.000000e+00> : vector<8x256xf32>
    %1181 = tpu.matmul %1180, %1178, %cst_517 {dimension_numbers = #tpu.dot_dimension_numbers<[1], [0], [0], [1], [0, 0, 1, 1], [], []>} : vector<8x8xf32>, vector<8x256xf32>, vector<8x256xf32> -> vector<8x256xf32>
    %1182 = arith.addf %1148, %1181 : vector<8x256xf32>
    %c0_518 = arith.constant 0 : index
    %c0_519 = arith.constant 0 : index
    %1183 = vector.load %arg13[%c0_518, %c0_519] : memref<8x1xf32, #tpu.memory_space<vmem>>, vector<8x1xf32>
    %1184 = vector.broadcast %1183 : vector<8x1xf32> to vector<8x256xf32>
    %1185 = arith.addf %1182, %1184 : vector<8x256xf32>
    %cst_520 = arith.constant 0.000000e+00 : f32
    %1186 = vector.broadcast %cst_520 : f32 to vector<8x256xf32>
    %1187 = arith.maximumf %1185, %1186 : vector<8x256xf32>
    %c17_i32_521 = arith.constant 17 : i32
    %1188 = tpu.dynamic_rotate %1 by %c17_i32_521 dim 1 : vector<8x256xf32>, i32 -> vector<8x256xf32>
    %1189 = arith.maximumf %1, %1188 : vector<8x256xf32>
    %c16_i32_522 = arith.constant 16 : i32
    %1190 = tpu.dynamic_rotate %1 by %c16_i32_522 dim 1 : vector<8x256xf32>, i32 -> vector<8x256xf32>
    %1191 = arith.maximumf %1189, %1190 : vector<8x256xf32>
    %c15_i32_523 = arith.constant 15 : i32
    %1192 = tpu.dynamic_rotate %1 by %c15_i32_523 dim 1 : vector<8x256xf32>, i32 -> vector<8x256xf32>
    %1193 = arith.maximumf %1191, %1192 : vector<8x256xf32>
    %c1_i32_524 = arith.constant 1 : i32
    %1194 = tpu.dynamic_rotate %1 by %c1_i32_524 dim 1 : vector<8x256xf32>, i32 -> vector<8x256xf32>
    %1195 = arith.maximumf %1193, %1194 : vector<8x256xf32>
    %c255_i32_525 = arith.constant 255 : i32
    %1196 = tpu.dynamic_rotate %1 by %c255_i32_525 dim 1 : vector<8x256xf32>, i32 -> vector<8x256xf32>
    %1197 = arith.maximumf %1195, %1196 : vector<8x256xf32>
    %c241_i32_526 = arith.constant 241 : i32
    %1198 = tpu.dynamic_rotate %1 by %c241_i32_526 dim 1 : vector<8x256xf32>, i32 -> vector<8x256xf32>
    %1199 = arith.maximumf %1197, %1198 : vector<8x256xf32>
    %c240_i32_527 = arith.constant 240 : i32
    %1200 = tpu.dynamic_rotate %1 by %c240_i32_527 dim 1 : vector<8x256xf32>, i32 -> vector<8x256xf32>
    %1201 = arith.maximumf %1199, %1200 : vector<8x256xf32>
    %c239_i32_528 = arith.constant 239 : i32
    %1202 = tpu.dynamic_rotate %1 by %c239_i32_528 dim 1 : vector<8x256xf32>, i32 -> vector<8x256xf32>
    %1203 = arith.maximumf %1201, %1202 : vector<8x256xf32>
    %c0_i32_529 = arith.constant 0 : i32
    %1204 = vector.broadcast %c0_i32_529 : i32 to vector<1x256xi32>
    %1205 = arith.addi %2, %1204 : vector<1x256xi32>
    %c1_i32_530 = arith.constant 1 : i32
    %1206 = vector.broadcast %c1_i32_530 : i32 to vector<1x256xi32>
    %1207 = arith.cmpi sge, %1205, %1206 : vector<1x256xi32>
    %c0_i32_531 = arith.constant 0 : i32
    %1208 = vector.broadcast %c0_i32_531 : i32 to vector<1x256xi32>
    %1209 = arith.addi %2, %1208 : vector<1x256xi32>
    %c14_i32_532 = arith.constant 14 : i32
    %1210 = vector.broadcast %c14_i32_532 : i32 to vector<1x256xi32>
    %1211 = arith.cmpi sle, %1209, %1210 : vector<1x256xi32>
    %1212 = arith.andi %1207, %1211 : vector<1x256xi1>
    %c0_i32_533 = arith.constant 0 : i32
    %1213 = vector.broadcast %c0_i32_533 : i32 to vector<1x256xi32>
    %1214 = arith.addi %3, %1213 : vector<1x256xi32>
    %c1_i32_534 = arith.constant 1 : i32
    %1215 = vector.broadcast %c1_i32_534 : i32 to vector<1x256xi32>
    %1216 = arith.cmpi sge, %1214, %1215 : vector<1x256xi32>
    %c0_i32_535 = arith.constant 0 : i32
    %1217 = vector.broadcast %c0_i32_535 : i32 to vector<1x256xi32>
    %1218 = arith.addi %3, %1217 : vector<1x256xi32>
    %c14_i32_536 = arith.constant 14 : i32
    %1219 = vector.broadcast %c14_i32_536 : i32 to vector<1x256xi32>
    %1220 = arith.cmpi sle, %1218, %1219 : vector<1x256xi32>
    %1221 = arith.andi %1216, %1220 : vector<1x256xi1>
    %1222 = arith.andi %1212, %1221 : vector<1x256xi1>
    %cst_537 = arith.constant 0.000000e+00 : f32
    %1223 = vector.shape_cast %1222 : vector<1x256xi1> to vector<1x256xi1>
    %1224 = vector.broadcast %1223 : vector<1x256xi1> to vector<8x256xi1>
    %1225 = vector.broadcast %cst_537 : f32 to vector<8x256xf32>
    %1226 = arith.select %1224, %1203, %1225 : vector<8x256xi1>, vector<8x256xf32>
    %c0_538 = arith.constant 0 : index
    %c0_539 = arith.constant 0 : index
    %1227 = vector.load %arg14[%c0_538, %c0_539] : memref<8x8xf32, #tpu.memory_space<vmem>>, vector<8x8xf32>
    %cst_540 = arith.constant dense<0.000000e+00> : vector<8x256xf32>
    %1228 = tpu.matmul %1227, %1226, %cst_540 {dimension_numbers = #tpu.dot_dimension_numbers<[1], [0], [0], [1], [0, 0, 1, 1], [], []>} : vector<8x8xf32>, vector<8x256xf32>, vector<8x256xf32> -> vector<8x256xf32>
    %c0_541 = arith.constant 0 : index
    %c0_542 = arith.constant 0 : index
    %1229 = vector.load %arg15[%c0_541, %c0_542] : memref<8x1xf32, #tpu.memory_space<vmem>>, vector<8x1xf32>
    %1230 = vector.broadcast %1229 : vector<8x1xf32> to vector<8x256xf32>
    %1231 = arith.addf %1228, %1230 : vector<8x256xf32>
    %cst_543 = arith.constant 0.000000e+00 : f32
    %1232 = vector.broadcast %cst_543 : f32 to vector<8x256xf32>
    %1233 = arith.maximumf %1231, %1232 : vector<8x256xf32>
    %1234 = tpu.concatenate %10, %232, %1187, %1233 in 0 : vector<8x256xf32>, vector<8x256xf32>, vector<8x256xf32>, vector<8x256xf32> -> vector<32x256xf32>
    %c0_544 = arith.constant 0 : index
    %c0_545 = arith.constant 0 : index
    %c0_546 = arith.constant 0 : index
    %1235 = vector.load %arg16[%c0_544, %c0_545, %c0_546] : memref<1x32x256xf32, #tpu.memory_space<vmem>>, vector<1x32x256xf32>
    %1236 = vector.shape_cast %1235 : vector<1x32x256xf32> to vector<32x256xf32>
    %1237 = vector.shape_cast %1234 : vector<32x256xf32> to vector<1x32x256xf32>
    tpu.vector_store %arg16[%c0_544, %c0_545, %c0_546], %1237 {strides = array<i32>} : memref<1x32x256xf32, #tpu.memory_space<vmem>>, vector<1x32x256xf32>,
    return
  }
  func.func @transform_0(%arg0: i32) -> (i32, i32, i32) {
    %c0_i32 = arith.constant 0 : i32
    %c0_i32_0 = arith.constant 0 : i32
    %c0_i32_1 = arith.constant 0 : i32
    return %arg0, %c0_i32, %c0_i32_0 : i32, i32, i32
  }
  func.func @transform_1(%arg0: i32) -> (i32, i32) {
    %c0_i32 = arith.constant 0 : i32
    %c0_i32_0 = arith.constant 0 : i32
    %c0_i32_1 = arith.constant 0 : i32
    return %c0_i32, %c0_i32_0 : i32, i32
  }
  func.func @transform_2(%arg0: i32) -> (i32, i32) {
    %c0_i32 = arith.constant 0 : i32
    %c0_i32_0 = arith.constant 0 : i32
    %c0_i32_1 = arith.constant 0 : i32
    return %c0_i32, %c0_i32_0 : i32, i32
  }
  func.func @transform_3(%arg0: i32) -> (i32, i32) {
    %c0_i32 = arith.constant 0 : i32
    %c0_i32_0 = arith.constant 0 : i32
    %c0_i32_1 = arith.constant 0 : i32
    return %c0_i32, %c0_i32_0 : i32, i32
  }
  func.func @transform_4(%arg0: i32) -> (i32, i32) {
    %c0_i32 = arith.constant 0 : i32
    %c0_i32_0 = arith.constant 0 : i32
    %c0_i32_1 = arith.constant 0 : i32
    return %c0_i32, %c0_i32_0 : i32, i32
  }
  func.func @transform_5(%arg0: i32) -> (i32, i32) {
    %c0_i32 = arith.constant 0 : i32
    %c0_i32_0 = arith.constant 0 : i32
    %c0_i32_1 = arith.constant 0 : i32
    return %c0_i32, %c0_i32_0 : i32, i32
  }
  func.func @transform_6(%arg0: i32) -> (i32, i32) {
    %c0_i32 = arith.constant 0 : i32
    %c0_i32_0 = arith.constant 0 : i32
    %c0_i32_1 = arith.constant 0 : i32
    return %c0_i32, %c0_i32_0 : i32, i32
  }
  func.func @transform_7(%arg0: i32) -> (i32, i32, i32, i32) {
    %c0_i32 = arith.constant 0 : i32
    %c0_i32_0 = arith.constant 0 : i32
    %c0_i32_1 = arith.constant 0 : i32
    %c0_i32_2 = arith.constant 0 : i32
    %c0_i32_3 = arith.constant 0 : i32
    return %c0_i32, %c0_i32_0, %c0_i32_1, %c0_i32_2 : i32, i32, i32, i32
  }
  func.func @transform_8(%arg0: i32) -> (i32, i32) {
    %c0_i32 = arith.constant 0 : i32
    %c0_i32_0 = arith.constant 0 : i32
    %c0_i32_1 = arith.constant 0 : i32
    return %c0_i32, %c0_i32_0 : i32, i32
  }
  func.func @transform_9(%arg0: i32) -> (i32, i32) {
    %c0_i32 = arith.constant 0 : i32
    %c0_i32_0 = arith.constant 0 : i32
    %c0_i32_1 = arith.constant 0 : i32
    return %c0_i32, %c0_i32_0 : i32, i32
  }
  func.func @transform_10(%arg0: i32) -> (i32, i32) {
    %c0_i32 = arith.constant 0 : i32
    %c0_i32_0 = arith.constant 0 : i32
    %c0_i32_1 = arith.constant 0 : i32
    return %c0_i32, %c0_i32_0 : i32, i32
  }
  func.func @transform_11(%arg0: i32) -> (i32, i32, i32, i32) {
    %c0_i32 = arith.constant 0 : i32
    %c0_i32_0 = arith.constant 0 : i32
    %c0_i32_1 = arith.constant 0 : i32
    %c0_i32_2 = arith.constant 0 : i32
    %c0_i32_3 = arith.constant 0 : i32
    return %c0_i32, %c0_i32_0, %c0_i32_1, %c0_i32_2 : i32, i32, i32, i32
  }
  func.func @transform_12(%arg0: i32) -> (i32, i32) {
    %c0_i32 = arith.constant 0 : i32
    %c0_i32_0 = arith.constant 0 : i32
    %c0_i32_1 = arith.constant 0 : i32
    return %c0_i32, %c0_i32_0 : i32, i32
  }
  func.func @transform_13(%arg0: i32) -> (i32, i32) {
    %c0_i32 = arith.constant 0 : i32
    %c0_i32_0 = arith.constant 0 : i32
    %c0_i32_1 = arith.constant 0 : i32
    return %c0_i32, %c0_i32_0 : i32, i32
  }
  func.func @transform_14(%arg0: i32) -> (i32, i32) {
    %c0_i32 = arith.constant 0 : i32
    %c0_i32_0 = arith.constant 0 : i32
    %c0_i32_1 = arith.constant 0 : i32
    return %c0_i32, %c0_i32_0 : i32, i32
  }
  func.func @transform_15(%arg0: i32) -> (i32, i32, i32) {
    %c0_i32 = arith.constant 0 : i32
    %c0_i32_0 = arith.constant 0 : i32
    %c0_i32_1 = arith.constant 0 : i32
    return %arg0, %c0_i32, %c0_i32_0 : i32, i32, i32
  }
}

</mosaic_0001>

<llo_original>
// kernel: tpu_custom_call.1
$region0: #{tpu_custom_call.1}
  #allocation0 [shape = 'u32[]', space=smem, size = 0x4, offset = 0x4, fixed_abs, tag = 'smem constant byte address 0x4 - core index']
  #allocation1 [shape = 'u32[72,128]{1,0:T(1,128)}', space=vmem, size = 0x9000, scoped, tag = 'internal scratch']
  %s0 = inlined_call_operand.hbm [shape: f32[2,8,256], index: 0, kind: input, shape index: {}]
  %s1 = inlined_call_operand.vmem [shape: s32[1,256], index: 1, kind: input, shape index: {}]
  %s2 = inlined_call_operand.vmem [shape: s32[1,256], index: 2, kind: input, shape index: {}]
  %s3 = inlined_call_operand.vmem [shape: f32[8,8], index: 3, kind: input, shape index: {}]
  %s4 = inlined_call_operand.vmem [shape: f32[8,1], index: 4, kind: input, shape index: {}]
  %s5 = inlined_call_operand.vmem [shape: f32[8,8], index: 5, kind: input, shape index: {}]
  %s6 = inlined_call_operand.vmem [shape: f32[8,1], index: 6, kind: input, shape index: {}]
  %s7 = inlined_call_operand.hbm [shape: f32[3,3,8,8], index: 7, kind: input, shape index: {}]
  %s8 = inlined_call_operand.vmem [shape: f32[8,1], index: 8, kind: input, shape index: {}]
  %s9 = inlined_call_operand.vmem [shape: f32[8,8], index: 9, kind: input, shape index: {}]
  %s10 = inlined_call_operand.vmem [shape: f32[8,1], index: 10, kind: input, shape index: {}]
  %s11 = inlined_call_operand.hbm [shape: f32[5,5,8,8], index: 11, kind: input, shape index: {}]
  %s12 = inlined_call_operand.vmem [shape: f32[8,1], index: 12, kind: input, shape index: {}]
  %s13 = inlined_call_operand.vmem [shape: f32[8,8], index: 13, kind: input, shape index: {}]
  %s14 = inlined_call_operand.vmem [shape: f32[8,1], index: 14, kind: input, shape index: {}]
  %s15 = inlined_call_operand.hbm [shape: f32[2,32,256], index: 15, kind: output, shape index: {}]
  %s16 = sld [smem:[#allocation0]]
  $region105: #{tpu_custom_call.1} parent=0
    _
  %s18 = ssub.s32 1, %s16
  %s19 = scalar_select 0, %s18, %s16
  $region1: #{tpu_custom_call.1} parent=0
    #allocation2 [shape = 'u8[16384]{0}', space=vmem, size = 0x4000, scoped, tag = 'input window, operand 0']
    #allocation3 [shape = 's32[2]{0}', space=sflag, size = 0x8, scoped, tag = 'scoped memory for tpu_custom_call.1']
    #allocation4 [shape = 's32[2]{0}', space=sflag, size = 0x8, scoped, tag = 'scoped memory for tpu_custom_call.1']
    #allocation5 [shape = 'u8[36864]{0}', space=vmem, size = 0x9000, scoped, tag = 'input window, operand 7, single buffered']
    #allocation6 [shape = 's32[1]{0}', space=sflag, size = 0x4, scoped, tag = 'scoped memory for tpu_custom_call.1']
    #allocation7 [shape = 'u8[102400]{0}', space=vmem, size = 0x19000, scoped, tag = 'input window, operand 11, single buffered']
    #allocation8 [shape = 'u8[65536]{0}', space=vmem, size = 0x10000, scoped, tag = 'output window, operand 0']
    %20 = vsyncpa [#allocation3], 0
    %s21 = scalar_lea.sflag [#allocation3], 1
    %22 = vsyncpa %s21, 0
    %23 = vsyncpa [#allocation6], 0
    %24 = vsyncpa [#allocation4], 0
    %s25 = scalar_lea.sflag [#allocation4], 1
    %26 = vsyncpa %s25, 0
    loop: start=0, step=1, limit=4
    $region2: #{tpu_custom_call.1} parent=1 // loop_pre_header
      _
    $region3: #{tpu_custom_call.1} parent=1 // loop_header
      %s28 = sphi 0, %s32
      %p29 = scmp.ge.s32.totalorder %s28, 4
      %s38 = sphi 0, %s40
      %s41 = sphi 0, %s38
      %s42 = sphi 0, %s41
      %s58 = sphi 0, %s42
      %s62 = sphi 0, %s62
      %s64 = sphi 0, %s62
      %s65 = sphi 0, %s64
      %s79 = sphi 0, %s65
      %s83 = sphi 0, %s83
      %s85 = sphi 0, %s83
      %s86 = sphi 0, %s85
      %s100 = sphi 0, %s86
      %s104 = sphi 0, %s104
      %s106 = sphi 0, %s104
      %s107 = sphi 0, %s106
      %s121 = sphi 0, %s107
      %s125 = sphi 0, %s125
      %s127 = sphi 0, %s125
      %s128 = sphi 0, %s127
      %s142 = sphi 0, %s128
      %s146 = sphi 0, %s146
      %s148 = sphi 0, %s146
      %s149 = sphi 0, %s148
      %s163 = sphi 0, %s149
      %s167 = sphi 0, %s167
      %s169 = sphi 0, %s167
      %s170 = sphi 0, %s169
      %s184 = sphi 0, %s170
      %s188 = sphi 0, %s188
      %s190 = sphi 0, %s188
      %s191 = sphi 0, %s190
      %s205 = sphi 0, %s191
      %s209 = sphi 0, %s209
      %s211 = sphi 0, %s209
      %s212 = sphi 0, %s211
      %s226 = sphi 0, %s212
      %s230 = sphi 0, %s230
      %s232 = sphi 0, %s230
      %s233 = sphi 0, %s232
      %s247 = sphi 0, %s233
      %s251 = sphi 0, %s251
      %s253 = sphi 0, %s251
      %s254 = sphi 0, %s253
      %s268 = sphi 0, %s254
      %s272 = sphi 0, %s272
      %s274 = sphi 0, %s272
      %s275 = sphi 0, %s274
      %s289 = sphi 0, %s275
      %s293 = sphi 0, %s293
      %s295 = sphi 0, %s293
      %s296 = sphi 0, %s295
      %s310 = sphi 0, %s296
      %s314 = sphi 0, %s314
      %s316 = sphi 0, %s314
      %s317 = sphi 0, %s316
      %s331 = sphi 0, %s317
      %s335 = sphi 0, %s335
      %s337 = sphi 0, %s335
      %s338 = sphi 0, %s337
      %s352 = sphi 0, %s338
      %s358 = sphi 0, %s360
      %s361 = sphi 0, %s358
      %s362 = sphi 0, %s361
      %s378 = sphi 0, %s362
    $region4: #{tpu_custom_call.1} parent=1 // loop_header_branch
      %31 = sbr.rel (%p29) target = $region8
    $region5: #{tpu_custom_call.1} parent=1 // loop_body
      %s33 = ssub.s32 %s28, 1
      %s34 = ssub.s32 %s28, 2
      %s35 = sadd.s32 %s28, 1
      %s36 = ssub.s32 %s28, %s35
      %p37 = scmp.eq.s32.totalorder %s36, 0
      %s39 = sadd.s32 %s38, 1
      %s40 = scalar_select %p37, %s38, %s39
      %p43 = pneg %p37
      %p44 = scmp.eq.s32.totalorder %s28, 1
      %p45 = por %p43, %p44
      %p46 = scmp.ne.s32.totalorder %s38, %s41
      %p47 = scmp.eq.s32.totalorder %s28, 0
      %p48 = por %p46, %p47
      %p49 = scmp.ne.s32.totalorder %s38, %s41
      %p50 = scmp.eq.s32.totalorder %s33, 1
      %p51 = por %p49, %p50
      %p52 = scmp.ne.s32.totalorder %s41, %s42
      %p53 = scmp.eq.s32.totalorder %s33, 0
      %p54 = por %p52, %p53
      %p55 = scmp.ne.s32.totalorder %s41, %s42
      %p56 = scmp.eq.s32.totalorder %s34, 1
      %p57 = por %p55, %p56
      %p59 = scmp.ne.s32.totalorder %s42, %s58
      %p60 = scmp.eq.s32.totalorder %s34, 0
      %p61 = por %p59, %p60
      %s63 = sadd.s32 %s62, 1
      %p66 = scmp.eq.s32.totalorder %s28, 1
      %p67 = scmp.ne.s32.totalorder %s62, %s64
      %p68 = scmp.eq.s32.totalorder %s28, 0
      %p69 = por %p67, %p68
      %p70 = scmp.ne.s32.totalorder %s62, %s64
      %p71 = scmp.eq.s32.totalorder %s33, 1
      %p72 = por %p70, %p71
      %p73 = scmp.ne.s32.totalorder %s64, %s65
      %p74 = scmp.eq.s32.totalorder %s33, 0
      %p75 = por %p73, %p74
      %p76 = scmp.ne.s32.totalorder %s64, %s65
      %p77 = scmp.eq.s32.totalorder %s34, 1
      %p78 = por %p76, %p77
      %p80 = scmp.ne.s32.totalorder %s65, %s79
      %p81 = scmp.eq.s32.totalorder %s34, 0
      %p82 = por %p80, %p81
      %s84 = sadd.s32 %s83, 1
      %p87 = scmp.eq.s32.totalorder %s28, 1
      %p88 = scmp.ne.s32.totalorder %s83, %s85
      %p89 = scmp.eq.s32.totalorder %s28, 0
      %p90 = por %p88, %p89
      %p91 = scmp.ne.s32.totalorder %s83, %s85
      %p92 = scmp.eq.s32.totalorder %s33, 1
      %p93 = por %p91, %p92
      %p94 = scmp.ne.s32.totalorder %s85, %s86
      %p95 = scmp.eq.s32.totalorder %s33, 0
      %p96 = por %p94, %p95
      %p97 = scmp.ne.s32.totalorder %s85, %s86
      %p98 = scmp.eq.s32.totalorder %s34, 1
      %p99 = por %p97, %p98
      %p101 = scmp.ne.s32.totalorder %s86, %s100
      %p102 = scmp.eq.s32.totalorder %s34, 0
      %p103 = por %p101, %p102
      %s105 = sadd.s32 %s104, 1
      %p108 = scmp.eq.s32.totalorder %s28, 1
      %p109 = scmp.ne.s32.totalorder %s104, %s106
      %p110 = scmp.eq.s32.totalorder %s28, 0
      %p111 = por %p109, %p110
      %p112 = scmp.ne.s32.totalorder %s104, %s106
      %p113 = scmp.eq.s32.totalorder %s33, 1
      %p114 = por %p112, %p113
      %p115 = scmp.ne.s32.totalorder %s106, %s107
      %p116 = scmp.eq.s32.totalorder %s33, 0
      %p117 = por %p115, %p116
      %p118 = scmp.ne.s32.totalorder %s106, %s107
      %p119 = scmp.eq.s32.totalorder %s34, 1
      %p120 = por %p118, %p119
      %p122 = scmp.ne.s32.totalorder %s107, %s121
      %p123 = scmp.eq.s32.totalorder %s34, 0
      %p124 = por %p122, %p123
      %s126 = sadd.s32 %s125, 1
      %p129 = scmp.eq.s32.totalorder %s28, 1
      %p130 = scmp.ne.s32.totalorder %s125, %s127
      %p131 = scmp.eq.s32.totalorder %s28, 0
      %p132 = por %p130, %p131
      %p133 = scmp.ne.s32.totalorder %s125, %s127
      %p134 = scmp.eq.s32.totalorder %s33, 1
      %p135 = por %p133, %p134
      %p136 = scmp.ne.s32.totalorder %s127, %s128
      %p137 = scmp.eq.s32.totalorder %s33, 0
      %p138 = por %p136, %p137
      %p139 = scmp.ne.s32.totalorder %s127, %s128
      %p140 = scmp.eq.s32.totalorder %s34, 1
      %p141 = por %p139, %p140
      %p143 = scmp.ne.s32.totalorder %s128, %s142
      %p144 = scmp.eq.s32.totalorder %s34, 0
      %p145 = por %p143, %p144
      %s147 = sadd.s32 %s146, 1
      %p150 = scmp.eq.s32.totalorder %s28, 1
      %p151 = scmp.ne.s32.totalorder %s146, %s148
      %p152 = scmp.eq.s32.totalorder %s28, 0
      %p153 = por %p151, %p152
      %p154 = scmp.ne.s32.totalorder %s146, %s148
      %p155 = scmp.eq.s32.totalorder %s33, 1
      %p156 = por %p154, %p155
      %p157 = scmp.ne.s32.totalorder %s148, %s149
      %p158 = scmp.eq.s32.totalorder %s33, 0
      %p159 = por %p157, %p158
      %p160 = scmp.ne.s32.totalorder %s148, %s149
      %p161 = scmp.eq.s32.totalorder %s34, 1
      %p162 = por %p160, %p161
      %p164 = scmp.ne.s32.totalorder %s149, %s163
      %p165 = scmp.eq.s32.totalorder %s34, 0
      %p166 = por %p164, %p165
      %s168 = sadd.s32 %s167, 1
      %p171 = scmp.eq.s32.totalorder %s28, 1
      %p172 = scmp.ne.s32.totalorder %s167, %s169
      %p173 = scmp.eq.s32.totalorder %s28, 0
      %p174 = por %p172, %p173
      %p175 = scmp.ne.s32.totalorder %s167, %s169
      %p176 = scmp.eq.s32.totalorder %s33, 1
      %p177 = por %p175, %p176
      %p178 = scmp.ne.s32.totalorder %s169, %s170
      %p179 = scmp.eq.s32.totalorder %s33, 0
      %p180 = por %p178, %p179
      %p181 = scmp.ne.s32.totalorder %s169, %s170
      %p182 = scmp.eq.s32.totalorder %s34, 1
      %p183 = por %p181, %p182
      %p185 = scmp.ne.s32.totalorder %s170, %s184
      %p186 = scmp.eq.s32.totalorder %s34, 0
      %p187 = por %p185, %p186
      %s189 = sadd.s32 %s188, 1
      %p192 = scmp.eq.s32.totalorder %s28, 1
      %p193 = scmp.ne.s32.totalorder %s188, %s190
      %p194 = scmp.eq.s32.totalorder %s28, 0
      %p195 = por %p193, %p194
      %p196 = scmp.ne.s32.totalorder %s188, %s190
      %p197 = scmp.eq.s32.totalorder %s33, 1
      %p198 = por %p196, %p197
      %p199 = scmp.ne.s32.totalorder %s190, %s191
      %p200 = scmp.eq.s32.totalorder %s33, 0
      %p201 = por %p199, %p200
      %p202 = scmp.ne.s32.totalorder %s190, %s191
      %p203 = scmp.eq.s32.totalorder %s34, 1
      %p204 = por %p202, %p203
      %p206 = scmp.ne.s32.totalorder %s191, %s205
      %p207 = scmp.eq.s32.totalorder %s34, 0
      %p208 = por %p206, %p207
      %s210 = sadd.s32 %s209, 1
      %p213 = scmp.eq.s32.totalorder %s28, 1
      %p214 = scmp.ne.s32.totalorder %s209, %s211
      %p215 = scmp.eq.s32.totalorder %s28, 0
      %p216 = por %p214, %p215
      %p217 = scmp.ne.s32.totalorder %s209, %s211
      %p218 = scmp.eq.s32.totalorder %s33, 1
      %p219 = por %p217, %p218
      %p220 = scmp.ne.s32.totalorder %s211, %s212
      %p221 = scmp.eq.s32.totalorder %s33, 0
      %p222 = por %p220, %p221
      %p223 = scmp.ne.s32.totalorder %s211, %s212
      %p224 = scmp.eq.s32.totalorder %s34, 1
      %p225 = por %p223, %p224
      %p227 = scmp.ne.s32.totalorder %s212, %s226
      %p228 = scmp.eq.s32.totalorder %s34, 0
      %p229 = por %p227, %p228
      %s231 = sadd.s32 %s230, 1
      %p234 = scmp.eq.s32.totalorder %s28, 1
      %p235 = scmp.ne.s32.totalorder %s230, %s232
      %p236 = scmp.eq.s32.totalorder %s28, 0
      %p237 = por %p235, %p236
      %p238 = scmp.ne.s32.totalorder %s230, %s232
      %p239 = scmp.eq.s32.totalorder %s33, 1
      %p240 = por %p238, %p239
      %p241 = scmp.ne.s32.totalorder %s232, %s233
      %p242 = scmp.eq.s32.totalorder %s33, 0
      %p243 = por %p241, %p242
      %p244 = scmp.ne.s32.totalorder %s232, %s233
      %p245 = scmp.eq.s32.totalorder %s34, 1
      %p246 = por %p244, %p245
      %p248 = scmp.ne.s32.totalorder %s233, %s247
      %p249 = scmp.eq.s32.totalorder %s34, 0
      %p250 = por %p248, %p249
      %s252 = sadd.s32 %s251, 1
      %p255 = scmp.eq.s32.totalorder %s28, 1
      %p256 = scmp.ne.s32.totalorder %s251, %s253
      %p257 = scmp.eq.s32.totalorder %s28, 0
      %p258 = por %p256, %p257
      %p259 = scmp.ne.s32.totalorder %s251, %s253
      %p260 = scmp.eq.s32.totalorder %s33, 1
      %p261 = por %p259, %p260
      %p262 = scmp.ne.s32.totalorder %s253, %s254
      %p263 = scmp.eq.s32.totalorder %s33, 0
      %p264 = por %p262, %p263
      %p265 = scmp.ne.s32.totalorder %s253, %s254
      %p266 = scmp.eq.s32.totalorder %s34, 1
      %p267 = por %p265, %p266
      %p269 = scmp.ne.s32.totalorder %s254, %s268
      %p270 = scmp.eq.s32.totalorder %s34, 0
      %p271 = por %p269, %p270
      %s273 = sadd.s32 %s272, 1
      %p276 = scmp.eq.s32.totalorder %s28, 1
      %p277 = scmp.ne.s32.totalorder %s272, %s274
      %p278 = scmp.eq.s32.totalorder %s28, 0
      %p279 = por %p277, %p278
      %p280 = scmp.ne.s32.totalorder %s272, %s274
      %p281 = scmp.eq.s32.totalorder %s33, 1
      %p282 = por %p280, %p281
      %p283 = scmp.ne.s32.totalorder %s274, %s275
      %p284 = scmp.eq.s32.totalorder %s33, 0
      %p285 = por %p283, %p284
      %p286 = scmp.ne.s32.totalorder %s274, %s275
      %p287 = scmp.eq.s32.totalorder %s34, 1
      %p288 = por %p286, %p287
      %p290 = scmp.ne.s32.totalorder %s275, %s289
      %p291 = scmp.eq.s32.totalorder %s34, 0
      %p292 = por %p290, %p291
      %s294 = sadd.s32 %s293, 1
      %p297 = scmp.eq.s32.totalorder %s28, 1
      %p298 = scmp.ne.s32.totalorder %s293, %s295
      %p299 = scmp.eq.s32.totalorder %s28, 0
      %p300 = por %p298, %p299
      %p301 = scmp.ne.s32.totalorder %s293, %s295
      %p302 = scmp.eq.s32.totalorder %s33, 1
      %p303 = por %p301, %p302
      %p304 = scmp.ne.s32.totalorder %s295, %s296
      %p305 = scmp.eq.s32.totalorder %s33, 0
      %p306 = por %p304, %p305
      %p307 = scmp.ne.s32.totalorder %s295, %s296
      %p308 = scmp.eq.s32.totalorder %s34, 1
      %p309 = por %p307, %p308
      %p311 = scmp.ne.s32.totalorder %s296, %s310
      %p312 = scmp.eq.s32.totalorder %s34, 0
      %p313 = por %p311, %p312
      %s315 = sadd.s32 %s314, 1
      %p318 = scmp.eq.s32.totalorder %s28, 1
      %p319 = scmp.ne.s32.totalorder %s314, %s316
      %p320 = scmp.eq.s32.totalorder %s28, 0
      %p321 = por %p319, %p320
      %p322 = scmp.ne.s32.totalorder %s314, %s316
      %p323 = scmp.eq.s32.totalorder %s33, 1
      %p324 = por %p322, %p323
      %p325 = scmp.ne.s32.totalorder %s316, %s317
      %p326 = scmp.eq.s32.totalorder %s33, 0
      %p327 = por %p325, %p326
      %p328 = scmp.ne.s32.totalorder %s316, %s317
      %p329 = scmp.eq.s32.totalorder %s34, 1
      %p330 = por %p328, %p329
      %p332 = scmp.ne.s32.totalorder %s317, %s331
      %p333 = scmp.eq.s32.totalorder %s34, 0
      %p334 = por %p332, %p333
      %s336 = sadd.s32 %s335, 1
      %p339 = scmp.eq.s32.totalorder %s28, 1
      %p340 = scmp.ne.s32.totalorder %s335, %s337
      %p341 = scmp.eq.s32.totalorder %s28, 0
      %p342 = por %p340, %p341
      %p343 = scmp.ne.s32.totalorder %s335, %s337
      %p344 = scmp.eq.s32.totalorder %s33, 1
      %p345 = por %p343, %p344
      %p346 = scmp.ne.s32.totalorder %s337, %s338
      %p347 = scmp.eq.s32.totalorder %s33, 0
      %p348 = por %p346, %p347
      %p349 = scmp.ne.s32.totalorder %s337, %s338
      %p350 = scmp.eq.s32.totalorder %s34, 1
      %p351 = por %p349, %p350
      %p353 = scmp.ne.s32.totalorder %s338, %s352
      %p354 = scmp.eq.s32.totalorder %s34, 0
      %p355 = por %p353, %p354
      %s356 = ssub.s32 %s28, %s35
      %p357 = scmp.eq.s32.totalorder %s356, 0
      %s359 = sadd.s32 %s358, 1
      %s360 = scalar_select %p357, %s358, %s359
      %p363 = pneg %p357
      %p364 = scmp.eq.s32.totalorder %s28, 1
      %p365 = por %p363, %p364
      %p366 = scmp.ne.s32.totalorder %s358, %s361
      %p367 = scmp.eq.s32.totalorder %s28, 0
      %p368 = por %p366, %p367
      %p369 = scmp.ne.s32.totalorder %s358, %s361
      %p370 = scmp.eq.s32.totalorder %s33, 1
      %p371 = por %p369, %p370
      %p372 = scmp.ne.s32.totalorder %s361, %s362
      %p373 = scmp.eq.s32.totalorder %s33, 0
      %p374 = por %p372, %p373
      %p375 = scmp.ne.s32.totalorder %s361, %s362
      %p376 = scmp.eq.s32.totalorder %s34, 1
      %p377 = por %p375, %p376
      %p379 = scmp.ne.s32.totalorder %s362, %s378
      %p380 = scmp.eq.s32.totalorder %s34, 0
      %p381 = por %p379, %p380
      %p382 = scmp.le.s32.totalorder 1, %s28
      %p383 = scmp.lt.s32.totalorder %s28, 3
      %p384 = pnand %p382, %p383
      %p385 = pneg %p384
      // Predicated region
      $region9: #{tpu_custom_call.1} parent=5 // pred_check
        _
      $region10: #{tpu_custom_call.1} parent=5 // pred_check_branch
        %387 = sbr.rel (%p384) target = $region12
      $region11: #{tpu_custom_call.1} parent=5 // pred_region
        %s388 = ssub.s32 %s28, 1
        // Predicated region
        $region13: #{tpu_custom_call.1} parent=11 // pred_check
          %p389 = pneg %p75
        $region14: #{tpu_custom_call.1} parent=11 // pred_check_branch
          %391 = sbr.rel (%p389) target = $region16
        $region15: #{tpu_custom_call.1} parent=11 // pred_region
          _
        $region16: #{tpu_custom_call.1} parent=11 // pred_fallthru
          _
        // Predicated region
        $region17: #{tpu_custom_call.1} parent=11 // pred_check
          %p392 = pneg %p96
        $region18: #{tpu_custom_call.1} parent=11 // pred_check_branch
          %394 = sbr.rel (%p392) target = $region20
        $region19: #{tpu_custom_call.1} parent=11 // pred_region
          _
        $region20: #{tpu_custom_call.1} parent=11 // pred_fallthru
          _
        // Predicated region
        $region21: #{tpu_custom_call.1} parent=11 // pred_check
          %p395 = pneg %p117
        $region22: #{tpu_custom_call.1} parent=11 // pred_check_branch
          %397 = sbr.rel (%p395) target = $region24
        $region23: #{tpu_custom_call.1} parent=11 // pred_region
          _
        $region24: #{tpu_custom_call.1} parent=11 // pred_fallthru
          _
        // Predicated region
        $region25: #{tpu_custom_call.1} parent=11 // pred_check
          %p398 = pneg %p138
        $region26: #{tpu_custom_call.1} parent=11 // pred_check_branch
          %400 = sbr.rel (%p398) target = $region28
        $region27: #{tpu_custom_call.1} parent=11 // pred_region
          _
        $region28: #{tpu_custom_call.1} parent=11 // pred_fallthru
          _
        // Predicated region
        $region29: #{tpu_custom_call.1} parent=11 // pred_check
          %p401 = pneg %p159
        $region30: #{tpu_custom_call.1} parent=11 // pred_check_branch
          %403 = sbr.rel (%p401) target = $region32
        $region31: #{tpu_custom_call.1} parent=11 // pred_region
          _
        $region32: #{tpu_custom_call.1} parent=11 // pred_fallthru
          _
        // Predicated region
        $region33: #{tpu_custom_call.1} parent=11 // pred_check
          %p404 = pneg %p180
        $region34: #{tpu_custom_call.1} parent=11 // pred_check_branch
          %406 = sbr.rel (%p404) target = $region36
        $region35: #{tpu_custom_call.1} parent=11 // pred_region
          _
        $region36: #{tpu_custom_call.1} parent=11 // pred_fallthru
          _
        // Predicated region
        $region37: #{tpu_custom_call.1} parent=11 // pred_check
          %p407 = pneg %p201
        $region38: #{tpu_custom_call.1} parent=11 // pred_check_branch
          %409 = sbr.rel (%p407) target = $region40
        $region39: #{tpu_custom_call.1} parent=11 // pred_region
          %411 = vsyncadd [#allocation6], 0
          %s412 = sshll.u32 %s7, 4
          %s413 = int_to_ptr.hbm [resolvable:$true] %s412
          %s414 = sshll.u32 [#allocation5], 4
          %s415 = int_to_ptr.vmem [resolvable:$true] %s414
          %420 = dma.hbm_to_vmem [thread:$0]  %s413, 1152, %s415, [#allocation6], 128, 128, 8
        $region40: #{tpu_custom_call.1} parent=11 // pred_fallthru
          _
        // Predicated region
        $region41: #{tpu_custom_call.1} parent=11 // pred_check
          %p421 = pneg %p222
        $region42: #{tpu_custom_call.1} parent=11 // pred_check_branch
          %423 = sbr.rel (%p421) target = $region44
        $region43: #{tpu_custom_call.1} parent=11 // pred_region
          _
        $region44: #{tpu_custom_call.1} parent=11 // pred_fallthru
          _
        // Predicated region
        $region45: #{tpu_custom_call.1} parent=11 // pred_check
          %p424 = pneg %p243
        $region46: #{tpu_custom_call.1} parent=11 // pred_check_branch
          %426 = sbr.rel (%p424) target = $region48
        $region47: #{tpu_custom_call.1} parent=11 // pred_region
          _
        $region48: #{tpu_custom_call.1} parent=11 // pred_fallthru
          _
        // Predicated region
        $region49: #{tpu_custom_call.1} parent=11 // pred_check
          %p427 = pneg %p264
        $region50: #{tpu_custom_call.1} parent=11 // pred_check_branch
          %429 = sbr.rel (%p427) target = $region52
        $region51: #{tpu_custom_call.1} parent=11 // pred_region
          _
        $region52: #{tpu_custom_call.1} parent=11 // pred_fallthru
          _
        // Predicated region
        $region53: #{tpu_custom_call.1} parent=11 // pred_check
          %p430 = pneg %p285
        $region54: #{tpu_custom_call.1} parent=11 // pred_check_branch
          %432 = sbr.rel (%p430) target = $region56
        $region55: #{tpu_custom_call.1} parent=11 // pred_region
          %434 = vsyncadd [#allocation6], 0
          %s435 = sshll.u32 %s11, 4
          %s436 = int_to_ptr.hbm [resolvable:$true] %s435
          %s437 = sshll.u32 [#allocation7], 4
          %s438 = int_to_ptr.vmem [resolvable:$true] %s437
          %443 = dma.hbm_to_vmem [thread:$0]  %s436, 3200, %s438, [#allocation6], 128, 128, 8
        $region56: #{tpu_custom_call.1} parent=11 // pred_fallthru
          _
        // Predicated region
        $region57: #{tpu_custom_call.1} parent=11 // pred_check
          %p444 = pneg %p306
        $region58: #{tpu_custom_call.1} parent=11 // pred_check_branch
          %446 = sbr.rel (%p444) target = $region60
        $region59: #{tpu_custom_call.1} parent=11 // pred_region
          _
        $region60: #{tpu_custom_call.1} parent=11 // pred_fallthru
          _
        // Predicated region
        $region61: #{tpu_custom_call.1} parent=11 // pred_check
          %p447 = pneg %p327
        $region62: #{tpu_custom_call.1} parent=11 // pred_check_branch
          %449 = sbr.rel (%p447) target = $region64
        $region63: #{tpu_custom_call.1} parent=11 // pred_region
          _
        $region64: #{tpu_custom_call.1} parent=11 // pred_fallthru
          _
        // Predicated region
        $region65: #{tpu_custom_call.1} parent=11 // pred_check
          %p450 = pneg %p348
        $region66: #{tpu_custom_call.1} parent=11 // pred_check_branch
          %452 = sbr.rel (%p450) target = $region68
        $region67: #{tpu_custom_call.1} parent=11 // pred_region
          _
        $region68: #{tpu_custom_call.1} parent=11 // pred_fallthru
          _
      $region12: #{tpu_custom_call.1} parent=5 // pred_fallthru
        _
      %p453 = scmp.lt.s32.totalorder %s28, 2
      // Predicated region
      $region69: #{tpu_custom_call.1} parent=5 // pred_check
        %p454 = pneg %p453
      $region70: #{tpu_custom_call.1} parent=5 // pred_check_branch
        %456 = sbr.rel (%p454) target = $region72
      $region71: #{tpu_custom_call.1} parent=5 // pred_region
        // Predicated region
        $region73: #{tpu_custom_call.1} parent=71 // pred_check
          %p457 = pneg %p48
        $region74: #{tpu_custom_call.1} parent=71 // pred_check_branch
          %459 = sbr.rel (%p457) target = $region76
        $region75: #{tpu_custom_call.1} parent=71 // pred_region
          %s460 = sand.u32 %s38, 1
          %s461 = scalar_lea.sflag [#allocation3], %s460
          %s462 = sand.u32 %s38, 1
          %s463 = smul.addr %s462, 16
          %s464 = scalar_lea.vmem [#allocation2], %s463
          %466 = vsyncadd %s461, 0
          %s467 = smul.addr %s28, 2
          %s468 = smul.addr %s467, 8
          %s469 = scalar_lea.hbm %s0, %s468
          %s471 = sshll.u32 %s469, 4
          %s472 = int_to_ptr.hbm [resolvable:$true] %s471
          %s473 = sshll.u32 %s464, 4
          %s474 = int_to_ptr.vmem [resolvable:$true] %s473
          %476 = dma.hbm_to_vmem [thread:$0]  %s472, 256, %s474, %s461
        $region76: #{tpu_custom_call.1} parent=71 // pred_fallthru
          _
      $region72: #{tpu_custom_call.1} parent=5 // pred_fallthru
        _
      %p477 = scmp.le.s32.totalorder 1, %s28
      %p478 = scmp.lt.s32.totalorder %s28, 3
      %p479 = pnand %p477, %p478
      %p480 = pneg %p479
      // Predicated region
      $region77: #{tpu_custom_call.1} parent=5 // pred_check
        _
      $region78: #{tpu_custom_call.1} parent=5 // pred_check_branch
        %482 = sbr.rel (%p479) target = $region80
      $region79: #{tpu_custom_call.1} parent=5 // pred_region
        %s483 = ssub.s32 %s28, 1
        %s484 = sand.u32 %s41, 1
        %s485 = scalar_lea.sflag [#allocation3], %s484
        %s486 = sand.u32 %s41, 1
        %s487 = smul.addr %s486, 16
        %s488 = scalar_lea.vmem [#allocation2], %s487
        // Predicated region
        $region81: #{tpu_custom_call.1} parent=79 // pred_check
          %p489 = pneg %p54
        $region82: #{tpu_custom_call.1} parent=79 // pred_check_branch
          %491 = sbr.rel (%p489) target = $region84
        $region83: #{tpu_custom_call.1} parent=79 // pred_region
          %493 = dma.done %s485, 256
        $region84: #{tpu_custom_call.1} parent=79 // pred_fallthru
          _
        // Predicated region
        $region85: #{tpu_custom_call.1} parent=79 // pred_check
          %p494 = pneg %p201
        $region86: #{tpu_custom_call.1} parent=79 // pred_check_branch
          %496 = sbr.rel (%p494) target = $region88
        $region87: #{tpu_custom_call.1} parent=79 // pred_region
          %498 = dma.done [#allocation6], 1152
        $region88: #{tpu_custom_call.1} parent=79 // pred_fallthru
          _
        // Predicated region
        $region89: #{tpu_custom_call.1} parent=79 // pred_check
          %p499 = pneg %p285
        $region90: #{tpu_custom_call.1} parent=79 // pred_check_branch
          %501 = sbr.rel (%p499) target = $region92
        $region91: #{tpu_custom_call.1} parent=79 // pred_region
          %503 = dma.done [#allocation6], 3200
        $region92: #{tpu_custom_call.1} parent=79 // pred_fallthru
          _
        %s504 = sand.u32 %s41, 1
        %s505 = scalar_lea.sflag [#allocation3], %s504
        %s506 = sand.u32 %s41, 1
        %s507 = smul.addr %s506, 16
        %s508 = scalar_lea.vmem [#allocation2], %s507
        %p509 = pneg %p54
        %p510 = pneg %p51
        %p511 = pneg %p75
        %p512 = pneg %p72
        %p513 = pneg %p96
        %p514 = pneg %p93
        %p515 = pneg %p117
        %p516 = pneg %p114
        %p517 = pneg %p138
        %p518 = pneg %p135
        %p519 = pneg %p159
        %p520 = pneg %p156
        %p521 = pneg %p180
        %p522 = pneg %p177
        %p523 = pneg %p201
        %p524 = pneg %p198
        %p525 = pneg %p222
        %p526 = pneg %p219
        %p527 = pneg %p243
        %p528 = pneg %p240
        %p529 = pneg %p264
        %p530 = pneg %p261
        %p531 = pneg %p285
        %p532 = pneg %p282
        %p533 = pneg %p306
        %p534 = pneg %p303
        %p535 = pneg %p327
        %p536 = pneg %p324
        %p537 = pneg %p348
        %p538 = pneg %p345
        %p539 = pneg %p374
        %p540 = pneg %p371
        %s541 = sand.u32 %s361, 1
        %s542 = scalar_lea.sflag [#allocation4], %s541
        %s543 = sand.u32 %s361, 1
        %s544 = smul.addr %s543, 64
        %s545 = scalar_lea.vmem [#allocation8], %s544
        %v546 = vld [vmem:[%s488] sm:$0xff]
        %v547 = vld [vmem:[%s488 + $0x8] sm:$0xff]
        %v548 = vld [vmem:[%s1] sm:$0x3]
        %v549 = vld [vmem:[%s2] sm:$0x3]
        %v550 = vld [vmem:[%s3] sm:$0xff]
        %v551 = vld [vmem:[%s4] sm:$0xff]
        %553 = vset.pattern.permute.xlu0 0
        %554 = vperm.xlu0 %553, %v551
        %v555 = vpop.permute.xlu0 %554
        %vm557 = vcmask 64512
        %v559 = vsel %vm557, %v550, 0
        %561 = vmatpush.msra.mxu0 0.0
        %562 = vmatpush.msra.mxu0 0.0
        %563 = vmatpush.msra.mxu0 0.0
        %564 = vmatpush.msra.mxu0 0.0
        %565 = vmatpush.msra.mxu0 0.0
        %566 = vmatpush.msra.mxu0 0.0
        %567 = vmatpush.msra.mxu0 0.0
        %568 = vmatpush.msra.mxu0 0.0
        %569 = vmatpush.msra.mxu0 0.0
        %570 = vmatpush.msra.mxu0 0.0
        %571 = vmatpush.msra.mxu0 0.0
        %572 = vmatpush.msra.mxu0 0.0
        %573 = vmatpush.msra.mxu0 0.0
        %574 = vmatpush.msra.mxu0 0.0
        %575 = vmatpush.msra.mxu0 0.0
        %576 = vmatpush.msra.mxu0 %v546
        %577 = vmatmul.f32.gmra.mxu0 %v559
        %v578 = vpop.f32.mrf.mxu0
        %v579 = vadd.f32 %v555, %v578
        %580 = vdwg.mxu0
        %581 = vmatpush.msra.mxu0 0.0
        %582 = vmatpush.msra.mxu0 0.0
        %583 = vmatpush.msra.mxu0 0.0
        %584 = vmatpush.msra.mxu0 0.0
        %585 = vmatpush.msra.mxu0 0.0
        %586 = vmatpush.msra.mxu0 0.0
        %587 = vmatpush.msra.mxu0 0.0
        %588 = vmatpush.msra.mxu0 0.0
        %589 = vmatpush.msra.mxu0 0.0
        %590 = vmatpush.msra.mxu0 0.0
        %591 = vmatpush.msra.mxu0 0.0
        %592 = vmatpush.msra.mxu0 0.0
        %593 = vmatpush.msra.mxu0 0.0
        %594 = vmatpush.msra.mxu0 0.0
        %595 = vmatpush.msra.mxu0 0.0
        %596 = vmatpush.msra.mxu0 %v547
        %597 = vmatmul.f32.gmra.mxu0 %v559
        %v598 = vpop.f32.mrf.mxu0
        %v599 = vadd.f32 %v555, %v598
        %600 = vdwg.mxu0
        %v601 = vmax.f32 %v579, 0.0
        %v602 = vmax.f32 %v599, 0.0
        %v603 = vld [vmem:[%s5] sm:$0xff]
        %v604 = vld [vmem:[%s6] sm:$0xff]
        %606 = vset.pattern.permute.xlu0 0
        %607 = vperm.xlu0 %606, %v604
        %v608 = vpop.permute.xlu0 %607
        %v611 = vsel %vm557, %v603, 0
        %613 = vmatpush.msra.mxu0 0.0
        %614 = vmatpush.msra.mxu0 0.0
        %615 = vmatpush.msra.mxu0 0.0
        %616 = vmatpush.msra.mxu0 0.0
        %617 = vmatpush.msra.mxu0 0.0
        %618 = vmatpush.msra.mxu0 0.0
        %619 = vmatpush.msra.mxu0 0.0
        %620 = vmatpush.msra.mxu0 0.0
        %621 = vmatpush.msra.mxu0 0.0
        %622 = vmatpush.msra.mxu0 0.0
        %623 = vmatpush.msra.mxu0 0.0
        %624 = vmatpush.msra.mxu0 0.0
        %625 = vmatpush.msra.mxu0 0.0
        %626 = vmatpush.msra.mxu0 0.0
        %627 = vmatpush.msra.mxu0 0.0
        %628 = vmatpush.msra.mxu0 %v546
        %629 = vmatmul.f32.gmra.mxu0 %v611
        %v630 = vpop.f32.mrf.mxu0
        %v631 = vadd.f32 %v608, %v630
        %632 = vdwg.mxu0
        %633 = vmatpush.msra.mxu0 0.0
        %634 = vmatpush.msra.mxu0 0.0
        %635 = vmatpush.msra.mxu0 0.0
        %636 = vmatpush.msra.mxu0 0.0
        %637 = vmatpush.msra.mxu0 0.0
        %638 = vmatpush.msra.mxu0 0.0
        %639 = vmatpush.msra.mxu0 0.0
        %640 = vmatpush.msra.mxu0 0.0
        %641 = vmatpush.msra.mxu0 0.0
        %642 = vmatpush.msra.mxu0 0.0
        %643 = vmatpush.msra.mxu0 0.0
        %644 = vmatpush.msra.mxu0 0.0
        %645 = vmatpush.msra.mxu0 0.0
        %646 = vmatpush.msra.mxu0 0.0
        %647 = vmatpush.msra.mxu0 0.0
        %648 = vmatpush.msra.mxu0 %v547
        %649 = vmatmul.f32.gmra.mxu0 %v611
        %v650 = vpop.f32.mrf.mxu0
        %v651 = vadd.f32 %v608, %v650
        %652 = vdwg.mxu0
        %v653 = vmax.f32 %v631, 0.0
        %v654 = vmax.f32 %v651, 0.0
        %v655 = vmax.f32 %v604, 0.0
        %v656 = vadd.s32 %v548, 4294967295
        %vm657 = vcmp.ge.s32.totalorder %v656, 0
        %vm658 = vcmp.le.s32.totalorder %v656, 15
        %vm659 = vmand %vm657, %vm658
        %v660 = vadd.s32 %v549, 4294967295
        %vm661 = vcmp.ge.s32.totalorder %v660, 0
        %vm662 = vcmp.le.s32.totalorder %v660, 15
        %vm663 = vmand %vm661, %vm662
        %vm664 = vmand %vm659, %vm663
        %665 = vrot.lane.b32.xlu0 %v653, 17
        %v666 = vpop.permute.xlu0 %665
        %667 = vrot.lane.b32.xlu0 %v654, 17
        %v668 = vpop.permute.xlu0 %667
        %v669 = vlaneseq
        %v670 = vand.u32 %v669, 127
        %vm671 = vcmp.lt.s32.totalorder %v670, 17
        %v672 = vsel %vm671, %v666, %v668
        %v673 = vsel %vm671, %v668, %v666
        %v674 = vsel %vm664, 1, 0
        %v675 = vperm.slane %v674, 0
        %v676 = vperm.slane %v674, 1
        %vm677 = vcmp.eq.s32.totalorder %v675, 1
        %vm678 = vcmp.eq.s32.totalorder %v676, 1
        %680 = vset.pattern.permute.xlu0 0
        %681 = vperm.xlu0 %680, %v655
        %v682 = vpop.permute.xlu0 %681
        %v684 = vsel %vm677, %v673, %v682
        %v685 = vsel %vm678, %v672, %v682
        %v686 = vld [vmem:[#allocation5] sm:$0xff]
        %vm687 = vcmp.ge.s32.totalorder %v549, 0
        %vm688 = vcmp.le.s32.totalorder %v549, 15
        %vm689 = vmand %vm687, %vm688
        %vm690 = vmand %vm659, %vm689
        %691 = vrot.lane.b32.xlu0 %v653, 16
        %v692 = vpop.permute.xlu0 %691
        %693 = vrot.lane.b32.xlu0 %v654, 16
        %v694 = vpop.permute.xlu0 %693
        %vm695 = vcmp.lt.s32.totalorder %v670, 16
        %v696 = vsel %vm695, %v692, %v694
        %v697 = vsel %vm695, %v694, %v692
        %v698 = vsel %vm690, 1, 0
        %v699 = vperm.slane %v698, 0
        %v700 = vperm.slane %v698, 1
        %vm701 = vcmp.eq.s32.totalorder %v699, 1
        %vm702 = vcmp.eq.s32.totalorder %v700, 1
        %v703 = vsel %vm701, %v697, %v682
        %v704 = vsel %vm702, %v696, %v682
        %s705 = scalar_lea.vmem [#allocation5], 8
        %v706 = vld [vmem:[%s705] sm:$0xff]
        %v708 = vsel %vm557, %v706, 0
        %710 = vmatpush.msra.mxu0 0.0
        %711 = vmatpush.msra.mxu0 0.0
        %712 = vmatpush.msra.mxu0 0.0
        %713 = vmatpush.msra.mxu0 0.0
        %714 = vmatpush.msra.mxu0 0.0
        %715 = vmatpush.msra.mxu0 0.0
        %716 = vmatpush.msra.mxu0 0.0
        %717 = vmatpush.msra.mxu0 0.0
        %718 = vmatpush.msra.mxu0 0.0
        %719 = vmatpush.msra.mxu0 0.0
        %720 = vmatpush.msra.mxu0 0.0
        %721 = vmatpush.msra.mxu0 0.0
        %722 = vmatpush.msra.mxu0 0.0
        %723 = vmatpush.msra.mxu0 0.0
        %724 = vmatpush.msra.mxu0 0.0
        %725 = vmatpush.msra.mxu0 %v703
        %726 = vmatmul.f32.gmra.mxu0 %v708
        %v727 = vpop.f32.mrf.mxu0
        %v728 = vadd.f32 0.0, %v727
        %729 = vdwg.mxu0
        %730 = vmatpush.msra.mxu0 0.0
        %731 = vmatpush.msra.mxu0 0.0
        %732 = vmatpush.msra.mxu0 0.0
        %733 = vmatpush.msra.mxu0 0.0
        %734 = vmatpush.msra.mxu0 0.0
        %735 = vmatpush.msra.mxu0 0.0
        %736 = vmatpush.msra.mxu0 0.0
        %737 = vmatpush.msra.mxu0 0.0
        %738 = vmatpush.msra.mxu0 0.0
        %739 = vmatpush.msra.mxu0 0.0
        %740 = vmatpush.msra.mxu0 0.0
        %741 = vmatpush.msra.mxu0 0.0
        %742 = vmatpush.msra.mxu0 0.0
        %743 = vmatpush.msra.mxu0 0.0
        %744 = vmatpush.msra.mxu0 0.0
        %745 = vmatpush.msra.mxu0 %v704
        %746 = vmatmul.f32.gmra.mxu0 %v708
        %v747 = vpop.f32.mrf.mxu0
        %v748 = vadd.f32 0.0, %v747
        %749 = vdwg.mxu0
        %v751 = vsel %vm557, %v686, 0
        %753 = vmatpush.msra.mxu0 0.0
        %754 = vmatpush.msra.mxu0 0.0
        %755 = vmatpush.msra.mxu0 0.0
        %756 = vmatpush.msra.mxu0 0.0
        %757 = vmatpush.msra.mxu0 0.0
        %758 = vmatpush.msra.mxu0 0.0
        %759 = vmatpush.msra.mxu0 0.0
        %760 = vmatpush.msra.mxu0 0.0
        %761 = vmatpush.msra.mxu0 0.0
        %762 = vmatpush.msra.mxu0 0.0
        %763 = vmatpush.msra.mxu0 0.0
        %764 = vmatpush.msra.mxu0 0.0
        %765 = vmatpush.msra.mxu0 0.0
        %766 = vmatpush.msra.mxu0 0.0
        %767 = vmatpush.msra.mxu0 0.0
        %768 = vmatpush.msra.mxu0 %v684
        %769 = vmatmul.f32.gmra.mxu0 %v751
        %v770 = vpop.f32.mrf.mxu0
        %v771 = vadd.f32 %v728, %v770
        %772 = vdwg.mxu0
        %773 = vmatpush.msra.mxu0 0.0
        %774 = vmatpush.msra.mxu0 0.0
        %775 = vmatpush.msra.mxu0 0.0
        %776 = vmatpush.msra.mxu0 0.0
        %777 = vmatpush.msra.mxu0 0.0
        %778 = vmatpush.msra.mxu0 0.0
        %779 = vmatpush.msra.mxu0 0.0
        %780 = vmatpush.msra.mxu0 0.0
        %781 = vmatpush.msra.mxu0 0.0
        %782 = vmatpush.msra.mxu0 0.0
        %783 = vmatpush.msra.mxu0 0.0
        %784 = vmatpush.msra.mxu0 0.0
        %785 = vmatpush.msra.mxu0 0.0
        %786 = vmatpush.msra.mxu0 0.0
        %787 = vmatpush.msra.mxu0 0.0
        %788 = vmatpush.msra.mxu0 %v685
        %789 = vmatmul.f32.gmra.mxu0 %v751
        %v790 = vpop.f32.mrf.mxu0
        %v791 = vadd.f32 %v748, %v790
        %792 = vdwg.mxu0
        %v793 = vadd.s32 %v549, 1
        %vm794 = vcmp.ge.s32.totalorder %v793, 0
        %vm795 = vcmp.le.s32.totalorder %v793, 15
        %vm796 = vmand %vm794, %vm795
        %vm797 = vmand %vm659, %vm796
        %798 = vrot.lane.b32.xlu0 %v653, 15
        %v799 = vpop.permute.xlu0 %798
        %800 = vrot.lane.b32.xlu0 %v654, 15
        %v801 = vpop.permute.xlu0 %800
        %vm802 = vcmp.lt.s32.totalorder %v670, 15
        %v803 = vsel %vm802, %v799, %v801
        %v804 = vsel %vm802, %v801, %v799
        %v805 = vsel %vm797, 1, 0
        %v806 = vperm.slane %v805, 0
        %v807 = vperm.slane %v805, 1
        %vm808 = vcmp.eq.s32.totalorder %v806, 1
        %vm809 = vcmp.eq.s32.totalorder %v807, 1
        %v810 = vsel %vm808, %v804, %v682
        %v811 = vsel %vm809, %v803, %v682
        %s812 = scalar_lea.vmem [#allocation5], 16
        %v813 = vld [vmem:[%s812] sm:$0xff]
        %v815 = vsel %vm557, %v813, 0
        %817 = vmatpush.msra.mxu0 0.0
        %818 = vmatpush.msra.mxu0 0.0
        %819 = vmatpush.msra.mxu0 0.0
        %820 = vmatpush.msra.mxu0 0.0
        %821 = vmatpush.msra.mxu0 0.0
        %822 = vmatpush.msra.mxu0 0.0
        %823 = vmatpush.msra.mxu0 0.0
        %824 = vmatpush.msra.mxu0 0.0
        %825 = vmatpush.msra.mxu0 0.0
        %826 = vmatpush.msra.mxu0 0.0
        %827 = vmatpush.msra.mxu0 0.0
        %828 = vmatpush.msra.mxu0 0.0
        %829 = vmatpush.msra.mxu0 0.0
        %830 = vmatpush.msra.mxu0 0.0
        %831 = vmatpush.msra.mxu0 0.0
        %832 = vmatpush.msra.mxu0 %v810
        %833 = vmatmul.f32.gmra.mxu0 %v815
        %v834 = vpop.f32.mrf.mxu0
        %v835 = vadd.f32 0.0, %v834
        %836 = vdwg.mxu0
        %837 = vmatpush.msra.mxu0 0.0
        %838 = vmatpush.msra.mxu0 0.0
        %839 = vmatpush.msra.mxu0 0.0
        %840 = vmatpush.msra.mxu0 0.0
        %841 = vmatpush.msra.mxu0 0.0
        %842 = vmatpush.msra.mxu0 0.0
        %843 = vmatpush.msra.mxu0 0.0
        %844 = vmatpush.msra.mxu0 0.0
        %845 = vmatpush.msra.mxu0 0.0
        %846 = vmatpush.msra.mxu0 0.0
        %847 = vmatpush.msra.mxu0 0.0
        %848 = vmatpush.msra.mxu0 0.0
        %849 = vmatpush.msra.mxu0 0.0
        %850 = vmatpush.msra.mxu0 0.0
        %851 = vmatpush.msra.mxu0 0.0
        %852 = vmatpush.msra.mxu0 %v811
        %853 = vmatmul.f32.gmra.mxu0 %v815
        %v854 = vpop.f32.mrf.mxu0
        %v855 = vadd.f32 0.0, %v854
        %856 = vdwg.mxu0
        %v857 = vadd.f32 %v771, %v835
        %v858 = vadd.f32 %v791, %v855
        %vm859 = vcmp.ge.s32.totalorder %v548, 0
        %vm860 = vcmp.le.s32.totalorder %v548, 15
        %vm861 = vmand %vm859, %vm860
        %vm862 = vmand %vm861, %vm663
        %863 = vrot.lane.b32.xlu0 %v653, 1
        %v864 = vpop.permute.xlu0 %863
        %865 = vrot.lane.b32.xlu0 %v654, 1
        %v866 = vpop.permute.xlu0 %865
        %vm867 = vcmp.lt.s32.totalorder %v670, 1
        %v868 = vsel %vm867, %v864, %v866
        %v869 = vsel %vm867, %v866, %v864
        %v870 = vsel %vm862, 1, 0
        %v871 = vperm.slane %v870, 0
        %v872 = vperm.slane %v870, 1
        %vm873 = vcmp.eq.s32.totalorder %v871, 1
        %vm874 = vcmp.eq.s32.totalorder %v872, 1
        %v875 = vsel %vm873, %v869, %v682
        %v876 = vsel %vm874, %v868, %v682
        %s877 = scalar_lea.vmem [#allocation5], 24
        %v878 = vld [vmem:[%s877] sm:$0xff]
        %v880 = vsel %vm557, %v878, 0
        %882 = vmatpush.msra.mxu0 0.0
        %883 = vmatpush.msra.mxu0 0.0
        %884 = vmatpush.msra.mxu0 0.0
        %885 = vmatpush.msra.mxu0 0.0
        %886 = vmatpush.msra.mxu0 0.0
        %887 = vmatpush.msra.mxu0 0.0
        %888 = vmatpush.msra.mxu0 0.0
        %889 = vmatpush.msra.mxu0 0.0
        %890 = vmatpush.msra.mxu0 0.0
        %891 = vmatpush.msra.mxu0 0.0
        %892 = vmatpush.msra.mxu0 0.0
        %893 = vmatpush.msra.mxu0 0.0
        %894 = vmatpush.msra.mxu0 0.0
        %895 = vmatpush.msra.mxu0 0.0
        %896 = vmatpush.msra.mxu0 0.0
        %897 = vmatpush.msra.mxu0 %v875
        %898 = vmatmul.f32.gmra.mxu0 %v880
        %v899 = vpop.f32.mrf.mxu0
        %v900 = vadd.f32 0.0, %v899
        %901 = vdwg.mxu0
        %902 = vmatpush.msra.mxu0 0.0
        %903 = vmatpush.msra.mxu0 0.0
        %904 = vmatpush.msra.mxu0 0.0
        %905 = vmatpush.msra.mxu0 0.0
        %906 = vmatpush.msra.mxu0 0.0
        %907 = vmatpush.msra.mxu0 0.0
        %908 = vmatpush.msra.mxu0 0.0
        %909 = vmatpush.msra.mxu0 0.0
        %910 = vmatpush.msra.mxu0 0.0
        %911 = vmatpush.msra.mxu0 0.0
        %912 = vmatpush.msra.mxu0 0.0
        %913 = vmatpush.msra.mxu0 0.0
        %914 = vmatpush.msra.mxu0 0.0
        %915 = vmatpush.msra.mxu0 0.0
        %916 = vmatpush.msra.mxu0 0.0
        %917 = vmatpush.msra.mxu0 %v876
        %918 = vmatmul.f32.gmra.mxu0 %v880
        %v919 = vpop.f32.mrf.mxu0
        %v920 = vadd.f32 0.0, %v919
        %921 = vdwg.mxu0
        %v922 = vadd.f32 %v857, %v900
        %v923 = vadd.f32 %v858, %v920
        %vm924 = vmand %vm861, %vm689
        %v925 = vsel %vm924, 1, 0
        %v926 = vperm.slane %v925, 0
        %v927 = vperm.slane %v925, 1
        %vm928 = vcmp.eq.s32.totalorder %v926, 1
        %vm929 = vcmp.eq.s32.totalorder %v927, 1
        %v930 = vsel %vm928, %v653, %v682
        %v931 = vsel %vm929, %v654, %v682
        %s932 = scalar_lea.vmem [#allocation5], 32
        %v933 = vld [vmem:[%s932] sm:$0xff]
        %v935 = vsel %vm557, %v933, 0
        %937 = vmatpush.msra.mxu0 0.0
        %938 = vmatpush.msra.mxu0 0.0
        %939 = vmatpush.msra.mxu0 0.0
        %940 = vmatpush.msra.mxu0 0.0
        %941 = vmatpush.msra.mxu0 0.0
        %942 = vmatpush.msra.mxu0 0.0
        %943 = vmatpush.msra.mxu0 0.0
        %944 = vmatpush.msra.mxu0 0.0
        %945 = vmatpush.msra.mxu0 0.0
        %946 = vmatpush.msra.mxu0 0.0
        %947 = vmatpush.msra.mxu0 0.0
        %948 = vmatpush.msra.mxu0 0.0
        %949 = vmatpush.msra.mxu0 0.0
        %950 = vmatpush.msra.mxu0 0.0
        %951 = vmatpush.msra.mxu0 0.0
        %952 = vmatpush.msra.mxu0 %v930
        %953 = vmatmul.f32.gmra.mxu0 %v935
        %v954 = vpop.f32.mrf.mxu0
        %v955 = vadd.f32 0.0, %v954
        %956 = vdwg.mxu0
        %957 = vmatpush.msra.mxu0 0.0
        %958 = vmatpush.msra.mxu0 0.0
        %959 = vmatpush.msra.mxu0 0.0
        %960 = vmatpush.msra.mxu0 0.0
        %961 = vmatpush.msra.mxu0 0.0
        %962 = vmatpush.msra.mxu0 0.0
        %963 = vmatpush.msra.mxu0 0.0
        %964 = vmatpush.msra.mxu0 0.0
        %965 = vmatpush.msra.mxu0 0.0
        %966 = vmatpush.msra.mxu0 0.0
        %967 = vmatpush.msra.mxu0 0.0
        %968 = vmatpush.msra.mxu0 0.0
        %969 = vmatpush.msra.mxu0 0.0
        %970 = vmatpush.msra.mxu0 0.0
        %971 = vmatpush.msra.mxu0 0.0
        %972 = vmatpush.msra.mxu0 %v931
        %973 = vmatmul.f32.gmra.mxu0 %v935
        %v974 = vpop.f32.mrf.mxu0
        %v975 = vadd.f32 0.0, %v974
        %976 = vdwg.mxu0
        %v977 = vadd.f32 %v922, %v955
        %v978 = vadd.f32 %v923, %v975
        %vm979 = vmand %vm861, %vm796
        %980 = vrot.lane.b32.xlu0 %v653, 127
        %v981 = vpop.permute.xlu0 %980
        %982 = vrot.lane.b32.xlu0 %v654, 127
        %v983 = vpop.permute.xlu0 %982
        %vm984 = vcmp.lt.s32.totalorder %v670, 127
        %v985 = vsel %vm984, %v981, %v983
        %v986 = vsel %vm984, %v983, %v981
        %v987 = vsel %vm979, 1, 0
        %v988 = vperm.slane %v987, 0
        %v989 = vperm.slane %v987, 1
        %vm990 = vcmp.eq.s32.totalorder %v988, 1
        %vm991 = vcmp.eq.s32.totalorder %v989, 1
        %v992 = vsel %vm990, %v985, %v682
        %v993 = vsel %vm991, %v986, %v682
        %s994 = scalar_lea.vmem [#allocation5], 40
        %v995 = vld [vmem:[%s994] sm:$0xff]
        %v997 = vsel %vm557, %v995, 0
        %999 = vmatpush.msra.mxu0 0.0
        %1000 = vmatpush.msra.mxu0 0.0
        %1001 = vmatpush.msra.mxu0 0.0
        %1002 = vmatpush.msra.mxu0 0.0
        %1003 = vmatpush.msra.mxu0 0.0
        %1004 = vmatpush.msra.mxu0 0.0
        %1005 = vmatpush.msra.mxu0 0.0
        %1006 = vmatpush.msra.mxu0 0.0
        %1007 = vmatpush.msra.mxu0 0.0
        %1008 = vmatpush.msra.mxu0 0.0
        %1009 = vmatpush.msra.mxu0 0.0
        %1010 = vmatpush.msra.mxu0 0.0
        %1011 = vmatpush.msra.mxu0 0.0
        %1012 = vmatpush.msra.mxu0 0.0
        %1013 = vmatpush.msra.mxu0 0.0
        %1014 = vmatpush.msra.mxu0 %v992
        %1015 = vmatmul.f32.gmra.mxu0 %v997
        %v1016 = vpop.f32.mrf.mxu0
        %v1017 = vadd.f32 0.0, %v1016
        %1018 = vdwg.mxu0
        %1019 = vmatpush.msra.mxu0 0.0
        %1020 = vmatpush.msra.mxu0 0.0
        %1021 = vmatpush.msra.mxu0 0.0
        %1022 = vmatpush.msra.mxu0 0.0
        %1023 = vmatpush.msra.mxu0 0.0
        %1024 = vmatpush.msra.mxu0 0.0
        %1025 = vmatpush.msra.mxu0 0.0
        %1026 = vmatpush.msra.mxu0 0.0
        %1027 = vmatpush.msra.mxu0 0.0
        %1028 = vmatpush.msra.mxu0 0.0
        %1029 = vmatpush.msra.mxu0 0.0
        %1030 = vmatpush.msra.mxu0 0.0
        %1031 = vmatpush.msra.mxu0 0.0
        %1032 = vmatpush.msra.mxu0 0.0
        %1033 = vmatpush.msra.mxu0 0.0
        %1034 = vmatpush.msra.mxu0 %v993
        %1035 = vmatmul.f32.gmra.mxu0 %v997
        %v1036 = vpop.f32.mrf.mxu0
        %v1037 = vadd.f32 0.0, %v1036
        %1038 = vdwg.mxu0
        %v1039 = vadd.f32 %v977, %v1017
        %v1040 = vadd.f32 %v978, %v1037
        %v1041 = vadd.s32 %v548, 1
        %vm1042 = vcmp.ge.s32.totalorder %v1041, 0
        %vm1043 = vcmp.le.s32.totalorder %v1041, 15
        %vm1044 = vmand %vm1042, %vm1043
        %vm1045 = vmand %vm1044, %vm663
        %1046 = vrot.lane.b32.xlu0 %v653, 113
        %v1047 = vpop.permute.xlu0 %1046
        %1048 = vrot.lane.b32.xlu0 %v654, 113
        %v1049 = vpop.permute.xlu0 %1048
        %vm1050 = vcmp.lt.s32.totalorder %v670, 113
        %v1051 = vsel %vm1050, %v1047, %v1049
        %v1052 = vsel %vm1050, %v1049, %v1047
        %v1053 = vsel %vm1045, 1, 0
        %v1054 = vperm.slane %v1053, 0
        %v1055 = vperm.slane %v1053, 1
        %vm1056 = vcmp.eq.s32.totalorder %v1054, 1
        %vm1057 = vcmp.eq.s32.totalorder %v1055, 1
        %v1058 = vsel %vm1056, %v1051, %v682
        %v1059 = vsel %vm1057, %v1052, %v682
        %s1060 = scalar_lea.vmem [#allocation5], 48
        %v1061 = vld [vmem:[%s1060] sm:$0xff]
        %v1063 = vsel %vm557, %v1061, 0
        %1065 = vmatpush.msra.mxu0 0.0
        %1066 = vmatpush.msra.mxu0 0.0
        %1067 = vmatpush.msra.mxu0 0.0
        %1068 = vmatpush.msra.mxu0 0.0
        %1069 = vmatpush.msra.mxu0 0.0
        %1070 = vmatpush.msra.mxu0 0.0
        %1071 = vmatpush.msra.mxu0 0.0
        %1072 = vmatpush.msra.mxu0 0.0
        %1073 = vmatpush.msra.mxu0 0.0
        %1074 = vmatpush.msra.mxu0 0.0
        %1075 = vmatpush.msra.mxu0 0.0
        %1076 = vmatpush.msra.mxu0 0.0
        %1077 = vmatpush.msra.mxu0 0.0
        %1078 = vmatpush.msra.mxu0 0.0
        %1079 = vmatpush.msra.mxu0 0.0
        %1080 = vmatpush.msra.mxu0 %v1058
        %1081 = vmatmul.f32.gmra.mxu0 %v1063
        %v1082 = vpop.f32.mrf.mxu0
        %v1083 = vadd.f32 0.0, %v1082
        %1084 = vdwg.mxu0
        %1085 = vmatpush.msra.mxu0 0.0
        %1086 = vmatpush.msra.mxu0 0.0
        %1087 = vmatpush.msra.mxu0 0.0
        %1088 = vmatpush.msra.mxu0 0.0
        %1089 = vmatpush.msra.mxu0 0.0
        %1090 = vmatpush.msra.mxu0 0.0
        %1091 = vmatpush.msra.mxu0 0.0
        %1092 = vmatpush.msra.mxu0 0.0
        %1093 = vmatpush.msra.mxu0 0.0
        %1094 = vmatpush.msra.mxu0 0.0
        %1095 = vmatpush.msra.mxu0 0.0
        %1096 = vmatpush.msra.mxu0 0.0
        %1097 = vmatpush.msra.mxu0 0.0
        %1098 = vmatpush.msra.mxu0 0.0
        %1099 = vmatpush.msra.mxu0 0.0
        %1100 = vmatpush.msra.mxu0 %v1059
        %1101 = vmatmul.f32.gmra.mxu0 %v1063
        %v1102 = vpop.f32.mrf.mxu0
        %v1103 = vadd.f32 0.0, %v1102
        %1104 = vdwg.mxu0
        %v1105 = vadd.f32 %v1039, %v1083
        %v1106 = vadd.f32 %v1040, %v1103
        %vm1107 = vmand %vm1044, %vm689
        %1108 = vrot.lane.b32.xlu0 %v653, 112
        %v1109 = vpop.permute.xlu0 %1108
        %1110 = vrot.lane.b32.xlu0 %v654, 112
        %v1111 = vpop.permute.xlu0 %1110
        %vm1112 = vcmp.lt.s32.totalorder %v670, 112
        %v1113 = vsel %vm1112, %v1109, %v1111
        %v1114 = vsel %vm1112, %v1111, %v1109
        %v1115 = vsel %vm1107, 1, 0
        %v1116 = vperm.slane %v1115, 0
        %v1117 = vperm.slane %v1115, 1
        %vm1118 = vcmp.eq.s32.totalorder %v1116, 1
        %vm1119 = vcmp.eq.s32.totalorder %v1117, 1
        %v1120 = vsel %vm1118, %v1113, %v682
        %v1121 = vsel %vm1119, %v1114, %v682
        %s1122 = scalar_lea.vmem [#allocation5], 56
        %v1123 = vld [vmem:[%s1122] sm:$0xff]
        %v1125 = vsel %vm557, %v1123, 0
        %1127 = vmatpush.msra.mxu0 0.0
        %1128 = vmatpush.msra.mxu0 0.0
        %1129 = vmatpush.msra.mxu0 0.0
        %1130 = vmatpush.msra.mxu0 0.0
        %1131 = vmatpush.msra.mxu0 0.0
        %1132 = vmatpush.msra.mxu0 0.0
        %1133 = vmatpush.msra.mxu0 0.0
        %1134 = vmatpush.msra.mxu0 0.0
        %1135 = vmatpush.msra.mxu0 0.0
        %1136 = vmatpush.msra.mxu0 0.0
        %1137 = vmatpush.msra.mxu0 0.0
        %1138 = vmatpush.msra.mxu0 0.0
        %1139 = vmatpush.msra.mxu0 0.0
        %1140 = vmatpush.msra.mxu0 0.0
        %1141 = vmatpush.msra.mxu0 0.0
        %1142 = vmatpush.msra.mxu0 %v1120
        %1143 = vmatmul.f32.gmra.mxu0 %v1125
        %v1144 = vpop.f32.mrf.mxu0
        %v1145 = vadd.f32 0.0, %v1144
        %1146 = vdwg.mxu0
        %1147 = vmatpush.msra.mxu0 0.0
        %1148 = vmatpush.msra.mxu0 0.0
        %1149 = vmatpush.msra.mxu0 0.0
        %1150 = vmatpush.msra.mxu0 0.0
        %1151 = vmatpush.msra.mxu0 0.0
        %1152 = vmatpush.msra.mxu0 0.0
        %1153 = vmatpush.msra.mxu0 0.0
        %1154 = vmatpush.msra.mxu0 0.0
        %1155 = vmatpush.msra.mxu0 0.0
        %1156 = vmatpush.msra.mxu0 0.0
        %1157 = vmatpush.msra.mxu0 0.0
        %1158 = vmatpush.msra.mxu0 0.0
        %1159 = vmatpush.msra.mxu0 0.0
        %1160 = vmatpush.msra.mxu0 0.0
        %1161 = vmatpush.msra.mxu0 0.0
        %1162 = vmatpush.msra.mxu0 %v1121
        %1163 = vmatmul.f32.gmra.mxu0 %v1125
        %v1164 = vpop.f32.mrf.mxu0
        %v1165 = vadd.f32 0.0, %v1164
        %1166 = vdwg.mxu0
        %v1167 = vadd.f32 %v1105, %v1145
        %v1168 = vadd.f32 %v1106, %v1165
        %vm1169 = vmand %vm1044, %vm796
        %1170 = vrot.lane.b32.xlu0 %v653, 111
        %v1171 = vpop.permute.xlu0 %1170
        %1172 = vrot.lane.b32.xlu0 %v654, 111
        %v1173 = vpop.permute.xlu0 %1172
        %vm1174 = vcmp.lt.s32.totalorder %v670, 111
        %v1175 = vsel %vm1174, %v1171, %v1173
        %v1176 = vsel %vm1174, %v1173, %v1171
        %v1177 = vsel %vm1169, 1, 0
        %v1178 = vperm.slane %v1177, 0
        %v1179 = vperm.slane %v1177, 1
        %vm1180 = vcmp.eq.s32.totalorder %v1178, 1
        %vm1181 = vcmp.eq.s32.totalorder %v1179, 1
        %v1182 = vsel %vm1180, %v1175, %v682
        %v1183 = vsel %vm1181, %v1176, %v682
        %s1184 = scalar_lea.vmem [#allocation5], 64
        %v1185 = vld [vmem:[%s1184] sm:$0xff]
        %v1187 = vsel %vm557, %v1185, 0
        %1189 = vmatpush.msra.mxu0 0.0
        %1190 = vmatpush.msra.mxu0 0.0
        %1191 = vmatpush.msra.mxu0 0.0
        %1192 = vmatpush.msra.mxu0 0.0
        %1193 = vmatpush.msra.mxu0 0.0
        %1194 = vmatpush.msra.mxu0 0.0
        %1195 = vmatpush.msra.mxu0 0.0
        %1196 = vmatpush.msra.mxu0 0.0
        %1197 = vmatpush.msra.mxu0 0.0
        %1198 = vmatpush.msra.mxu0 0.0
        %1199 = vmatpush.msra.mxu0 0.0
        %1200 = vmatpush.msra.mxu0 0.0
        %1201 = vmatpush.msra.mxu0 0.0
        %1202 = vmatpush.msra.mxu0 0.0
        %1203 = vmatpush.msra.mxu0 0.0
        %1204 = vmatpush.msra.mxu0 %v1182
        %1205 = vmatmul.f32.gmra.mxu0 %v1187
        %v1206 = vpop.f32.mrf.mxu0
        %v1207 = vadd.f32 0.0, %v1206
        %1208 = vdwg.mxu0
        %1209 = vmatpush.msra.mxu0 0.0
        %1210 = vmatpush.msra.mxu0 0.0
        %1211 = vmatpush.msra.mxu0 0.0
        %1212 = vmatpush.msra.mxu0 0.0
        %1213 = vmatpush.msra.mxu0 0.0
        %1214 = vmatpush.msra.mxu0 0.0
        %1215 = vmatpush.msra.mxu0 0.0
        %1216 = vmatpush.msra.mxu0 0.0
        %1217 = vmatpush.msra.mxu0 0.0
        %1218 = vmatpush.msra.mxu0 0.0
        %1219 = vmatpush.msra.mxu0 0.0
        %1220 = vmatpush.msra.mxu0 0.0
        %1221 = vmatpush.msra.mxu0 0.0
        %1222 = vmatpush.msra.mxu0 0.0
        %1223 = vmatpush.msra.mxu0 0.0
        %1224 = vmatpush.msra.mxu0 %v1183
        %1225 = vmatmul.f32.gmra.mxu0 %v1187
        %v1226 = vpop.f32.mrf.mxu0
        %v1227 = vadd.f32 0.0, %v1226
        %1228 = vdwg.mxu0
        %v1229 = vadd.f32 %v1167, %v1207
        %v1230 = vadd.f32 %v1168, %v1227
        %v1231 = vld [vmem:[%s8] sm:$0xff]
        %1233 = vset.pattern.permute.xlu0 0
        %1234 = vperm.xlu0 %1233, %v1231
        %v1235 = vpop.permute.xlu0 %1234
        %v1237 = vadd.f32 %v1229, %v1235
        %v1238 = vadd.f32 %v1230, %v1235
        %v1239 = vmax.f32 %v1237, 0.0
        %v1240 = vmax.f32 %v1238, 0.0
        %v1241 = vld [vmem:[%s9] sm:$0xff]
        %v1242 = vld [vmem:[%s10] sm:$0xff]
        %1244 = vset.pattern.permute.xlu0 0
        %1245 = vperm.xlu0 %1244, %v1242
        %v1246 = vpop.permute.xlu0 %1245
        %v1249 = vsel %vm557, %v1241, 0
        %1251 = vmatpush.msra.mxu0 0.0
        %1252 = vmatpush.msra.mxu0 0.0
        %1253 = vmatpush.msra.mxu0 0.0
        %1254 = vmatpush.msra.mxu0 0.0
        %1255 = vmatpush.msra.mxu0 0.0
        %1256 = vmatpush.msra.mxu0 0.0
        %1257 = vmatpush.msra.mxu0 0.0
        %1258 = vmatpush.msra.mxu0 0.0
        %1259 = vmatpush.msra.mxu0 0.0
        %1260 = vmatpush.msra.mxu0 0.0
        %1261 = vmatpush.msra.mxu0 0.0
        %1262 = vmatpush.msra.mxu0 0.0
        %1263 = vmatpush.msra.mxu0 0.0
        %1264 = vmatpush.msra.mxu0 0.0
        %1265 = vmatpush.msra.mxu0 0.0
        %1266 = vmatpush.msra.mxu0 %v546
        %1267 = vmatmul.f32.gmra.mxu0 %v1249
        %v1268 = vpop.f32.mrf.mxu0
        %v1269 = vadd.f32 %v1246, %v1268
        %1270 = vdwg.mxu0
        %1271 = vmatpush.msra.mxu0 0.0
        %1272 = vmatpush.msra.mxu0 0.0
        %1273 = vmatpush.msra.mxu0 0.0
        %1274 = vmatpush.msra.mxu0 0.0
        %1275 = vmatpush.msra.mxu0 0.0
        %1276 = vmatpush.msra.mxu0 0.0
        %1277 = vmatpush.msra.mxu0 0.0
        %1278 = vmatpush.msra.mxu0 0.0
        %1279 = vmatpush.msra.mxu0 0.0
        %1280 = vmatpush.msra.mxu0 0.0
        %1281 = vmatpush.msra.mxu0 0.0
        %1282 = vmatpush.msra.mxu0 0.0
        %1283 = vmatpush.msra.mxu0 0.0
        %1284 = vmatpush.msra.mxu0 0.0
        %1285 = vmatpush.msra.mxu0 0.0
        %1286 = vmatpush.msra.mxu0 %v547
        %1287 = vmatmul.f32.gmra.mxu0 %v1249
        %v1288 = vpop.f32.mrf.mxu0
        %v1289 = vadd.f32 %v1246, %v1288
        %1290 = vdwg.mxu0
        %v1291 = vmax.f32 %v1269, 0.0
        %v1292 = vmax.f32 %v1289, 0.0
        %v1293 = vmax.f32 %v1242, 0.0
        %v1294 = vadd.s32 %v548, 4294967294
        %vm1295 = vcmp.ge.s32.totalorder %v1294, 0
        %vm1296 = vcmp.le.s32.totalorder %v1294, 15
        %vm1297 = vmand %vm1295, %vm1296
        %vm1298 = vcmp.ge.s32.totalorder %v1294, 4294967295
        %vm1299 = vcmp.le.s32.totalorder %v1294, 16
        %vm1300 = vmand %vm1298, %vm1299
        %v1301 = vadd.s32 %v549, 4294967294
        %vm1302 = vcmp.ge.s32.totalorder %v1301, 0
        %vm1303 = vcmp.le.s32.totalorder %v1301, 15
        %vm1304 = vmand %vm1302, %vm1303
        %vm1305 = vmand %vm1297, %vm1304
        %vm1306 = vcmp.ge.s32.totalorder %v1301, 4294967295
        %vm1307 = vcmp.le.s32.totalorder %v1301, 16
        %vm1308 = vmand %vm1306, %vm1307
        %vm1309 = vmand %vm1300, %vm1308
        %1310 = vrot.lane.b32.xlu0 %v1291, 34
        %v1311 = vpop.permute.xlu0 %1310
        %1312 = vrot.lane.b32.xlu0 %v1292, 34
        %v1313 = vpop.permute.xlu0 %1312
        %vm1314 = vcmp.lt.s32.totalorder %v670, 34
        %v1315 = vsel %vm1314, %v1311, %v1313
        %v1316 = vsel %vm1314, %v1313, %v1311
        %v1317 = vsel %vm1309, 1, 0
        %v1318 = vperm.slane %v1317, 0
        %v1319 = vperm.slane %v1317, 1
        %vm1320 = vcmp.eq.s32.totalorder %v1318, 1
        %vm1321 = vcmp.eq.s32.totalorder %v1319, 1
        %1323 = vset.pattern.permute.xlu0 0
        %1324 = vperm.xlu0 %1323, %v1293
        %v1325 = vpop.permute.xlu0 %1324
        %v1327 = vsel %vm1320, %v1325, 0.0
        %v1328 = vsel %vm1321, %v1325, 0.0
        %v1329 = vsel %vm1305, 1, 0
        %v1330 = vperm.slane %v1329, 0
        %v1331 = vperm.slane %v1329, 1
        %vm1332 = vcmp.eq.s32.totalorder %v1330, 1
        %vm1333 = vcmp.eq.s32.totalorder %v1331, 1
        %v1334 = vsel %vm1332, %v1316, %v1327
        %v1335 = vsel %vm1333, %v1315, %v1328
        %v1336 = vld [vmem:[#allocation7] sm:$0xff]
        %vm1337 = vmand %vm1297, %vm663
        %vm1338 = vcmp.ge.s32.totalorder %v660, 4294967295
        %vm1339 = vcmp.le.s32.totalorder %v660, 16
        %vm1340 = vmand %vm1338, %vm1339
        %vm1341 = vmand %vm1300, %vm1340
        %1342 = vrot.lane.b32.xlu0 %v1291, 33
        %v1343 = vpop.permute.xlu0 %1342
        %1344 = vrot.lane.b32.xlu0 %v1292, 33
        %v1345 = vpop.permute.xlu0 %1344
        %vm1346 = vcmp.lt.s32.totalorder %v670, 33
        %v1347 = vsel %vm1346, %v1343, %v1345
        %v1348 = vsel %vm1346, %v1345, %v1343
        %v1349 = vsel %vm1341, 1, 0
        %v1350 = vperm.slane %v1349, 0
        %v1351 = vperm.slane %v1349, 1
        %vm1352 = vcmp.eq.s32.totalorder %v1350, 1
        %vm1353 = vcmp.eq.s32.totalorder %v1351, 1
        %v1354 = vsel %vm1352, %v1325, 0.0
        %v1355 = vsel %vm1353, %v1325, 0.0
        %v1356 = vsel %vm1337, 1, 0
        %v1357 = vperm.slane %v1356, 0
        %v1358 = vperm.slane %v1356, 1
        %vm1359 = vcmp.eq.s32.totalorder %v1357, 1
        %vm1360 = vcmp.eq.s32.totalorder %v1358, 1
        %v1361 = vsel %vm1359, %v1348, %v1354
        %v1362 = vsel %vm1360, %v1347, %v1355
        %s1363 = scalar_lea.vmem [#allocation7], 8
        %v1364 = vld [vmem:[%s1363] sm:$0xff]
        %v1366 = vsel %vm557, %v1364, 0
        %1368 = vmatpush.msra.mxu0 0.0
        %1369 = vmatpush.msra.mxu0 0.0
        %1370 = vmatpush.msra.mxu0 0.0
        %1371 = vmatpush.msra.mxu0 0.0
        %1372 = vmatpush.msra.mxu0 0.0
        %1373 = vmatpush.msra.mxu0 0.0
        %1374 = vmatpush.msra.mxu0 0.0
        %1375 = vmatpush.msra.mxu0 0.0
        %1376 = vmatpush.msra.mxu0 0.0
        %1377 = vmatpush.msra.mxu0 0.0
        %1378 = vmatpush.msra.mxu0 0.0
        %1379 = vmatpush.msra.mxu0 0.0
        %1380 = vmatpush.msra.mxu0 0.0
        %1381 = vmatpush.msra.mxu0 0.0
        %1382 = vmatpush.msra.mxu0 0.0
        %1383 = vmatpush.msra.mxu0 %v1361
        %1384 = vmatmul.f32.gmra.mxu0 %v1366
        %v1385 = vpop.f32.mrf.mxu0
        %v1386 = vadd.f32 0.0, %v1385
        %1387 = vdwg.mxu0
        %1388 = vmatpush.msra.mxu0 0.0
        %1389 = vmatpush.msra.mxu0 0.0
        %1390 = vmatpush.msra.mxu0 0.0
        %1391 = vmatpush.msra.mxu0 0.0
        %1392 = vmatpush.msra.mxu0 0.0
        %1393 = vmatpush.msra.mxu0 0.0
        %1394 = vmatpush.msra.mxu0 0.0
        %1395 = vmatpush.msra.mxu0 0.0
        %1396 = vmatpush.msra.mxu0 0.0
        %1397 = vmatpush.msra.mxu0 0.0
        %1398 = vmatpush.msra.mxu0 0.0
        %1399 = vmatpush.msra.mxu0 0.0
        %1400 = vmatpush.msra.mxu0 0.0
        %1401 = vmatpush.msra.mxu0 0.0
        %1402 = vmatpush.msra.mxu0 0.0
        %1403 = vmatpush.msra.mxu0 %v1362
        %1404 = vmatmul.f32.gmra.mxu0 %v1366
        %v1405 = vpop.f32.mrf.mxu0
        %v1406 = vadd.f32 0.0, %v1405
        %1407 = vdwg.mxu0
        %v1409 = vsel %vm557, %v1336, 0
        %1411 = vmatpush.msra.mxu0 0.0
        %1412 = vmatpush.msra.mxu0 0.0
        %1413 = vmatpush.msra.mxu0 0.0
        %1414 = vmatpush.msra.mxu0 0.0
        %1415 = vmatpush.msra.mxu0 0.0
        %1416 = vmatpush.msra.mxu0 0.0
        %1417 = vmatpush.msra.mxu0 0.0
        %1418 = vmatpush.msra.mxu0 0.0
        %1419 = vmatpush.msra.mxu0 0.0
        %1420 = vmatpush.msra.mxu0 0.0
        %1421 = vmatpush.msra.mxu0 0.0
        %1422 = vmatpush.msra.mxu0 0.0
        %1423 = vmatpush.msra.mxu0 0.0
        %1424 = vmatpush.msra.mxu0 0.0
        %1425 = vmatpush.msra.mxu0 0.0
        %1426 = vmatpush.msra.mxu0 %v1334
        %1427 = vmatmul.f32.gmra.mxu0 %v1409
        %v1428 = vpop.f32.mrf.mxu0
        %v1429 = vadd.f32 %v1386, %v1428
        %1430 = vdwg.mxu0
        %1431 = vmatpush.msra.mxu0 0.0
        %1432 = vmatpush.msra.mxu0 0.0
        %1433 = vmatpush.msra.mxu0 0.0
        %1434 = vmatpush.msra.mxu0 0.0
        %1435 = vmatpush.msra.mxu0 0.0
        %1436 = vmatpush.msra.mxu0 0.0
        %1437 = vmatpush.msra.mxu0 0.0
        %1438 = vmatpush.msra.mxu0 0.0
        %1439 = vmatpush.msra.mxu0 0.0
        %1440 = vmatpush.msra.mxu0 0.0
        %1441 = vmatpush.msra.mxu0 0.0
        %1442 = vmatpush.msra.mxu0 0.0
        %1443 = vmatpush.msra.mxu0 0.0
        %1444 = vmatpush.msra.mxu0 0.0
        %1445 = vmatpush.msra.mxu0 0.0
        %1446 = vmatpush.msra.mxu0 %v1335
        %1447 = vmatmul.f32.gmra.mxu0 %v1409
        %v1448 = vpop.f32.mrf.mxu0
        %v1449 = vadd.f32 %v1406, %v1448
        %1450 = vdwg.mxu0
        %vm1451 = vmand %vm1297, %vm689
        %vm1452 = vcmp.ge.s32.totalorder %v549, 4294967295
        %vm1453 = vcmp.le.s32.totalorder %v549, 16
        %vm1454 = vmand %vm1452, %vm1453
        %vm1455 = vmand %vm1300, %vm1454
        %1456 = vrot.lane.b32.xlu0 %v1291, 32
        %v1457 = vpop.permute.xlu0 %1456
        %1458 = vrot.lane.b32.xlu0 %v1292, 32
        %v1459 = vpop.permute.xlu0 %1458
        %vm1460 = vcmp.lt.s32.totalorder %v670, 32
        %v1461 = vsel %vm1460, %v1457, %v1459
        %v1462 = vsel %vm1460, %v1459, %v1457
        %v1463 = vsel %vm1455, 1, 0
        %v1464 = vperm.slane %v1463, 0
        %v1465 = vperm.slane %v1463, 1
        %vm1466 = vcmp.eq.s32.totalorder %v1464, 1
        %vm1467 = vcmp.eq.s32.totalorder %v1465, 1
        %v1468 = vsel %vm1466, %v1325, 0.0
        %v1469 = vsel %vm1467, %v1325, 0.0
        %v1470 = vsel %vm1451, 1, 0
        %v1471 = vperm.slane %v1470, 0
        %v1472 = vperm.slane %v1470, 1
        %vm1473 = vcmp.eq.s32.totalorder %v1471, 1
        %vm1474 = vcmp.eq.s32.totalorder %v1472, 1
        %v1475 = vsel %vm1473, %v1462, %v1468
        %v1476 = vsel %vm1474, %v1461, %v1469
        %s1477 = scalar_lea.vmem [#allocation7], 16
        %v1478 = vld [vmem:[%s1477] sm:$0xff]
        %v1480 = vsel %vm557, %v1478, 0
        %1482 = vmatpush.msra.mxu0 0.0
        %1483 = vmatpush.msra.mxu0 0.0
        %1484 = vmatpush.msra.mxu0 0.0
        %1485 = vmatpush.msra.mxu0 0.0
        %1486 = vmatpush.msra.mxu0 0.0
        %1487 = vmatpush.msra.mxu0 0.0
        %1488 = vmatpush.msra.mxu0 0.0
        %1489 = vmatpush.msra.mxu0 0.0
        %1490 = vmatpush.msra.mxu0 0.0
        %1491 = vmatpush.msra.mxu0 0.0
        %1492 = vmatpush.msra.mxu0 0.0
        %1493 = vmatpush.msra.mxu0 0.0
        %1494 = vmatpush.msra.mxu0 0.0
        %1495 = vmatpush.msra.mxu0 0.0
        %1496 = vmatpush.msra.mxu0 0.0
        %1497 = vmatpush.msra.mxu0 %v1475
        %1498 = vmatmul.f32.gmra.mxu0 %v1480
        %v1499 = vpop.f32.mrf.mxu0
        %v1500 = vadd.f32 0.0, %v1499
        %1501 = vdwg.mxu0
        %1502 = vmatpush.msra.mxu0 0.0
        %1503 = vmatpush.msra.mxu0 0.0
        %1504 = vmatpush.msra.mxu0 0.0
        %1505 = vmatpush.msra.mxu0 0.0
        %1506 = vmatpush.msra.mxu0 0.0
        %1507 = vmatpush.msra.mxu0 0.0
        %1508 = vmatpush.msra.mxu0 0.0
        %1509 = vmatpush.msra.mxu0 0.0
        %1510 = vmatpush.msra.mxu0 0.0
        %1511 = vmatpush.msra.mxu0 0.0
        %1512 = vmatpush.msra.mxu0 0.0
        %1513 = vmatpush.msra.mxu0 0.0
        %1514 = vmatpush.msra.mxu0 0.0
        %1515 = vmatpush.msra.mxu0 0.0
        %1516 = vmatpush.msra.mxu0 0.0
        %1517 = vmatpush.msra.mxu0 %v1476
        %1518 = vmatmul.f32.gmra.mxu0 %v1480
        %v1519 = vpop.f32.mrf.mxu0
        %v1520 = vadd.f32 0.0, %v1519
        %1521 = vdwg.mxu0
        %v1522 = vadd.f32 %v1429, %v1500
        %v1523 = vadd.f32 %v1449, %v1520
        %vm1524 = vmand %vm1297, %vm796
        %vm1525 = vcmp.ge.s32.totalorder %v793, 4294967295
        %vm1526 = vcmp.le.s32.totalorder %v793, 16
        %vm1527 = vmand %vm1525, %vm1526
        %vm1528 = vmand %vm1300, %vm1527
        %1529 = vrot.lane.b32.xlu0 %v1291, 31
        %v1530 = vpop.permute.xlu0 %1529
        %1531 = vrot.lane.b32.xlu0 %v1292, 31
        %v1532 = vpop.permute.xlu0 %1531
        %vm1533 = vcmp.lt.s32.totalorder %v670, 31
        %v1534 = vsel %vm1533, %v1530, %v1532
        %v1535 = vsel %vm1533, %v1532, %v1530
        %v1536 = vsel %vm1528, 1, 0
        %v1537 = vperm.slane %v1536, 0
        %v1538 = vperm.slane %v1536, 1
        %vm1539 = vcmp.eq.s32.totalorder %v1537, 1
        %vm1540 = vcmp.eq.s32.totalorder %v1538, 1
        %v1541 = vsel %vm1539, %v1325, 0.0
        %v1542 = vsel %vm1540, %v1325, 0.0
        %v1543 = vsel %vm1524, 1, 0
        %v1544 = vperm.slane %v1543, 0
        %v1545 = vperm.slane %v1543, 1
        %vm1546 = vcmp.eq.s32.totalorder %v1544, 1
        %vm1547 = vcmp.eq.s32.totalorder %v1545, 1
        %v1548 = vsel %vm1546, %v1535, %v1541
        %v1549 = vsel %vm1547, %v1534, %v1542
        %s1550 = scalar_lea.vmem [#allocation7], 24
        %v1551 = vld [vmem:[%s1550] sm:$0xff]
        %v1553 = vsel %vm557, %v1551, 0
        %1555 = vmatpush.msra.mxu0 0.0
        %1556 = vmatpush.msra.mxu0 0.0
        %1557 = vmatpush.msra.mxu0 0.0
        %1558 = vmatpush.msra.mxu0 0.0
        %1559 = vmatpush.msra.mxu0 0.0
        %1560 = vmatpush.msra.mxu0 0.0
        %1561 = vmatpush.msra.mxu0 0.0
        %1562 = vmatpush.msra.mxu0 0.0
        %1563 = vmatpush.msra.mxu0 0.0
        %1564 = vmatpush.msra.mxu0 0.0
        %1565 = vmatpush.msra.mxu0 0.0
        %1566 = vmatpush.msra.mxu0 0.0
        %1567 = vmatpush.msra.mxu0 0.0
        %1568 = vmatpush.msra.mxu0 0.0
        %1569 = vmatpush.msra.mxu0 0.0
        %1570 = vmatpush.msra.mxu0 %v1548
        %1571 = vmatmul.f32.gmra.mxu0 %v1553
        %v1572 = vpop.f32.mrf.mxu0
        %v1573 = vadd.f32 0.0, %v1572
        %1574 = vdwg.mxu0
        %1575 = vmatpush.msra.mxu0 0.0
        %1576 = vmatpush.msra.mxu0 0.0
        %1577 = vmatpush.msra.mxu0 0.0
        %1578 = vmatpush.msra.mxu0 0.0
        %1579 = vmatpush.msra.mxu0 0.0
        %1580 = vmatpush.msra.mxu0 0.0
        %1581 = vmatpush.msra.mxu0 0.0
        %1582 = vmatpush.msra.mxu0 0.0
        %1583 = vmatpush.msra.mxu0 0.0
        %1584 = vmatpush.msra.mxu0 0.0
        %1585 = vmatpush.msra.mxu0 0.0
        %1586 = vmatpush.msra.mxu0 0.0
        %1587 = vmatpush.msra.mxu0 0.0
        %1588 = vmatpush.msra.mxu0 0.0
        %1589 = vmatpush.msra.mxu0 0.0
        %1590 = vmatpush.msra.mxu0 %v1549
        %1591 = vmatmul.f32.gmra.mxu0 %v1553
        %v1592 = vpop.f32.mrf.mxu0
        %v1593 = vadd.f32 0.0, %v1592
        %1594 = vdwg.mxu0
        %v1595 = vadd.f32 %v1522, %v1573
        %v1596 = vadd.f32 %v1523, %v1593
        %v1597 = vadd.s32 %v549, 2
        %vm1598 = vcmp.ge.s32.totalorder %v1597, 0
        %vm1599 = vcmp.le.s32.totalorder %v1597, 15
        %vm1600 = vmand %vm1598, %vm1599
        %vm1601 = vmand %vm1297, %vm1600
        %vm1602 = vcmp.ge.s32.totalorder %v1597, 4294967295
        %vm1603 = vcmp.le.s32.totalorder %v1597, 16
        %vm1604 = vmand %vm1602, %vm1603
        %vm1605 = vmand %vm1300, %vm1604
        %1606 = vrot.lane.b32.xlu0 %v1291, 30
        %v1607 = vpop.permute.xlu0 %1606
        %1608 = vrot.lane.b32.xlu0 %v1292, 30
        %v1609 = vpop.permute.xlu0 %1608
        %vm1610 = vcmp.lt.s32.totalorder %v670, 30
        %v1611 = vsel %vm1610, %v1607, %v1609
        %v1612 = vsel %vm1610, %v1609, %v1607
        %v1613 = vsel %vm1605, 1, 0
        %v1614 = vperm.slane %v1613, 0
        %v1615 = vperm.slane %v1613, 1
        %vm1616 = vcmp.eq.s32.totalorder %v1614, 1
        %vm1617 = vcmp.eq.s32.totalorder %v1615, 1
        %v1618 = vsel %vm1616, %v1325, 0.0
        %v1619 = vsel %vm1617, %v1325, 0.0
        %v1620 = vsel %vm1601, 1, 0
        %v1621 = vperm.slane %v1620, 0
        %v1622 = vperm.slane %v1620, 1
        %vm1623 = vcmp.eq.s32.totalorder %v1621, 1
        %vm1624 = vcmp.eq.s32.totalorder %v1622, 1
        %v1625 = vsel %vm1623, %v1612, %v1618
        %v1626 = vsel %vm1624, %v1611, %v1619
        %s1627 = scalar_lea.vmem [#allocation7], 32
        %v1628 = vld [vmem:[%s1627] sm:$0xff]
        %v1630 = vsel %vm557, %v1628, 0
        %1632 = vmatpush.msra.mxu0 0.0
        %1633 = vmatpush.msra.mxu0 0.0
        %1634 = vmatpush.msra.mxu0 0.0
        %1635 = vmatpush.msra.mxu0 0.0
        %1636 = vmatpush.msra.mxu0 0.0
        %1637 = vmatpush.msra.mxu0 0.0
        %1638 = vmatpush.msra.mxu0 0.0
        %1639 = vmatpush.msra.mxu0 0.0
        %1640 = vmatpush.msra.mxu0 0.0
        %1641 = vmatpush.msra.mxu0 0.0
        %1642 = vmatpush.msra.mxu0 0.0
        %1643 = vmatpush.msra.mxu0 0.0
        %1644 = vmatpush.msra.mxu0 0.0
        %1645 = vmatpush.msra.mxu0 0.0
        %1646 = vmatpush.msra.mxu0 0.0
        %1647 = vmatpush.msra.mxu0 %v1625
        %1648 = vmatmul.f32.gmra.mxu0 %v1630
        %v1649 = vpop.f32.mrf.mxu0
        %v1650 = vadd.f32 0.0, %v1649
        %1651 = vdwg.mxu0
        %1652 = vmatpush.msra.mxu0 0.0
        %1653 = vmatpush.msra.mxu0 0.0
        %1654 = vmatpush.msra.mxu0 0.0
        %1655 = vmatpush.msra.mxu0 0.0
        %1656 = vmatpush.msra.mxu0 0.0
        %1657 = vmatpush.msra.mxu0 0.0
        %1658 = vmatpush.msra.mxu0 0.0
        %1659 = vmatpush.msra.mxu0 0.0
        %1660 = vmatpush.msra.mxu0 0.0
        %1661 = vmatpush.msra.mxu0 0.0
        %1662 = vmatpush.msra.mxu0 0.0
        %1663 = vmatpush.msra.mxu0 0.0
        %1664 = vmatpush.msra.mxu0 0.0
        %1665 = vmatpush.msra.mxu0 0.0
        %1666 = vmatpush.msra.mxu0 0.0
        %1667 = vmatpush.msra.mxu0 %v1626
        %1668 = vmatmul.f32.gmra.mxu0 %v1630
        %v1669 = vpop.f32.mrf.mxu0
        %v1670 = vadd.f32 0.0, %v1669
        %1671 = vdwg.mxu0
        %v1672 = vadd.f32 %v1595, %v1650
        %v1673 = vadd.f32 %v1596, %v1670
        %vm1674 = vcmp.ge.s32.totalorder %v656, 4294967295
        %vm1675 = vcmp.le.s32.totalorder %v656, 16
        %vm1676 = vmand %vm1674, %vm1675
        %vm1677 = vmand %vm659, %vm1304
        %vm1678 = vmand %vm1676, %vm1308
        %1679 = vrot.lane.b32.xlu0 %v1291, 18
        %v1680 = vpop.permute.xlu0 %1679
        %1681 = vrot.lane.b32.xlu0 %v1292, 18
        %v1682 = vpop.permute.xlu0 %1681
        %vm1683 = vcmp.lt.s32.totalorder %v670, 18
        %v1684 = vsel %vm1683, %v1680, %v1682
        %v1685 = vsel %vm1683, %v1682, %v1680
        %v1686 = vsel %vm1678, 1, 0
        %v1687 = vperm.slane %v1686, 0
        %v1688 = vperm.slane %v1686, 1
        %vm1689 = vcmp.eq.s32.totalorder %v1687, 1
        %vm1690 = vcmp.eq.s32.totalorder %v1688, 1
        %v1691 = vsel %vm1689, %v1325, 0.0
        %v1692 = vsel %vm1690, %v1325, 0.0
        %v1693 = vsel %vm1677, 1, 0
        %v1694 = vperm.slane %v1693, 0
        %v1695 = vperm.slane %v1693, 1
        %vm1696 = vcmp.eq.s32.totalorder %v1694, 1
        %vm1697 = vcmp.eq.s32.totalorder %v1695, 1
        %v1698 = vsel %vm1696, %v1685, %v1691
        %v1699 = vsel %vm1697, %v1684, %v1692
        %s1700 = scalar_lea.vmem [#allocation7], 40
        %v1701 = vld [vmem:[%s1700] sm:$0xff]
        %v1703 = vsel %vm557, %v1701, 0
        %1705 = vmatpush.msra.mxu0 0.0
        %1706 = vmatpush.msra.mxu0 0.0
        %1707 = vmatpush.msra.mxu0 0.0
        %1708 = vmatpush.msra.mxu0 0.0
        %1709 = vmatpush.msra.mxu0 0.0
        %1710 = vmatpush.msra.mxu0 0.0
        %1711 = vmatpush.msra.mxu0 0.0
        %1712 = vmatpush.msra.mxu0 0.0
        %1713 = vmatpush.msra.mxu0 0.0
        %1714 = vmatpush.msra.mxu0 0.0
        %1715 = vmatpush.msra.mxu0 0.0
        %1716 = vmatpush.msra.mxu0 0.0
        %1717 = vmatpush.msra.mxu0 0.0
        %1718 = vmatpush.msra.mxu0 0.0
        %1719 = vmatpush.msra.mxu0 0.0
        %1720 = vmatpush.msra.mxu0 %v1698
        %1721 = vmatmul.f32.gmra.mxu0 %v1703
        %v1722 = vpop.f32.mrf.mxu0
        %v1723 = vadd.f32 0.0, %v1722
        %1724 = vdwg.mxu0
        %1725 = vmatpush.msra.mxu0 0.0
        %1726 = vmatpush.msra.mxu0 0.0
        %1727 = vmatpush.msra.mxu0 0.0
        %1728 = vmatpush.msra.mxu0 0.0
        %1729 = vmatpush.msra.mxu0 0.0
        %1730 = vmatpush.msra.mxu0 0.0
        %1731 = vmatpush.msra.mxu0 0.0
        %1732 = vmatpush.msra.mxu0 0.0
        %1733 = vmatpush.msra.mxu0 0.0
        %1734 = vmatpush.msra.mxu0 0.0
        %1735 = vmatpush.msra.mxu0 0.0
        %1736 = vmatpush.msra.mxu0 0.0
        %1737 = vmatpush.msra.mxu0 0.0
        %1738 = vmatpush.msra.mxu0 0.0
        %1739 = vmatpush.msra.mxu0 0.0
        %1740 = vmatpush.msra.mxu0 %v1699
        %1741 = vmatmul.f32.gmra.mxu0 %v1703
        %v1742 = vpop.f32.mrf.mxu0
        %v1743 = vadd.f32 0.0, %v1742
        %1744 = vdwg.mxu0
        %v1745 = vadd.f32 %v1672, %v1723
        %v1746 = vadd.f32 %v1673, %v1743
        %vm1747 = vmand %vm1676, %vm1340
        %1748 = vrot.lane.b32.xlu0 %v1291, 17
        %v1749 = vpop.permute.xlu0 %1748
        %1750 = vrot.lane.b32.xlu0 %v1292, 17
        %v1751 = vpop.permute.xlu0 %1750
        %v1752 = vsel %vm671, %v1749, %v1751
        %v1753 = vsel %vm671, %v1751, %v1749
        %v1754 = vsel %vm1747, 1, 0
        %v1755 = vperm.slane %v1754, 0
        %v1756 = vperm.slane %v1754, 1
        %vm1757 = vcmp.eq.s32.totalorder %v1755, 1
        %vm1758 = vcmp.eq.s32.totalorder %v1756, 1
        %v1759 = vsel %vm1757, %v1325, 0.0
        %v1760 = vsel %vm1758, %v1325, 0.0
        %v1761 = vsel %vm677, %v1753, %v1759
        %v1762 = vsel %vm678, %v1752, %v1760
        %s1763 = scalar_lea.vmem [#allocation7], 48
        %v1764 = vld [vmem:[%s1763] sm:$0xff]
        %v1766 = vsel %vm557, %v1764, 0
        %1768 = vmatpush.msra.mxu0 0.0
        %1769 = vmatpush.msra.mxu0 0.0
        %1770 = vmatpush.msra.mxu0 0.0
        %1771 = vmatpush.msra.mxu0 0.0
        %1772 = vmatpush.msra.mxu0 0.0
        %1773 = vmatpush.msra.mxu0 0.0
        %1774 = vmatpush.msra.mxu0 0.0
        %1775 = vmatpush.msra.mxu0 0.0
        %1776 = vmatpush.msra.mxu0 0.0
        %1777 = vmatpush.msra.mxu0 0.0
        %1778 = vmatpush.msra.mxu0 0.0
        %1779 = vmatpush.msra.mxu0 0.0
        %1780 = vmatpush.msra.mxu0 0.0
        %1781 = vmatpush.msra.mxu0 0.0
        %1782 = vmatpush.msra.mxu0 0.0
        %1783 = vmatpush.msra.mxu0 %v1761
        %1784 = vmatmul.f32.gmra.mxu0 %v1766
        %v1785 = vpop.f32.mrf.mxu0
        %v1786 = vadd.f32 0.0, %v1785
        %1787 = vdwg.mxu0
        %1788 = vmatpush.msra.mxu0 0.0
        %1789 = vmatpush.msra.mxu0 0.0
        %1790 = vmatpush.msra.mxu0 0.0
        %1791 = vmatpush.msra.mxu0 0.0
        %1792 = vmatpush.msra.mxu0 0.0
        %1793 = vmatpush.msra.mxu0 0.0
        %1794 = vmatpush.msra.mxu0 0.0
        %1795 = vmatpush.msra.mxu0 0.0
        %1796 = vmatpush.msra.mxu0 0.0
        %1797 = vmatpush.msra.mxu0 0.0
        %1798 = vmatpush.msra.mxu0 0.0
        %1799 = vmatpush.msra.mxu0 0.0
        %1800 = vmatpush.msra.mxu0 0.0
        %1801 = vmatpush.msra.mxu0 0.0
        %1802 = vmatpush.msra.mxu0 0.0
        %1803 = vmatpush.msra.mxu0 %v1762
        %1804 = vmatmul.f32.gmra.mxu0 %v1766
        %v1805 = vpop.f32.mrf.mxu0
        %v1806 = vadd.f32 0.0, %v1805
        %1807 = vdwg.mxu0
        %v1808 = vadd.f32 %v1745, %v1786
        %v1809 = vadd.f32 %v1746, %v1806
        %vm1810 = vmand %vm1676, %vm1454
        %1811 = vrot.lane.b32.xlu0 %v1291, 16
        %v1812 = vpop.permute.xlu0 %1811
        %1813 = vrot.lane.b32.xlu0 %v1292, 16
        %v1814 = vpop.permute.xlu0 %1813
        %v1815 = vsel %vm695, %v1812, %v1814
        %v1816 = vsel %vm695, %v1814, %v1812
        %v1817 = vsel %vm1810, 1, 0
        %v1818 = vperm.slane %v1817, 0
        %v1819 = vperm.slane %v1817, 1
        %vm1820 = vcmp.eq.s32.totalorder %v1818, 1
        %vm1821 = vcmp.eq.s32.totalorder %v1819, 1
        %v1822 = vsel %vm1820, %v1325, 0.0
        %v1823 = vsel %vm1821, %v1325, 0.0
        %v1824 = vsel %vm701, %v1816, %v1822
        %v1825 = vsel %vm702, %v1815, %v1823
        %s1826 = scalar_lea.vmem [#allocation7], 56
        %v1827 = vld [vmem:[%s1826] sm:$0xff]
        %v1829 = vsel %vm557, %v1827, 0
        %1831 = vmatpush.msra.mxu0 0.0
        %1832 = vmatpush.msra.mxu0 0.0
        %1833 = vmatpush.msra.mxu0 0.0
        %1834 = vmatpush.msra.mxu0 0.0
        %1835 = vmatpush.msra.mxu0 0.0
        %1836 = vmatpush.msra.mxu0 0.0
        %1837 = vmatpush.msra.mxu0 0.0
        %1838 = vmatpush.msra.mxu0 0.0
        %1839 = vmatpush.msra.mxu0 0.0
        %1840 = vmatpush.msra.mxu0 0.0
        %1841 = vmatpush.msra.mxu0 0.0
        %1842 = vmatpush.msra.mxu0 0.0
        %1843 = vmatpush.msra.mxu0 0.0
        %1844 = vmatpush.msra.mxu0 0.0
        %1845 = vmatpush.msra.mxu0 0.0
        %1846 = vmatpush.msra.mxu0 %v1824
        %1847 = vmatmul.f32.gmra.mxu0 %v1829
        %v1848 = vpop.f32.mrf.mxu0
        %v1849 = vadd.f32 0.0, %v1848
        %1850 = vdwg.mxu0
        %1851 = vmatpush.msra.mxu0 0.0
        %1852 = vmatpush.msra.mxu0 0.0
        %1853 = vmatpush.msra.mxu0 0.0
        %1854 = vmatpush.msra.mxu0 0.0
        %1855 = vmatpush.msra.mxu0 0.0
        %1856 = vmatpush.msra.mxu0 0.0
        %1857 = vmatpush.msra.mxu0 0.0
        %1858 = vmatpush.msra.mxu0 0.0
        %1859 = vmatpush.msra.mxu0 0.0
        %1860 = vmatpush.msra.mxu0 0.0
        %1861 = vmatpush.msra.mxu0 0.0
        %1862 = vmatpush.msra.mxu0 0.0
        %1863 = vmatpush.msra.mxu0 0.0
        %1864 = vmatpush.msra.mxu0 0.0
        %1865 = vmatpush.msra.mxu0 0.0
        %1866 = vmatpush.msra.mxu0 %v1825
        %1867 = vmatmul.f32.gmra.mxu0 %v1829
        %v1868 = vpop.f32.mrf.mxu0
        %v1869 = vadd.f32 0.0, %v1868
        %1870 = vdwg.mxu0
        %v1871 = vadd.f32 %v1808, %v1849
        %v1872 = vadd.f32 %v1809, %v1869
        %vm1873 = vmand %vm1676, %vm1527
        %1874 = vrot.lane.b32.xlu0 %v1291, 15
        %v1875 = vpop.permute.xlu0 %1874
        %1876 = vrot.lane.b32.xlu0 %v1292, 15
        %v1877 = vpop.permute.xlu0 %1876
        %v1878 = vsel %vm802, %v1875, %v1877
        %v1879 = vsel %vm802, %v1877, %v1875
        %v1880 = vsel %vm1873, 1, 0
        %v1881 = vperm.slane %v1880, 0
        %v1882 = vperm.slane %v1880, 1
        %vm1883 = vcmp.eq.s32.totalorder %v1881, 1
        %vm1884 = vcmp.eq.s32.totalorder %v1882, 1
        %v1885 = vsel %vm1883, %v1325, 0.0
        %v1886 = vsel %vm1884, %v1325, 0.0
        %v1887 = vsel %vm808, %v1879, %v1885
        %v1888 = vsel %vm809, %v1878, %v1886
        %s1889 = scalar_lea.vmem [#allocation7], 64
        %v1890 = vld [vmem:[%s1889] sm:$0xff]
        %v1892 = vsel %vm557, %v1890, 0
        %1894 = vmatpush.msra.mxu0 0.0
        %1895 = vmatpush.msra.mxu0 0.0
        %1896 = vmatpush.msra.mxu0 0.0
        %1897 = vmatpush.msra.mxu0 0.0
        %1898 = vmatpush.msra.mxu0 0.0
        %1899 = vmatpush.msra.mxu0 0.0
        %1900 = vmatpush.msra.mxu0 0.0
        %1901 = vmatpush.msra.mxu0 0.0
        %1902 = vmatpush.msra.mxu0 0.0
        %1903 = vmatpush.msra.mxu0 0.0
        %1904 = vmatpush.msra.mxu0 0.0
        %1905 = vmatpush.msra.mxu0 0.0
        %1906 = vmatpush.msra.mxu0 0.0
        %1907 = vmatpush.msra.mxu0 0.0
        %1908 = vmatpush.msra.mxu0 0.0
        %1909 = vmatpush.msra.mxu0 %v1887
        %1910 = vmatmul.f32.gmra.mxu0 %v1892
        %v1911 = vpop.f32.mrf.mxu0
        %v1912 = vadd.f32 0.0, %v1911
        %1913 = vdwg.mxu0
        %1914 = vmatpush.msra.mxu0 0.0
        %1915 = vmatpush.msra.mxu0 0.0
        %1916 = vmatpush.msra.mxu0 0.0
        %1917 = vmatpush.msra.mxu0 0.0
        %1918 = vmatpush.msra.mxu0 0.0
        %1919 = vmatpush.msra.mxu0 0.0
        %1920 = vmatpush.msra.mxu0 0.0
        %1921 = vmatpush.msra.mxu0 0.0
        %1922 = vmatpush.msra.mxu0 0.0
        %1923 = vmatpush.msra.mxu0 0.0
        %1924 = vmatpush.msra.mxu0 0.0
        %1925 = vmatpush.msra.mxu0 0.0
        %1926 = vmatpush.msra.mxu0 0.0
        %1927 = vmatpush.msra.mxu0 0.0
        %1928 = vmatpush.msra.mxu0 0.0
        %1929 = vmatpush.msra.mxu0 %v1888
        %1930 = vmatmul.f32.gmra.mxu0 %v1892
        %v1931 = vpop.f32.mrf.mxu0
        %v1932 = vadd.f32 0.0, %v1931
        %1933 = vdwg.mxu0
        %v1934 = vadd.f32 %v1871, %v1912
        %v1935 = vadd.f32 %v1872, %v1932
        %vm1936 = vmand %vm659, %vm1600
        %vm1937 = vmand %vm1676, %vm1604
        %1938 = vrot.lane.b32.xlu0 %v1291, 14
        %v1939 = vpop.permute.xlu0 %1938
        %1940 = vrot.lane.b32.xlu0 %v1292, 14
        %v1941 = vpop.permute.xlu0 %1940
        %vm1942 = vcmp.lt.s32.totalorder %v670, 14
        %v1943 = vsel %vm1942, %v1939, %v1941
        %v1944 = vsel %vm1942, %v1941, %v1939
        %v1945 = vsel %vm1937, 1, 0
        %v1946 = vperm.slane %v1945, 0
        %v1947 = vperm.slane %v1945, 1
        %vm1948 = vcmp.eq.s32.totalorder %v1946, 1
        %vm1949 = vcmp.eq.s32.totalorder %v1947, 1
        %v1950 = vsel %vm1948, %v1325, 0.0
        %v1951 = vsel %vm1949, %v1325, 0.0
        %v1952 = vsel %vm1936, 1, 0
        %v1953 = vperm.slane %v1952, 0
        %v1954 = vperm.slane %v1952, 1
        %vm1955 = vcmp.eq.s32.totalorder %v1953, 1
        %vm1956 = vcmp.eq.s32.totalorder %v1954, 1
        %v1957 = vsel %vm1955, %v1944, %v1950
        %v1958 = vsel %vm1956, %v1943, %v1951
        %s1959 = scalar_lea.vmem [#allocation7], 72
        %v1960 = vld [vmem:[%s1959] sm:$0xff]
        %v1962 = vsel %vm557, %v1960, 0
        %1964 = vmatpush.msra.mxu0 0.0
        %1965 = vmatpush.msra.mxu0 0.0
        %1966 = vmatpush.msra.mxu0 0.0
        %1967 = vmatpush.msra.mxu0 0.0
        %1968 = vmatpush.msra.mxu0 0.0
        %1969 = vmatpush.msra.mxu0 0.0
        %1970 = vmatpush.msra.mxu0 0.0
        %1971 = vmatpush.msra.mxu0 0.0
        %1972 = vmatpush.msra.mxu0 0.0
        %1973 = vmatpush.msra.mxu0 0.0
        %1974 = vmatpush.msra.mxu0 0.0
        %1975 = vmatpush.msra.mxu0 0.0
        %1976 = vmatpush.msra.mxu0 0.0
        %1977 = vmatpush.msra.mxu0 0.0
        %1978 = vmatpush.msra.mxu0 0.0
        %1979 = vmatpush.msra.mxu0 %v1957
        %1980 = vmatmul.f32.gmra.mxu0 %v1962
        %v1981 = vpop.f32.mrf.mxu0
        %v1982 = vadd.f32 0.0, %v1981
        %1983 = vdwg.mxu0
        %1984 = vmatpush.msra.mxu0 0.0
        %1985 = vmatpush.msra.mxu0 0.0
        %1986 = vmatpush.msra.mxu0 0.0
        %1987 = vmatpush.msra.mxu0 0.0
        %1988 = vmatpush.msra.mxu0 0.0
        %1989 = vmatpush.msra.mxu0 0.0
        %1990 = vmatpush.msra.mxu0 0.0
        %1991 = vmatpush.msra.mxu0 0.0
        %1992 = vmatpush.msra.mxu0 0.0
        %1993 = vmatpush.msra.mxu0 0.0
        %1994 = vmatpush.msra.mxu0 0.0
        %1995 = vmatpush.msra.mxu0 0.0
        %1996 = vmatpush.msra.mxu0 0.0
        %1997 = vmatpush.msra.mxu0 0.0
        %1998 = vmatpush.msra.mxu0 0.0
        %1999 = vmatpush.msra.mxu0 %v1958
        %2000 = vmatmul.f32.gmra.mxu0 %v1962
        %v2001 = vpop.f32.mrf.mxu0
        %v2002 = vadd.f32 0.0, %v2001
        %2003 = vdwg.mxu0
        %v2004 = vadd.f32 %v1934, %v1982
        %v2005 = vadd.f32 %v1935, %v2002
        %vm2006 = vcmp.ge.s32.totalorder %v548, 4294967295
        %vm2007 = vcmp.le.s32.totalorder %v548, 16
        %vm2008 = vmand %vm2006, %vm2007
        %vm2009 = vmand %vm861, %vm1304
        %vm2010 = vmand %vm2008, %vm1308
        %2011 = vrot.lane.b32.xlu0 %v1291, 2
        %v2012 = vpop.permute.xlu0 %2011
        %2013 = vrot.lane.b32.xlu0 %v1292, 2
        %v2014 = vpop.permute.xlu0 %2013
        %vm2015 = vcmp.lt.s32.totalorder %v670, 2
        %v2016 = vsel %vm2015, %v2012, %v2014
        %v2017 = vsel %vm2015, %v2014, %v2012
        %v2018 = vsel %vm2010, 1, 0
        %v2019 = vperm.slane %v2018, 0
        %v2020 = vperm.slane %v2018, 1
        %vm2021 = vcmp.eq.s32.totalorder %v2019, 1
        %vm2022 = vcmp.eq.s32.totalorder %v2020, 1
        %v2023 = vsel %vm2021, %v1325, 0.0
        %v2024 = vsel %vm2022, %v1325, 0.0
        %v2025 = vsel %vm2009, 1, 0
        %v2026 = vperm.slane %v2025, 0
        %v2027 = vperm.slane %v2025, 1
        %vm2028 = vcmp.eq.s32.totalorder %v2026, 1
        %vm2029 = vcmp.eq.s32.totalorder %v2027, 1
        %v2030 = vsel %vm2028, %v2017, %v2023
        %v2031 = vsel %vm2029, %v2016, %v2024
        %s2032 = scalar_lea.vmem [#allocation7], 80
        %v2033 = vld [vmem:[%s2032] sm:$0xff]
        %v2035 = vsel %vm557, %v2033, 0
        %2037 = vmatpush.msra.mxu0 0.0
        %2038 = vmatpush.msra.mxu0 0.0
        %2039 = vmatpush.msra.mxu0 0.0
        %2040 = vmatpush.msra.mxu0 0.0
        %2041 = vmatpush.msra.mxu0 0.0
        %2042 = vmatpush.msra.mxu0 0.0
        %2043 = vmatpush.msra.mxu0 0.0
        %2044 = vmatpush.msra.mxu0 0.0
        %2045 = vmatpush.msra.mxu0 0.0
        %2046 = vmatpush.msra.mxu0 0.0
        %2047 = vmatpush.msra.mxu0 0.0
        %2048 = vmatpush.msra.mxu0 0.0
        %2049 = vmatpush.msra.mxu0 0.0
        %2050 = vmatpush.msra.mxu0 0.0
        %2051 = vmatpush.msra.mxu0 0.0
        %2052 = vmatpush.msra.mxu0 %v2030
        %2053 = vmatmul.f32.gmra.mxu0 %v2035
        %v2054 = vpop.f32.mrf.mxu0
        %v2055 = vadd.f32 0.0, %v2054
        %2056 = vdwg.mxu0
        %2057 = vmatpush.msra.mxu0 0.0
        %2058 = vmatpush.msra.mxu0 0.0
        %2059 = vmatpush.msra.mxu0 0.0
        %2060 = vmatpush.msra.mxu0 0.0
        %2061 = vmatpush.msra.mxu0 0.0
        %2062 = vmatpush.msra.mxu0 0.0
        %2063 = vmatpush.msra.mxu0 0.0
        %2064 = vmatpush.msra.mxu0 0.0
        %2065 = vmatpush.msra.mxu0 0.0
        %2066 = vmatpush.msra.mxu0 0.0
        %2067 = vmatpush.msra.mxu0 0.0
        %2068 = vmatpush.msra.mxu0 0.0
        %2069 = vmatpush.msra.mxu0 0.0
        %2070 = vmatpush.msra.mxu0 0.0
        %2071 = vmatpush.msra.mxu0 0.0
        %2072 = vmatpush.msra.mxu0 %v2031
        %2073 = vmatmul.f32.gmra.mxu0 %v2035
        %v2074 = vpop.f32.mrf.mxu0
        %v2075 = vadd.f32 0.0, %v2074
        %2076 = vdwg.mxu0
        %v2077 = vadd.f32 %v2004, %v2055
        %v2078 = vadd.f32 %v2005, %v2075
        %vm2079 = vmand %vm2008, %vm1340
        %2080 = vrot.lane.b32.xlu0 %v1291, 1
        %v2081 = vpop.permute.xlu0 %2080
        %2082 = vrot.lane.b32.xlu0 %v1292, 1
        %v2083 = vpop.permute.xlu0 %2082
        %v2084 = vsel %vm867, %v2081, %v2083
        %v2085 = vsel %vm867, %v2083, %v2081
        %v2086 = vsel %vm2079, 1, 0
        %v2087 = vperm.slane %v2086, 0
        %v2088 = vperm.slane %v2086, 1
        %vm2089 = vcmp.eq.s32.totalorder %v2087, 1
        %vm2090 = vcmp.eq.s32.totalorder %v2088, 1
        %v2091 = vsel %vm2089, %v1325, 0.0
        %v2092 = vsel %vm2090, %v1325, 0.0
        %v2093 = vsel %vm873, %v2085, %v2091
        %v2094 = vsel %vm874, %v2084, %v2092
        %s2095 = scalar_lea.vmem [#allocation7], 88
        %v2096 = vld [vmem:[%s2095] sm:$0xff]
        %v2098 = vsel %vm557, %v2096, 0
        %2100 = vmatpush.msra.mxu0 0.0
        %2101 = vmatpush.msra.mxu0 0.0
        %2102 = vmatpush.msra.mxu0 0.0
        %2103 = vmatpush.msra.mxu0 0.0
        %2104 = vmatpush.msra.mxu0 0.0
        %2105 = vmatpush.msra.mxu0 0.0
        %2106 = vmatpush.msra.mxu0 0.0
        %2107 = vmatpush.msra.mxu0 0.0
        %2108 = vmatpush.msra.mxu0 0.0
        %2109 = vmatpush.msra.mxu0 0.0
        %2110 = vmatpush.msra.mxu0 0.0
        %2111 = vmatpush.msra.mxu0 0.0
        %2112 = vmatpush.msra.mxu0 0.0
        %2113 = vmatpush.msra.mxu0 0.0
        %2114 = vmatpush.msra.mxu0 0.0
        %2115 = vmatpush.msra.mxu0 %v2093
        %2116 = vmatmul.f32.gmra.mxu0 %v2098
        %v2117 = vpop.f32.mrf.mxu0
        %v2118 = vadd.f32 0.0, %v2117
        %2119 = vdwg.mxu0
        %2120 = vmatpush.msra.mxu0 0.0
        %2121 = vmatpush.msra.mxu0 0.0
        %2122 = vmatpush.msra.mxu0 0.0
        %2123 = vmatpush.msra.mxu0 0.0
        %2124 = vmatpush.msra.mxu0 0.0
        %2125 = vmatpush.msra.mxu0 0.0
        %2126 = vmatpush.msra.mxu0 0.0
        %2127 = vmatpush.msra.mxu0 0.0
        %2128 = vmatpush.msra.mxu0 0.0
        %2129 = vmatpush.msra.mxu0 0.0
        %2130 = vmatpush.msra.mxu0 0.0
        %2131 = vmatpush.msra.mxu0 0.0
        %2132 = vmatpush.msra.mxu0 0.0
        %2133 = vmatpush.msra.mxu0 0.0
        %2134 = vmatpush.msra.mxu0 0.0
        %2135 = vmatpush.msra.mxu0 %v2094
        %2136 = vmatmul.f32.gmra.mxu0 %v2098
        %v2137 = vpop.f32.mrf.mxu0
        %v2138 = vadd.f32 0.0, %v2137
        %2139 = vdwg.mxu0
        %v2140 = vadd.f32 %v2077, %v2118
        %v2141 = vadd.f32 %v2078, %v2138
        %vm2142 = vmand %vm2008, %vm1454
        %v2143 = vsel %vm2142, 1, 0
        %v2144 = vperm.slane %v2143, 0
        %v2145 = vperm.slane %v2143, 1
        %vm2146 = vcmp.eq.s32.totalorder %v2144, 1
        %vm2147 = vcmp.eq.s32.totalorder %v2145, 1
        %v2148 = vsel %vm2146, %v1325, 0.0
        %v2149 = vsel %vm2147, %v1325, 0.0
        %v2150 = vsel %vm928, %v1291, %v2148
        %v2151 = vsel %vm929, %v1292, %v2149
        %s2152 = scalar_lea.vmem [#allocation7], 96
        %v2153 = vld [vmem:[%s2152] sm:$0xff]
        %v2155 = vsel %vm557, %v2153, 0
        %2157 = vmatpush.msra.mxu0 0.0
        %2158 = vmatpush.msra.mxu0 0.0
        %2159 = vmatpush.msra.mxu0 0.0
        %2160 = vmatpush.msra.mxu0 0.0
        %2161 = vmatpush.msra.mxu0 0.0
        %2162 = vmatpush.msra.mxu0 0.0
        %2163 = vmatpush.msra.mxu0 0.0
        %2164 = vmatpush.msra.mxu0 0.0
        %2165 = vmatpush.msra.mxu0 0.0
        %2166 = vmatpush.msra.mxu0 0.0
        %2167 = vmatpush.msra.mxu0 0.0
        %2168 = vmatpush.msra.mxu0 0.0
        %2169 = vmatpush.msra.mxu0 0.0
        %2170 = vmatpush.msra.mxu0 0.0
        %2171 = vmatpush.msra.mxu0 0.0
        %2172 = vmatpush.msra.mxu0 %v2150
        %2173 = vmatmul.f32.gmra.mxu0 %v2155
        %v2174 = vpop.f32.mrf.mxu0
        %v2175 = vadd.f32 0.0, %v2174
        %2176 = vdwg.mxu0
        %2177 = vmatpush.msra.mxu0 0.0
        %2178 = vmatpush.msra.mxu0 0.0
        %2179 = vmatpush.msra.mxu0 0.0
        %2180 = vmatpush.msra.mxu0 0.0
        %2181 = vmatpush.msra.mxu0 0.0
        %2182 = vmatpush.msra.mxu0 0.0
        %2183 = vmatpush.msra.mxu0 0.0
        %2184 = vmatpush.msra.mxu0 0.0
        %2185 = vmatpush.msra.mxu0 0.0
        %2186 = vmatpush.msra.mxu0 0.0
        %2187 = vmatpush.msra.mxu0 0.0
        %2188 = vmatpush.msra.mxu0 0.0
        %2189 = vmatpush.msra.mxu0 0.0
        %2190 = vmatpush.msra.mxu0 0.0
        %2191 = vmatpush.msra.mxu0 0.0
        %2192 = vmatpush.msra.mxu0 %v2151
        %2193 = vmatmul.f32.gmra.mxu0 %v2155
        %v2194 = vpop.f32.mrf.mxu0
        %v2195 = vadd.f32 0.0, %v2194
        %2196 = vdwg.mxu0
        %v2197 = vadd.f32 %v2140, %v2175
        %v2198 = vadd.f32 %v2141, %v2195
        %vm2199 = vmand %vm2008, %vm1527
        %2200 = vrot.lane.b32.xlu0 %v1291, 127
        %v2201 = vpop.permute.xlu0 %2200
        %2202 = vrot.lane.b32.xlu0 %v1292, 127
        %v2203 = vpop.permute.xlu0 %2202
        %v2204 = vsel %vm984, %v2201, %v2203
        %v2205 = vsel %vm984, %v2203, %v2201
        %v2206 = vsel %vm2199, 1, 0
        %v2207 = vperm.slane %v2206, 0
        %v2208 = vperm.slane %v2206, 1
        %vm2209 = vcmp.eq.s32.totalorder %v2207, 1
        %vm2210 = vcmp.eq.s32.totalorder %v2208, 1
        %v2211 = vsel %vm2209, %v1325, 0.0
        %v2212 = vsel %vm2210, %v1325, 0.0
        %v2213 = vsel %vm990, %v2204, %v2211
        %v2214 = vsel %vm991, %v2205, %v2212
        %s2215 = scalar_lea.vmem [#allocation7], 104
        %v2216 = vld [vmem:[%s2215] sm:$0xff]
        %v2218 = vsel %vm557, %v2216, 0
        %2220 = vmatpush.msra.mxu0 0.0
        %2221 = vmatpush.msra.mxu0 0.0
        %2222 = vmatpush.msra.mxu0 0.0
        %2223 = vmatpush.msra.mxu0 0.0
        %2224 = vmatpush.msra.mxu0 0.0
        %2225 = vmatpush.msra.mxu0 0.0
        %2226 = vmatpush.msra.mxu0 0.0
        %2227 = vmatpush.msra.mxu0 0.0
        %2228 = vmatpush.msra.mxu0 0.0
        %2229 = vmatpush.msra.mxu0 0.0
        %2230 = vmatpush.msra.mxu0 0.0
        %2231 = vmatpush.msra.mxu0 0.0
        %2232 = vmatpush.msra.mxu0 0.0
        %2233 = vmatpush.msra.mxu0 0.0
        %2234 = vmatpush.msra.mxu0 0.0
        %2235 = vmatpush.msra.mxu0 %v2213
        %2236 = vmatmul.f32.gmra.mxu0 %v2218
        %v2237 = vpop.f32.mrf.mxu0
        %v2238 = vadd.f32 0.0, %v2237
        %2239 = vdwg.mxu0
        %2240 = vmatpush.msra.mxu0 0.0
        %2241 = vmatpush.msra.mxu0 0.0
        %2242 = vmatpush.msra.mxu0 0.0
        %2243 = vmatpush.msra.mxu0 0.0
        %2244 = vmatpush.msra.mxu0 0.0
        %2245 = vmatpush.msra.mxu0 0.0
        %2246 = vmatpush.msra.mxu0 0.0
        %2247 = vmatpush.msra.mxu0 0.0
        %2248 = vmatpush.msra.mxu0 0.0
        %2249 = vmatpush.msra.mxu0 0.0
        %2250 = vmatpush.msra.mxu0 0.0
        %2251 = vmatpush.msra.mxu0 0.0
        %2252 = vmatpush.msra.mxu0 0.0
        %2253 = vmatpush.msra.mxu0 0.0
        %2254 = vmatpush.msra.mxu0 0.0
        %2255 = vmatpush.msra.mxu0 %v2214
        %2256 = vmatmul.f32.gmra.mxu0 %v2218
        %v2257 = vpop.f32.mrf.mxu0
        %v2258 = vadd.f32 0.0, %v2257
        %2259 = vdwg.mxu0
        %v2260 = vadd.f32 %v2197, %v2238
        %v2261 = vadd.f32 %v2198, %v2258
        %vm2262 = vmand %vm861, %vm1600
        %vm2263 = vmand %vm2008, %vm1604
        %2264 = vrot.lane.b32.xlu0 %v1291, 126
        %v2265 = vpop.permute.xlu0 %2264
        %2266 = vrot.lane.b32.xlu0 %v1292, 126
        %v2267 = vpop.permute.xlu0 %2266
        %vm2268 = vcmp.lt.s32.totalorder %v670, 126
        %v2269 = vsel %vm2268, %v2265, %v2267
        %v2270 = vsel %vm2268, %v2267, %v2265
        %v2271 = vsel %vm2263, 1, 0
        %v2272 = vperm.slane %v2271, 0
        %v2273 = vperm.slane %v2271, 1
        %vm2274 = vcmp.eq.s32.totalorder %v2272, 1
        %vm2275 = vcmp.eq.s32.totalorder %v2273, 1
        %v2276 = vsel %vm2274, %v1325, 0.0
        %v2277 = vsel %vm2275, %v1325, 0.0
        %v2278 = vsel %vm2262, 1, 0
        %v2279 = vperm.slane %v2278, 0
        %v2280 = vperm.slane %v2278, 1
        %vm2281 = vcmp.eq.s32.totalorder %v2279, 1
        %vm2282 = vcmp.eq.s32.totalorder %v2280, 1
        %v2283 = vsel %vm2281, %v2269, %v2276
        %v2284 = vsel %vm2282, %v2270, %v2277
        %s2285 = scalar_lea.vmem [#allocation7], 112
        %v2286 = vld [vmem:[%s2285] sm:$0xff]
        %v2288 = vsel %vm557, %v2286, 0
        %2290 = vmatpush.msra.mxu0 0.0
        %2291 = vmatpush.msra.mxu0 0.0
        %2292 = vmatpush.msra.mxu0 0.0
        %2293 = vmatpush.msra.mxu0 0.0
        %2294 = vmatpush.msra.mxu0 0.0
        %2295 = vmatpush.msra.mxu0 0.0
        %2296 = vmatpush.msra.mxu0 0.0
        %2297 = vmatpush.msra.mxu0 0.0
        %2298 = vmatpush.msra.mxu0 0.0
        %2299 = vmatpush.msra.mxu0 0.0
        %2300 = vmatpush.msra.mxu0 0.0
        %2301 = vmatpush.msra.mxu0 0.0
        %2302 = vmatpush.msra.mxu0 0.0
        %2303 = vmatpush.msra.mxu0 0.0
        %2304 = vmatpush.msra.mxu0 0.0
        %2305 = vmatpush.msra.mxu0 %v2283
        %2306 = vmatmul.f32.gmra.mxu0 %v2288
        %v2307 = vpop.f32.mrf.mxu0
        %v2308 = vadd.f32 0.0, %v2307
        %2309 = vdwg.mxu0
        %2310 = vmatpush.msra.mxu0 0.0
        %2311 = vmatpush.msra.mxu0 0.0
        %2312 = vmatpush.msra.mxu0 0.0
        %2313 = vmatpush.msra.mxu0 0.0
        %2314 = vmatpush.msra.mxu0 0.0
        %2315 = vmatpush.msra.mxu0 0.0
        %2316 = vmatpush.msra.mxu0 0.0
        %2317 = vmatpush.msra.mxu0 0.0
        %2318 = vmatpush.msra.mxu0 0.0
        %2319 = vmatpush.msra.mxu0 0.0
        %2320 = vmatpush.msra.mxu0 0.0
        %2321 = vmatpush.msra.mxu0 0.0
        %2322 = vmatpush.msra.mxu0 0.0
        %2323 = vmatpush.msra.mxu0 0.0
        %2324 = vmatpush.msra.mxu0 0.0
        %2325 = vmatpush.msra.mxu0 %v2284
        %2326 = vmatmul.f32.gmra.mxu0 %v2288
        %v2327 = vpop.f32.mrf.mxu0
        %v2328 = vadd.f32 0.0, %v2327
        %2329 = vdwg.mxu0
        %v2330 = vadd.f32 %v2260, %v2308
        %v2331 = vadd.f32 %v2261, %v2328
        %vm2332 = vcmp.ge.s32.totalorder %v1041, 4294967295
        %vm2333 = vcmp.le.s32.totalorder %v1041, 16
        %vm2334 = vmand %vm2332, %vm2333
        %vm2335 = vmand %vm1044, %vm1304
        %vm2336 = vmand %vm2334, %vm1308
        %2337 = vrot.lane.b32.xlu0 %v1291, 114
        %v2338 = vpop.permute.xlu0 %2337
        %2339 = vrot.lane.b32.xlu0 %v1292, 114
        %v2340 = vpop.permute.xlu0 %2339
        %vm2341 = vcmp.lt.s32.totalorder %v670, 114
        %v2342 = vsel %vm2341, %v2338, %v2340
        %v2343 = vsel %vm2341, %v2340, %v2338
        %v2344 = vsel %vm2336, 1, 0
        %v2345 = vperm.slane %v2344, 0
        %v2346 = vperm.slane %v2344, 1
        %vm2347 = vcmp.eq.s32.totalorder %v2345, 1
        %vm2348 = vcmp.eq.s32.totalorder %v2346, 1
        %v2349 = vsel %vm2347, %v1325, 0.0
        %v2350 = vsel %vm2348, %v1325, 0.0
        %v2351 = vsel %vm2335, 1, 0
        %v2352 = vperm.slane %v2351, 0
        %v2353 = vperm.slane %v2351, 1
        %vm2354 = vcmp.eq.s32.totalorder %v2352, 1
        %vm2355 = vcmp.eq.s32.totalorder %v2353, 1
        %v2356 = vsel %vm2354, %v2342, %v2349
        %v2357 = vsel %vm2355, %v2343, %v2350
        %s2358 = scalar_lea.vmem [#allocation7], 120
        %v2359 = vld [vmem:[%s2358] sm:$0xff]
        %v2361 = vsel %vm557, %v2359, 0
        %2363 = vmatpush.msra.mxu0 0.0
        %2364 = vmatpush.msra.mxu0 0.0
        %2365 = vmatpush.msra.mxu0 0.0
        %2366 = vmatpush.msra.mxu0 0.0
        %2367 = vmatpush.msra.mxu0 0.0
        %2368 = vmatpush.msra.mxu0 0.0
        %2369 = vmatpush.msra.mxu0 0.0
        %2370 = vmatpush.msra.mxu0 0.0
        %2371 = vmatpush.msra.mxu0 0.0
        %2372 = vmatpush.msra.mxu0 0.0
        %2373 = vmatpush.msra.mxu0 0.0
        %2374 = vmatpush.msra.mxu0 0.0
        %2375 = vmatpush.msra.mxu0 0.0
        %2376 = vmatpush.msra.mxu0 0.0
        %2377 = vmatpush.msra.mxu0 0.0
        %2378 = vmatpush.msra.mxu0 %v2356
        %2379 = vmatmul.f32.gmra.mxu0 %v2361
        %v2380 = vpop.f32.mrf.mxu0
        %v2381 = vadd.f32 0.0, %v2380
        %2382 = vdwg.mxu0
        %2383 = vmatpush.msra.mxu0 0.0
        %2384 = vmatpush.msra.mxu0 0.0
        %2385 = vmatpush.msra.mxu0 0.0
        %2386 = vmatpush.msra.mxu0 0.0
        %2387 = vmatpush.msra.mxu0 0.0
        %2388 = vmatpush.msra.mxu0 0.0
        %2389 = vmatpush.msra.mxu0 0.0
        %2390 = vmatpush.msra.mxu0 0.0
        %2391 = vmatpush.msra.mxu0 0.0
        %2392 = vmatpush.msra.mxu0 0.0
        %2393 = vmatpush.msra.mxu0 0.0
        %2394 = vmatpush.msra.mxu0 0.0
        %2395 = vmatpush.msra.mxu0 0.0
        %2396 = vmatpush.msra.mxu0 0.0
        %2397 = vmatpush.msra.mxu0 0.0
        %2398 = vmatpush.msra.mxu0 %v2357
        %2399 = vmatmul.f32.gmra.mxu0 %v2361
        %v2400 = vpop.f32.mrf.mxu0
        %v2401 = vadd.f32 0.0, %v2400
        %2402 = vdwg.mxu0
        %v2403 = vadd.f32 %v2330, %v2381
        %v2404 = vadd.f32 %v2331, %v2401
        %vm2405 = vmand %vm2334, %vm1340
        %2406 = vrot.lane.b32.xlu0 %v1291, 113
        %v2407 = vpop.permute.xlu0 %2406
        %2408 = vrot.lane.b32.xlu0 %v1292, 113
        %v2409 = vpop.permute.xlu0 %2408
        %v2410 = vsel %vm1050, %v2407, %v2409
        %v2411 = vsel %vm1050, %v2409, %v2407
        %v2412 = vsel %vm2405, 1, 0
        %v2413 = vperm.slane %v2412, 0
        %v2414 = vperm.slane %v2412, 1
        %vm2415 = vcmp.eq.s32.totalorder %v2413, 1
        %vm2416 = vcmp.eq.s32.totalorder %v2414, 1
        %v2417 = vsel %vm2415, %v1325, 0.0
        %v2418 = vsel %vm2416, %v1325, 0.0
        %v2419 = vsel %vm1056, %v2410, %v2417
        %v2420 = vsel %vm1057, %v2411, %v2418
        %s2421 = scalar_lea.vmem [#allocation7], 128
        %v2422 = vld [vmem:[%s2421] sm:$0xff]
        %v2424 = vsel %vm557, %v2422, 0
        %2426 = vmatpush.msra.mxu0 0.0
        %2427 = vmatpush.msra.mxu0 0.0
        %2428 = vmatpush.msra.mxu0 0.0
        %2429 = vmatpush.msra.mxu0 0.0
        %2430 = vmatpush.msra.mxu0 0.0
        %2431 = vmatpush.msra.mxu0 0.0
        %2432 = vmatpush.msra.mxu0 0.0
        %2433 = vmatpush.msra.mxu0 0.0
        %2434 = vmatpush.msra.mxu0 0.0
        %2435 = vmatpush.msra.mxu0 0.0
        %2436 = vmatpush.msra.mxu0 0.0
        %2437 = vmatpush.msra.mxu0 0.0
        %2438 = vmatpush.msra.mxu0 0.0
        %2439 = vmatpush.msra.mxu0 0.0
        %2440 = vmatpush.msra.mxu0 0.0
        %2441 = vmatpush.msra.mxu0 %v2419
        %2442 = vmatmul.f32.gmra.mxu0 %v2424
        %v2443 = vpop.f32.mrf.mxu0
        %v2444 = vadd.f32 0.0, %v2443
        %2445 = vdwg.mxu0
        %2446 = vmatpush.msra.mxu0 0.0
        %2447 = vmatpush.msra.mxu0 0.0
        %2448 = vmatpush.msra.mxu0 0.0
        %2449 = vmatpush.msra.mxu0 0.0
        %2450 = vmatpush.msra.mxu0 0.0
        %2451 = vmatpush.msra.mxu0 0.0
        %2452 = vmatpush.msra.mxu0 0.0
        %2453 = vmatpush.msra.mxu0 0.0
        %2454 = vmatpush.msra.mxu0 0.0
        %2455 = vmatpush.msra.mxu0 0.0
        %2456 = vmatpush.msra.mxu0 0.0
        %2457 = vmatpush.msra.mxu0 0.0
        %2458 = vmatpush.msra.mxu0 0.0
        %2459 = vmatpush.msra.mxu0 0.0
        %2460 = vmatpush.msra.mxu0 0.0
        %2461 = vmatpush.msra.mxu0 %v2420
        %2462 = vmatmul.f32.gmra.mxu0 %v2424
        %v2463 = vpop.f32.mrf.mxu0
        %v2464 = vadd.f32 0.0, %v2463
        %2465 = vdwg.mxu0
        %v2466 = vadd.f32 %v2403, %v2444
        %v2467 = vadd.f32 %v2404, %v2464
        %vm2468 = vmand %vm2334, %vm1454
        %2469 = vrot.lane.b32.xlu0 %v1291, 112
        %v2470 = vpop.permute.xlu0 %2469
        %2471 = vrot.lane.b32.xlu0 %v1292, 112
        %v2472 = vpop.permute.xlu0 %2471
        %v2473 = vsel %vm1112, %v2470, %v2472
        %v2474 = vsel %vm1112, %v2472, %v2470
        %v2475 = vsel %vm2468, 1, 0
        %v2476 = vperm.slane %v2475, 0
        %v2477 = vperm.slane %v2475, 1
        %vm2478 = vcmp.eq.s32.totalorder %v2476, 1
        %vm2479 = vcmp.eq.s32.totalorder %v2477, 1
        %v2480 = vsel %vm2478, %v1325, 0.0
        %v2481 = vsel %vm2479, %v1325, 0.0
        %v2482 = vsel %vm1118, %v2473, %v2480
        %v2483 = vsel %vm1119, %v2474, %v2481
        %s2484 = scalar_lea.vmem [#allocation7], 136
        %v2485 = vld [vmem:[%s2484] sm:$0xff]
        %v2487 = vsel %vm557, %v2485, 0
        %2489 = vmatpush.msra.mxu0 0.0
        %2490 = vmatpush.msra.mxu0 0.0
        %2491 = vmatpush.msra.mxu0 0.0
        %2492 = vmatpush.msra.mxu0 0.0
        %2493 = vmatpush.msra.mxu0 0.0
        %2494 = vmatpush.msra.mxu0 0.0
        %2495 = vmatpush.msra.mxu0 0.0
        %2496 = vmatpush.msra.mxu0 0.0
        %2497 = vmatpush.msra.mxu0 0.0
        %2498 = vmatpush.msra.mxu0 0.0
        %2499 = vmatpush.msra.mxu0 0.0
        %2500 = vmatpush.msra.mxu0 0.0
        %2501 = vmatpush.msra.mxu0 0.0
        %2502 = vmatpush.msra.mxu0 0.0
        %2503 = vmatpush.msra.mxu0 0.0
        %2504 = vmatpush.msra.mxu0 %v2482
        %2505 = vmatmul.f32.gmra.mxu0 %v2487
        %v2506 = vpop.f32.mrf.mxu0
        %v2507 = vadd.f32 0.0, %v2506
        %2508 = vdwg.mxu0
        %2509 = vmatpush.msra.mxu0 0.0
        %2510 = vmatpush.msra.mxu0 0.0
        %2511 = vmatpush.msra.mxu0 0.0
        %2512 = vmatpush.msra.mxu0 0.0
        %2513 = vmatpush.msra.mxu0 0.0
        %2514 = vmatpush.msra.mxu0 0.0
        %2515 = vmatpush.msra.mxu0 0.0
        %2516 = vmatpush.msra.mxu0 0.0
        %2517 = vmatpush.msra.mxu0 0.0
        %2518 = vmatpush.msra.mxu0 0.0
        %2519 = vmatpush.msra.mxu0 0.0
        %2520 = vmatpush.msra.mxu0 0.0
        %2521 = vmatpush.msra.mxu0 0.0
        %2522 = vmatpush.msra.mxu0 0.0
        %2523 = vmatpush.msra.mxu0 0.0
        %2524 = vmatpush.msra.mxu0 %v2483
        %2525 = vmatmul.f32.gmra.mxu0 %v2487
        %v2526 = vpop.f32.mrf.mxu0
        %v2527 = vadd.f32 0.0, %v2526
        %2528 = vdwg.mxu0
        %v2529 = vadd.f32 %v2466, %v2507
        %v2530 = vadd.f32 %v2467, %v2527
        %vm2531 = vmand %vm2334, %vm1527
        %2532 = vrot.lane.b32.xlu0 %v1291, 111
        %v2533 = vpop.permute.xlu0 %2532
        %2534 = vrot.lane.b32.xlu0 %v1292, 111
        %v2535 = vpop.permute.xlu0 %2534
        %v2536 = vsel %vm1174, %v2533, %v2535
        %v2537 = vsel %vm1174, %v2535, %v2533
        %v2538 = vsel %vm2531, 1, 0
        %v2539 = vperm.slane %v2538, 0
        %v2540 = vperm.slane %v2538, 1
        %vm2541 = vcmp.eq.s32.totalorder %v2539, 1
        %vm2542 = vcmp.eq.s32.totalorder %v2540, 1
        %v2543 = vsel %vm2541, %v1325, 0.0
        %v2544 = vsel %vm2542, %v1325, 0.0
        %v2545 = vsel %vm1180, %v2536, %v2543
        %v2546 = vsel %vm1181, %v2537, %v2544
        %s2547 = scalar_lea.vmem [#allocation7], 144
        %v2548 = vld [vmem:[%s2547] sm:$0xff]
        %v2550 = vsel %vm557, %v2548, 0
        %2552 = vmatpush.msra.mxu0 0.0
        %2553 = vmatpush.msra.mxu0 0.0
        %2554 = vmatpush.msra.mxu0 0.0
        %2555 = vmatpush.msra.mxu0 0.0
        %2556 = vmatpush.msra.mxu0 0.0
        %2557 = vmatpush.msra.mxu0 0.0
        %2558 = vmatpush.msra.mxu0 0.0
        %2559 = vmatpush.msra.mxu0 0.0
        %2560 = vmatpush.msra.mxu0 0.0
        %2561 = vmatpush.msra.mxu0 0.0
        %2562 = vmatpush.msra.mxu0 0.0
        %2563 = vmatpush.msra.mxu0 0.0
        %2564 = vmatpush.msra.mxu0 0.0
        %2565 = vmatpush.msra.mxu0 0.0
        %2566 = vmatpush.msra.mxu0 0.0
        %2567 = vmatpush.msra.mxu0 %v2545
        %2568 = vmatmul.f32.gmra.mxu0 %v2550
        %v2569 = vpop.f32.mrf.mxu0
        %v2570 = vadd.f32 0.0, %v2569
        %2571 = vdwg.mxu0
        %2572 = vmatpush.msra.mxu0 0.0
        %2573 = vmatpush.msra.mxu0 0.0
        %2574 = vmatpush.msra.mxu0 0.0
        %2575 = vmatpush.msra.mxu0 0.0
        %2576 = vmatpush.msra.mxu0 0.0
        %2577 = vmatpush.msra.mxu0 0.0
        %2578 = vmatpush.msra.mxu0 0.0
        %2579 = vmatpush.msra.mxu0 0.0
        %2580 = vmatpush.msra.mxu0 0.0
        %2581 = vmatpush.msra.mxu0 0.0
        %2582 = vmatpush.msra.mxu0 0.0
        %2583 = vmatpush.msra.mxu0 0.0
        %2584 = vmatpush.msra.mxu0 0.0
        %2585 = vmatpush.msra.mxu0 0.0
        %2586 = vmatpush.msra.mxu0 0.0
        %2587 = vmatpush.msra.mxu0 %v2546
        %2588 = vmatmul.f32.gmra.mxu0 %v2550
        %v2589 = vpop.f32.mrf.mxu0
        %v2590 = vadd.f32 0.0, %v2589
        %2591 = vdwg.mxu0
        %v2592 = vadd.f32 %v2529, %v2570
        %v2593 = vadd.f32 %v2530, %v2590
        %vm2594 = vmand %vm1044, %vm1600
        %vm2595 = vmand %vm2334, %vm1604
        %2596 = vrot.lane.b32.xlu0 %v1291, 110
        %v2597 = vpop.permute.xlu0 %2596
        %2598 = vrot.lane.b32.xlu0 %v1292, 110
        %v2599 = vpop.permute.xlu0 %2598
        %vm2600 = vcmp.lt.s32.totalorder %v670, 110
        %v2601 = vsel %vm2600, %v2597, %v2599
        %v2602 = vsel %vm2600, %v2599, %v2597
        %v2603 = vsel %vm2595, 1, 0
        %v2604 = vperm.slane %v2603, 0
        %v2605 = vperm.slane %v2603, 1
        %vm2606 = vcmp.eq.s32.totalorder %v2604, 1
        %vm2607 = vcmp.eq.s32.totalorder %v2605, 1
        %v2608 = vsel %vm2606, %v1325, 0.0
        %v2609 = vsel %vm2607, %v1325, 0.0
        %v2610 = vsel %vm2594, 1, 0
        %v2611 = vperm.slane %v2610, 0
        %v2612 = vperm.slane %v2610, 1
        %vm2613 = vcmp.eq.s32.totalorder %v2611, 1
        %vm2614 = vcmp.eq.s32.totalorder %v2612, 1
        %v2615 = vsel %vm2613, %v2601, %v2608
        %v2616 = vsel %vm2614, %v2602, %v2609
        %s2617 = scalar_lea.vmem [#allocation7], 152
        %v2618 = vld [vmem:[%s2617] sm:$0xff]
        %v2620 = vsel %vm557, %v2618, 0
        %2622 = vmatpush.msra.mxu0 0.0
        %2623 = vmatpush.msra.mxu0 0.0
        %2624 = vmatpush.msra.mxu0 0.0
        %2625 = vmatpush.msra.mxu0 0.0
        %2626 = vmatpush.msra.mxu0 0.0
        %2627 = vmatpush.msra.mxu0 0.0
        %2628 = vmatpush.msra.mxu0 0.0
        %2629 = vmatpush.msra.mxu0 0.0
        %2630 = vmatpush.msra.mxu0 0.0
        %2631 = vmatpush.msra.mxu0 0.0
        %2632 = vmatpush.msra.mxu0 0.0
        %2633 = vmatpush.msra.mxu0 0.0
        %2634 = vmatpush.msra.mxu0 0.0
        %2635 = vmatpush.msra.mxu0 0.0
        %2636 = vmatpush.msra.mxu0 0.0
        %2637 = vmatpush.msra.mxu0 %v2615
        %2638 = vmatmul.f32.gmra.mxu0 %v2620
        %v2639 = vpop.f32.mrf.mxu0
        %v2640 = vadd.f32 0.0, %v2639
        %2641 = vdwg.mxu0
        %2642 = vmatpush.msra.mxu0 0.0
        %2643 = vmatpush.msra.mxu0 0.0
        %2644 = vmatpush.msra.mxu0 0.0
        %2645 = vmatpush.msra.mxu0 0.0
        %2646 = vmatpush.msra.mxu0 0.0
        %2647 = vmatpush.msra.mxu0 0.0
        %2648 = vmatpush.msra.mxu0 0.0
        %2649 = vmatpush.msra.mxu0 0.0
        %2650 = vmatpush.msra.mxu0 0.0
        %2651 = vmatpush.msra.mxu0 0.0
        %2652 = vmatpush.msra.mxu0 0.0
        %2653 = vmatpush.msra.mxu0 0.0
        %2654 = vmatpush.msra.mxu0 0.0
        %2655 = vmatpush.msra.mxu0 0.0
        %2656 = vmatpush.msra.mxu0 0.0
        %2657 = vmatpush.msra.mxu0 %v2616
        %2658 = vmatmul.f32.gmra.mxu0 %v2620
        %v2659 = vpop.f32.mrf.mxu0
        %v2660 = vadd.f32 0.0, %v2659
        %2661 = vdwg.mxu0
        %v2662 = vadd.f32 %v2592, %v2640
        %v2663 = vadd.f32 %v2593, %v2660
        %v2664 = vadd.s32 %v548, 2
        %vm2665 = vcmp.ge.s32.totalorder %v2664, 0
        %vm2666 = vcmp.le.s32.totalorder %v2664, 15
        %vm2667 = vmand %vm2665, %vm2666
        %vm2668 = vcmp.ge.s32.totalorder %v2664, 4294967295
        %vm2669 = vcmp.le.s32.totalorder %v2664, 16
        %vm2670 = vmand %vm2668, %vm2669
        %vm2671 = vmand %vm2667, %vm1304
        %vm2672 = vmand %vm2670, %vm1308
        %2673 = vrot.lane.b32.xlu0 %v1291, 98
        %v2674 = vpop.permute.xlu0 %2673
        %2675 = vrot.lane.b32.xlu0 %v1292, 98
        %v2676 = vpop.permute.xlu0 %2675
        %vm2677 = vcmp.lt.s32.totalorder %v670, 98
        %v2678 = vsel %vm2677, %v2674, %v2676
        %v2679 = vsel %vm2677, %v2676, %v2674
        %v2680 = vsel %vm2672, 1, 0
        %v2681 = vperm.slane %v2680, 0
        %v2682 = vperm.slane %v2680, 1
        %vm2683 = vcmp.eq.s32.totalorder %v2681, 1
        %vm2684 = vcmp.eq.s32.totalorder %v2682, 1
        %v2685 = vsel %vm2683, %v1325, 0.0
        %v2686 = vsel %vm2684, %v1325, 0.0
        %v2687 = vsel %vm2671, 1, 0
        %v2688 = vperm.slane %v2687, 0
        %v2689 = vperm.slane %v2687, 1
        %vm2690 = vcmp.eq.s32.totalorder %v2688, 1
        %vm2691 = vcmp.eq.s32.totalorder %v2689, 1
        %v2692 = vsel %vm2690, %v2678, %v2685
        %v2693 = vsel %vm2691, %v2679, %v2686
        %s2694 = scalar_lea.vmem [#allocation7], 160
        %v2695 = vld [vmem:[%s2694] sm:$0xff]
        %v2697 = vsel %vm557, %v2695, 0
        %2699 = vmatpush.msra.mxu0 0.0
        %2700 = vmatpush.msra.mxu0 0.0
        %2701 = vmatpush.msra.mxu0 0.0
        %2702 = vmatpush.msra.mxu0 0.0
        %2703 = vmatpush.msra.mxu0 0.0
        %2704 = vmatpush.msra.mxu0 0.0
        %2705 = vmatpush.msra.mxu0 0.0
        %2706 = vmatpush.msra.mxu0 0.0
        %2707 = vmatpush.msra.mxu0 0.0
        %2708 = vmatpush.msra.mxu0 0.0
        %2709 = vmatpush.msra.mxu0 0.0
        %2710 = vmatpush.msra.mxu0 0.0
        %2711 = vmatpush.msra.mxu0 0.0
        %2712 = vmatpush.msra.mxu0 0.0
        %2713 = vmatpush.msra.mxu0 0.0
        %2714 = vmatpush.msra.mxu0 %v2692
        %2715 = vmatmul.f32.gmra.mxu0 %v2697
        %v2716 = vpop.f32.mrf.mxu0
        %v2717 = vadd.f32 0.0, %v2716
        %2718 = vdwg.mxu0
        %2719 = vmatpush.msra.mxu0 0.0
        %2720 = vmatpush.msra.mxu0 0.0
        %2721 = vmatpush.msra.mxu0 0.0
        %2722 = vmatpush.msra.mxu0 0.0
        %2723 = vmatpush.msra.mxu0 0.0
        %2724 = vmatpush.msra.mxu0 0.0
        %2725 = vmatpush.msra.mxu0 0.0
        %2726 = vmatpush.msra.mxu0 0.0
        %2727 = vmatpush.msra.mxu0 0.0
        %2728 = vmatpush.msra.mxu0 0.0
        %2729 = vmatpush.msra.mxu0 0.0
        %2730 = vmatpush.msra.mxu0 0.0
        %2731 = vmatpush.msra.mxu0 0.0
        %2732 = vmatpush.msra.mxu0 0.0
        %2733 = vmatpush.msra.mxu0 0.0
        %2734 = vmatpush.msra.mxu0 %v2693
        %2735 = vmatmul.f32.gmra.mxu0 %v2697
        %v2736 = vpop.f32.mrf.mxu0
        %v2737 = vadd.f32 0.0, %v2736
        %2738 = vdwg.mxu0
        %v2739 = vadd.f32 %v2662, %v2717
        %v2740 = vadd.f32 %v2663, %v2737
        %vm2741 = vmand %vm2667, %vm663
        %vm2742 = vmand %vm2670, %vm1340
        %2743 = vrot.lane.b32.xlu0 %v1291, 97
        %v2744 = vpop.permute.xlu0 %2743
        %2745 = vrot.lane.b32.xlu0 %v1292, 97
        %v2746 = vpop.permute.xlu0 %2745
        %vm2747 = vcmp.lt.s32.totalorder %v670, 97
        %v2748 = vsel %vm2747, %v2744, %v2746
        %v2749 = vsel %vm2747, %v2746, %v2744
        %v2750 = vsel %vm2742, 1, 0
        %v2751 = vperm.slane %v2750, 0
        %v2752 = vperm.slane %v2750, 1
        %vm2753 = vcmp.eq.s32.totalorder %v2751, 1
        %vm2754 = vcmp.eq.s32.totalorder %v2752, 1
        %v2755 = vsel %vm2753, %v1325, 0.0
        %v2756 = vsel %vm2754, %v1325, 0.0
        %v2757 = vsel %vm2741, 1, 0
        %v2758 = vperm.slane %v2757, 0
        %v2759 = vperm.slane %v2757, 1
        %vm2760 = vcmp.eq.s32.totalorder %v2758, 1
        %vm2761 = vcmp.eq.s32.totalorder %v2759, 1
        %v2762 = vsel %vm2760, %v2748, %v2755
        %v2763 = vsel %vm2761, %v2749, %v2756
        %s2764 = scalar_lea.vmem [#allocation7], 168
        %v2765 = vld [vmem:[%s2764] sm:$0xff]
        %v2767 = vsel %vm557, %v2765, 0
        %2769 = vmatpush.msra.mxu0 0.0
        %2770 = vmatpush.msra.mxu0 0.0
        %2771 = vmatpush.msra.mxu0 0.0
        %2772 = vmatpush.msra.mxu0 0.0
        %2773 = vmatpush.msra.mxu0 0.0
        %2774 = vmatpush.msra.mxu0 0.0
        %2775 = vmatpush.msra.mxu0 0.0
        %2776 = vmatpush.msra.mxu0 0.0
        %2777 = vmatpush.msra.mxu0 0.0
        %2778 = vmatpush.msra.mxu0 0.0
        %2779 = vmatpush.msra.mxu0 0.0
        %2780 = vmatpush.msra.mxu0 0.0
        %2781 = vmatpush.msra.mxu0 0.0
        %2782 = vmatpush.msra.mxu0 0.0
        %2783 = vmatpush.msra.mxu0 0.0
        %2784 = vmatpush.msra.mxu0 %v2762
        %2785 = vmatmul.f32.gmra.mxu0 %v2767
        %v2786 = vpop.f32.mrf.mxu0
        %v2787 = vadd.f32 0.0, %v2786
        %2788 = vdwg.mxu0
        %2789 = vmatpush.msra.mxu0 0.0
        %2790 = vmatpush.msra.mxu0 0.0
        %2791 = vmatpush.msra.mxu0 0.0
        %2792 = vmatpush.msra.mxu0 0.0
        %2793 = vmatpush.msra.mxu0 0.0
        %2794 = vmatpush.msra.mxu0 0.0
        %2795 = vmatpush.msra.mxu0 0.0
        %2796 = vmatpush.msra.mxu0 0.0
        %2797 = vmatpush.msra.mxu0 0.0
        %2798 = vmatpush.msra.mxu0 0.0
        %2799 = vmatpush.msra.mxu0 0.0
        %2800 = vmatpush.msra.mxu0 0.0
        %2801 = vmatpush.msra.mxu0 0.0
        %2802 = vmatpush.msra.mxu0 0.0
        %2803 = vmatpush.msra.mxu0 0.0
        %2804 = vmatpush.msra.mxu0 %v2763
        %2805 = vmatmul.f32.gmra.mxu0 %v2767
        %v2806 = vpop.f32.mrf.mxu0
        %v2807 = vadd.f32 0.0, %v2806
        %2808 = vdwg.mxu0
        %v2809 = vadd.f32 %v2739, %v2787
        %v2810 = vadd.f32 %v2740, %v2807
        %vm2811 = vmand %vm2667, %vm689
        %vm2812 = vmand %vm2670, %vm1454
        %2813 = vrot.lane.b32.xlu0 %v1291, 96
        %v2814 = vpop.permute.xlu0 %2813
        %2815 = vrot.lane.b32.xlu0 %v1292, 96
        %v2816 = vpop.permute.xlu0 %2815
        %vm2817 = vcmp.lt.s32.totalorder %v670, 96
        %v2818 = vsel %vm2817, %v2814, %v2816
        %v2819 = vsel %vm2817, %v2816, %v2814
        %v2820 = vsel %vm2812, 1, 0
        %v2821 = vperm.slane %v2820, 0
        %v2822 = vperm.slane %v2820, 1
        %vm2823 = vcmp.eq.s32.totalorder %v2821, 1
        %vm2824 = vcmp.eq.s32.totalorder %v2822, 1
        %v2825 = vsel %vm2823, %v1325, 0.0
        %v2826 = vsel %vm2824, %v1325, 0.0
        %v2827 = vsel %vm2811, 1, 0
        %v2828 = vperm.slane %v2827, 0
        %v2829 = vperm.slane %v2827, 1
        %vm2830 = vcmp.eq.s32.totalorder %v2828, 1
        %vm2831 = vcmp.eq.s32.totalorder %v2829, 1
        %v2832 = vsel %vm2830, %v2818, %v2825
        %v2833 = vsel %vm2831, %v2819, %v2826
        %s2834 = scalar_lea.vmem [#allocation7], 176
        %v2835 = vld [vmem:[%s2834] sm:$0xff]
        %v2837 = vsel %vm557, %v2835, 0
        %2839 = vmatpush.msra.mxu0 0.0
        %2840 = vmatpush.msra.mxu0 0.0
        %2841 = vmatpush.msra.mxu0 0.0
        %2842 = vmatpush.msra.mxu0 0.0
        %2843 = vmatpush.msra.mxu0 0.0
        %2844 = vmatpush.msra.mxu0 0.0
        %2845 = vmatpush.msra.mxu0 0.0
        %2846 = vmatpush.msra.mxu0 0.0
        %2847 = vmatpush.msra.mxu0 0.0
        %2848 = vmatpush.msra.mxu0 0.0
        %2849 = vmatpush.msra.mxu0 0.0
        %2850 = vmatpush.msra.mxu0 0.0
        %2851 = vmatpush.msra.mxu0 0.0
        %2852 = vmatpush.msra.mxu0 0.0
        %2853 = vmatpush.msra.mxu0 0.0
        %2854 = vmatpush.msra.mxu0 %v2832
        %2855 = vmatmul.f32.gmra.mxu0 %v2837
        %v2856 = vpop.f32.mrf.mxu0
        %v2857 = vadd.f32 0.0, %v2856
        %2858 = vdwg.mxu0
        %2859 = vmatpush.msra.mxu0 0.0
        %2860 = vmatpush.msra.mxu0 0.0
        %2861 = vmatpush.msra.mxu0 0.0
        %2862 = vmatpush.msra.mxu0 0.0
        %2863 = vmatpush.msra.mxu0 0.0
        %2864 = vmatpush.msra.mxu0 0.0
        %2865 = vmatpush.msra.mxu0 0.0
        %2866 = vmatpush.msra.mxu0 0.0
        %2867 = vmatpush.msra.mxu0 0.0
        %2868 = vmatpush.msra.mxu0 0.0
        %2869 = vmatpush.msra.mxu0 0.0
        %2870 = vmatpush.msra.mxu0 0.0
        %2871 = vmatpush.msra.mxu0 0.0
        %2872 = vmatpush.msra.mxu0 0.0
        %2873 = vmatpush.msra.mxu0 0.0
        %2874 = vmatpush.msra.mxu0 %v2833
        %2875 = vmatmul.f32.gmra.mxu0 %v2837
        %v2876 = vpop.f32.mrf.mxu0
        %v2877 = vadd.f32 0.0, %v2876
        %2878 = vdwg.mxu0
        %v2879 = vadd.f32 %v2809, %v2857
        %v2880 = vadd.f32 %v2810, %v2877
        %vm2881 = vmand %vm2667, %vm796
        %vm2882 = vmand %vm2670, %vm1527
        %2883 = vrot.lane.b32.xlu0 %v1291, 95
        %v2884 = vpop.permute.xlu0 %2883
        %2885 = vrot.lane.b32.xlu0 %v1292, 95
        %v2886 = vpop.permute.xlu0 %2885
        %vm2887 = vcmp.lt.s32.totalorder %v670, 95
        %v2888 = vsel %vm2887, %v2884, %v2886
        %v2889 = vsel %vm2887, %v2886, %v2884
        %v2890 = vsel %vm2882, 1, 0
        %v2891 = vperm.slane %v2890, 0
        %v2892 = vperm.slane %v2890, 1
        %vm2893 = vcmp.eq.s32.totalorder %v2891, 1
        %vm2894 = vcmp.eq.s32.totalorder %v2892, 1
        %v2895 = vsel %vm2893, %v1325, 0.0
        %v2896 = vsel %vm2894, %v1325, 0.0
        %v2897 = vsel %vm2881, 1, 0
        %v2898 = vperm.slane %v2897, 0
        %v2899 = vperm.slane %v2897, 1
        %vm2900 = vcmp.eq.s32.totalorder %v2898, 1
        %vm2901 = vcmp.eq.s32.totalorder %v2899, 1
        %v2902 = vsel %vm2900, %v2888, %v2895
        %v2903 = vsel %vm2901, %v2889, %v2896
        %s2904 = scalar_lea.vmem [#allocation7], 184
        %v2905 = vld [vmem:[%s2904] sm:$0xff]
        %v2907 = vsel %vm557, %v2905, 0
        %2909 = vmatpush.msra.mxu0 0.0
        %2910 = vmatpush.msra.mxu0 0.0
        %2911 = vmatpush.msra.mxu0 0.0
        %2912 = vmatpush.msra.mxu0 0.0
        %2913 = vmatpush.msra.mxu0 0.0
        %2914 = vmatpush.msra.mxu0 0.0
        %2915 = vmatpush.msra.mxu0 0.0
        %2916 = vmatpush.msra.mxu0 0.0
        %2917 = vmatpush.msra.mxu0 0.0
        %2918 = vmatpush.msra.mxu0 0.0
        %2919 = vmatpush.msra.mxu0 0.0
        %2920 = vmatpush.msra.mxu0 0.0
        %2921 = vmatpush.msra.mxu0 0.0
        %2922 = vmatpush.msra.mxu0 0.0
        %2923 = vmatpush.msra.mxu0 0.0
        %2924 = vmatpush.msra.mxu0 %v2902
        %2925 = vmatmul.f32.gmra.mxu0 %v2907
        %v2926 = vpop.f32.mrf.mxu0
        %v2927 = vadd.f32 0.0, %v2926
        %2928 = vdwg.mxu0
        %2929 = vmatpush.msra.mxu0 0.0
        %2930 = vmatpush.msra.mxu0 0.0
        %2931 = vmatpush.msra.mxu0 0.0
        %2932 = vmatpush.msra.mxu0 0.0
        %2933 = vmatpush.msra.mxu0 0.0
        %2934 = vmatpush.msra.mxu0 0.0
        %2935 = vmatpush.msra.mxu0 0.0
        %2936 = vmatpush.msra.mxu0 0.0
        %2937 = vmatpush.msra.mxu0 0.0
        %2938 = vmatpush.msra.mxu0 0.0
        %2939 = vmatpush.msra.mxu0 0.0
        %2940 = vmatpush.msra.mxu0 0.0
        %2941 = vmatpush.msra.mxu0 0.0
        %2942 = vmatpush.msra.mxu0 0.0
        %2943 = vmatpush.msra.mxu0 0.0
        %2944 = vmatpush.msra.mxu0 %v2903
        %2945 = vmatmul.f32.gmra.mxu0 %v2907
        %v2946 = vpop.f32.mrf.mxu0
        %v2947 = vadd.f32 0.0, %v2946
        %2948 = vdwg.mxu0
        %v2949 = vadd.f32 %v2879, %v2927
        %v2950 = vadd.f32 %v2880, %v2947
        %vm2951 = vmand %vm2667, %vm1600
        %vm2952 = vmand %vm2670, %vm1604
        %2953 = vrot.lane.b32.xlu0 %v1291, 94
        %v2954 = vpop.permute.xlu0 %2953
        %2955 = vrot.lane.b32.xlu0 %v1292, 94
        %v2956 = vpop.permute.xlu0 %2955
        %vm2957 = vcmp.lt.s32.totalorder %v670, 94
        %v2958 = vsel %vm2957, %v2954, %v2956
        %v2959 = vsel %vm2957, %v2956, %v2954
        %v2960 = vsel %vm2952, 1, 0
        %v2961 = vperm.slane %v2960, 0
        %v2962 = vperm.slane %v2960, 1
        %vm2963 = vcmp.eq.s32.totalorder %v2961, 1
        %vm2964 = vcmp.eq.s32.totalorder %v2962, 1
        %v2965 = vsel %vm2963, %v1325, 0.0
        %v2966 = vsel %vm2964, %v1325, 0.0
        %v2967 = vsel %vm2951, 1, 0
        %v2968 = vperm.slane %v2967, 0
        %v2969 = vperm.slane %v2967, 1
        %vm2970 = vcmp.eq.s32.totalorder %v2968, 1
        %vm2971 = vcmp.eq.s32.totalorder %v2969, 1
        %v2972 = vsel %vm2970, %v2958, %v2965
        %v2973 = vsel %vm2971, %v2959, %v2966
        %s2974 = scalar_lea.vmem [#allocation7], 192
        %v2975 = vld [vmem:[%s2974] sm:$0xff]
        %v2977 = vsel %vm557, %v2975, 0
        %2979 = vmatpush.msra.mxu0 0.0
        %2980 = vmatpush.msra.mxu0 0.0
        %2981 = vmatpush.msra.mxu0 0.0
        %2982 = vmatpush.msra.mxu0 0.0
        %2983 = vmatpush.msra.mxu0 0.0
        %2984 = vmatpush.msra.mxu0 0.0
        %2985 = vmatpush.msra.mxu0 0.0
        %2986 = vmatpush.msra.mxu0 0.0
        %2987 = vmatpush.msra.mxu0 0.0
        %2988 = vmatpush.msra.mxu0 0.0
        %2989 = vmatpush.msra.mxu0 0.0
        %2990 = vmatpush.msra.mxu0 0.0
        %2991 = vmatpush.msra.mxu0 0.0
        %2992 = vmatpush.msra.mxu0 0.0
        %2993 = vmatpush.msra.mxu0 0.0
        %2994 = vmatpush.msra.mxu0 %v2972
        %2995 = vmatmul.f32.gmra.mxu0 %v2977
        %v2996 = vpop.f32.mrf.mxu0
        %v2997 = vadd.f32 0.0, %v2996
        %2998 = vdwg.mxu0
        %2999 = vmatpush.msra.mxu0 0.0
        %3000 = vmatpush.msra.mxu0 0.0
        %3001 = vmatpush.msra.mxu0 0.0
        %3002 = vmatpush.msra.mxu0 0.0
        %3003 = vmatpush.msra.mxu0 0.0
        %3004 = vmatpush.msra.mxu0 0.0
        %3005 = vmatpush.msra.mxu0 0.0
        %3006 = vmatpush.msra.mxu0 0.0
        %3007 = vmatpush.msra.mxu0 0.0
        %3008 = vmatpush.msra.mxu0 0.0
        %3009 = vmatpush.msra.mxu0 0.0
        %3010 = vmatpush.msra.mxu0 0.0
        %3011 = vmatpush.msra.mxu0 0.0
        %3012 = vmatpush.msra.mxu0 0.0
        %3013 = vmatpush.msra.mxu0 0.0
        %3014 = vmatpush.msra.mxu0 %v2973
        %3015 = vmatmul.f32.gmra.mxu0 %v2977
        %v3016 = vpop.f32.mrf.mxu0
        %v3017 = vadd.f32 0.0, %v3016
        %3018 = vdwg.mxu0
        %v3019 = vadd.f32 %v2949, %v2997
        %v3020 = vadd.f32 %v2950, %v3017
        %v3021 = vld [vmem:[%s12] sm:$0xff]
        %3023 = vset.pattern.permute.xlu0 0
        %3024 = vperm.xlu0 %3023, %v3021
        %v3025 = vpop.permute.xlu0 %3024
        %v3027 = vadd.f32 %v3019, %v3025
        %v3028 = vadd.f32 %v3020, %v3025
        %v3029 = vmax.f32 %v3027, 0.0
        %v3030 = vmax.f32 %v3028, 0.0
        %3031 = vrot.lane.b32.xlu0 %v546, 17
        %v3032 = vpop.permute.xlu0 %3031
        %3033 = vrot.lane.b32.xlu0 %v547, 17
        %v3034 = vpop.permute.xlu0 %3033
        %v3035 = vsel %vm671, %v3032, %v3034
        %v3036 = vsel %vm671, %v3034, %v3032
        %v3037 = vmax.f32 %v546, %v3036
        %v3038 = vmax.f32 %v547, %v3035
        %3039 = vrot.lane.b32.xlu0 %v546, 16
        %v3040 = vpop.permute.xlu0 %3039
        %3041 = vrot.lane.b32.xlu0 %v547, 16
        %v3042 = vpop.permute.xlu0 %3041
        %v3043 = vsel %vm695, %v3040, %v3042
        %v3044 = vsel %vm695, %v3042, %v3040
        %v3045 = vmax.f32 %v3037, %v3044
        %v3046 = vmax.f32 %v3038, %v3043
        %3047 = vrot.lane.b32.xlu0 %v546, 15
        %v3048 = vpop.permute.xlu0 %3047
        %3049 = vrot.lane.b32.xlu0 %v547, 15
        %v3050 = vpop.permute.xlu0 %3049
        %v3051 = vsel %vm802, %v3048, %v3050
        %v3052 = vsel %vm802, %v3050, %v3048
        %v3053 = vmax.f32 %v3045, %v3052
        %v3054 = vmax.f32 %v3046, %v3051
        %3055 = vrot.lane.b32.xlu0 %v546, 1
        %v3056 = vpop.permute.xlu0 %3055
        %3057 = vrot.lane.b32.xlu0 %v547, 1
        %v3058 = vpop.permute.xlu0 %3057
        %v3059 = vsel %vm867, %v3056, %v3058
        %v3060 = vsel %vm867, %v3058, %v3056
        %v3061 = vmax.f32 %v3053, %v3060
        %v3062 = vmax.f32 %v3054, %v3059
        %3063 = vrot.lane.b32.xlu0 %v546, 127
        %v3064 = vpop.permute.xlu0 %3063
        %3065 = vrot.lane.b32.xlu0 %v547, 127
        %v3066 = vpop.permute.xlu0 %3065
        %v3067 = vsel %vm984, %v3064, %v3066
        %v3068 = vsel %vm984, %v3066, %v3064
        %v3069 = vmax.f32 %v3061, %v3067
        %v3070 = vmax.f32 %v3062, %v3068
        %3071 = vrot.lane.b32.xlu0 %v546, 113
        %v3072 = vpop.permute.xlu0 %3071
        %3073 = vrot.lane.b32.xlu0 %v547, 113
        %v3074 = vpop.permute.xlu0 %3073
        %v3075 = vsel %vm1050, %v3072, %v3074
        %v3076 = vsel %vm1050, %v3074, %v3072
        %v3077 = vmax.f32 %v3069, %v3075
        %v3078 = vmax.f32 %v3070, %v3076
        %3079 = vrot.lane.b32.xlu0 %v546, 112
        %v3080 = vpop.permute.xlu0 %3079
        %3081 = vrot.lane.b32.xlu0 %v547, 112
        %v3082 = vpop.permute.xlu0 %3081
        %v3083 = vsel %vm1112, %v3080, %v3082
        %v3084 = vsel %vm1112, %v3082, %v3080
        %v3085 = vmax.f32 %v3077, %v3083
        %v3086 = vmax.f32 %v3078, %v3084
        %3087 = vrot.lane.b32.xlu0 %v546, 111
        %v3088 = vpop.permute.xlu0 %3087
        %3089 = vrot.lane.b32.xlu0 %v547, 111
        %v3090 = vpop.permute.xlu0 %3089
        %v3091 = vsel %vm1174, %v3088, %v3090
        %v3092 = vsel %vm1174, %v3090, %v3088
        %v3093 = vmax.f32 %v3085, %v3091
        %v3094 = vmax.f32 %v3086, %v3092
        %vm3095 = vcmp.ge.s32.totalorder %v548, 1
        %vm3096 = vcmp.le.s32.totalorder %v548, 14
        %vm3097 = vmand %vm3095, %vm3096
        %vm3098 = vcmp.ge.s32.totalorder %v549, 1
        %vm3099 = vcmp.le.s32.totalorder %v549, 14
        %vm3100 = vmand %vm3098, %vm3099
        %vm3101 = vmand %vm3097, %vm3100
        %v3102 = vsel %vm3101, 1, 0
        %v3103 = vperm.slane %v3102, 0
        %v3104 = vperm.slane %v3102, 1
        %vm3105 = vcmp.eq.s32.totalorder %v3103, 1
        %vm3106 = vcmp.eq.s32.totalorder %v3104, 1
        %v3107 = vsel %vm3105, %v3093, 0.0
        %v3108 = vsel %vm3106, %v3094, 0.0
        %v3109 = vld [vmem:[%s13] sm:$0xff]
        %v3110 = vld [vmem:[%s14] sm:$0xff]
        %3112 = vset.pattern.permute.xlu0 0
        %3113 = vperm.xlu0 %3112, %v3110
        %v3114 = vpop.permute.xlu0 %3113
        %v3117 = vsel %vm557, %v3109, 0
        %3119 = vmatpush.msra.mxu0 0.0
        %3120 = vmatpush.msra.mxu0 0.0
        %3121 = vmatpush.msra.mxu0 0.0
        %3122 = vmatpush.msra.mxu0 0.0
        %3123 = vmatpush.msra.mxu0 0.0
        %3124 = vmatpush.msra.mxu0 0.0
        %3125 = vmatpush.msra.mxu0 0.0
        %3126 = vmatpush.msra.mxu0 0.0
        %3127 = vmatpush.msra.mxu0 0.0
        %3128 = vmatpush.msra.mxu0 0.0
        %3129 = vmatpush.msra.mxu0 0.0
        %3130 = vmatpush.msra.mxu0 0.0
        %3131 = vmatpush.msra.mxu0 0.0
        %3132 = vmatpush.msra.mxu0 0.0
        %3133 = vmatpush.msra.mxu0 0.0
        %3134 = vmatpush.msra.mxu0 %v3107
        %3135 = vmatmul.f32.gmra.mxu0 %v3117
        %v3136 = vpop.f32.mrf.mxu0
        %v3137 = vadd.f32 %v3114, %v3136
        %3138 = vdwg.mxu0
        %3139 = vmatpush.msra.mxu0 0.0
        %3140 = vmatpush.msra.mxu0 0.0
        %3141 = vmatpush.msra.mxu0 0.0
        %3142 = vmatpush.msra.mxu0 0.0
        %3143 = vmatpush.msra.mxu0 0.0
        %3144 = vmatpush.msra.mxu0 0.0
        %3145 = vmatpush.msra.mxu0 0.0
        %3146 = vmatpush.msra.mxu0 0.0
        %3147 = vmatpush.msra.mxu0 0.0
        %3148 = vmatpush.msra.mxu0 0.0
        %3149 = vmatpush.msra.mxu0 0.0
        %3150 = vmatpush.msra.mxu0 0.0
        %3151 = vmatpush.msra.mxu0 0.0
        %3152 = vmatpush.msra.mxu0 0.0
        %3153 = vmatpush.msra.mxu0 0.0
        %3154 = vmatpush.msra.mxu0 %v3108
        %3155 = vmatmul.f32.gmra.mxu0 %v3117
        %v3156 = vpop.f32.mrf.mxu0
        %v3157 = vadd.f32 %v3114, %v3156
        %3158 = vdwg.mxu0
        %v3159 = vmax.f32 %v3137, 0.0
        %v3160 = vmax.f32 %v3157, 0.0
        %3161 = vst [vmem:[%s545] sm:$0xff] %v601
        %3162 = vst [vmem:[%s545 + $0x8] sm:$0xff] %v602
        %3163 = vst [vmem:[%s545 + $0x10] sm:$0xff] %v1239
        %3164 = vst [vmem:[%s545 + $0x18] sm:$0xff] %v1240
        %3165 = vst [vmem:[%s545 + $0x20] sm:$0xff] %v3029
        %3166 = vst [vmem:[%s545 + $0x28] sm:$0xff] %v3030
        %3167 = vst [vmem:[%s545 + $0x30] sm:$0xff] %v3159
        %3168 = vst [vmem:[%s545 + $0x38] sm:$0xff] %v3160
        %s3169 = sand.u32 %s361, 1
        %s3170 = scalar_lea.sflag [#allocation4], %s3169
        %s3171 = sand.u32 %s361, 1
        %s3172 = smul.addr %s3171, 64
        %s3173 = scalar_lea.vmem [#allocation8], %s3172
        // Predicated region
        $region93: #{tpu_custom_call.1} parent=79 // pred_check
          %p3174 = pneg %p371
        $region94: #{tpu_custom_call.1} parent=79 // pred_check_branch
          %3176 = sbr.rel (%p3174) target = $region96
        $region95: #{tpu_custom_call.1} parent=79 // pred_region
          %3178 = vsyncadd %s3170, 0
          %s3179 = smul.addr %s33, 8
          %s3180 = smul.addr %s3179, 8
          %s3181 = scalar_lea.hbm %s15, %s3180
          %s3182 = sshll.u32 %s3173, 4
          %s3183 = int_to_ptr.vmem [resolvable:$true] %s3182
          %s3184 = sshll.u32 %s3181, 4
          %s3185 = int_to_ptr.hbm [resolvable:$true] %s3184
          %3190 = dma.vmem_to_hbm [thread:$0]  %s3183, 1024, %s3185, %s3170, 256, 256, 16
        $region96: #{tpu_custom_call.1} parent=79 // pred_fallthru
          _
      $region80: #{tpu_custom_call.1} parent=5 // pred_fallthru
        _
      %p3191 = scmp.le.s32.totalorder 2, %s28
      // Predicated region
      $region97: #{tpu_custom_call.1} parent=5 // pred_check
        %p3192 = pneg %p3191
      $region98: #{tpu_custom_call.1} parent=5 // pred_check_branch
        %3194 = sbr.rel (%p3192) target = $region100
      $region99: #{tpu_custom_call.1} parent=5 // pred_region
        %s3195 = ssub.s32 %s28, 2
        // Predicated region
        $region101: #{tpu_custom_call.1} parent=99 // pred_check
          %p3196 = pneg %p377
        $region102: #{tpu_custom_call.1} parent=99 // pred_check_branch
          %3198 = sbr.rel (%p3196) target = $region104
        $region103: #{tpu_custom_call.1} parent=99 // pred_region
          %s3199 = sand.u32 %s362, 1
          %s3200 = scalar_lea.sflag [#allocation4], %s3199
          %s3201 = sand.u32 %s362, 1
          %s3202 = smul.addr %s3201, 64
          %s3203 = scalar_lea.vmem [#allocation8], %s3202
          %3205 = dma.done %s3200, 1024
        $region104: #{tpu_custom_call.1} parent=99 // pred_fallthru
          _
      $region100: #{tpu_custom_call.1} parent=5 // pred_fallthru
        _
    $region6: #{tpu_custom_call.1} parent=1 // loop_footer
      %s32 = sadd.s32 1, %s28
    $region7: #{tpu_custom_call.1} parent=1 // loop_footer_branch
      %27 = sbr.rel target = $region3
    $region8: #{tpu_custom_call.1} parent=1 // loop_exit
      _
    %3206 = vsyncpa [#allocation3], 1
    %s3207 = scalar_lea.sflag [#allocation3], 1
    %3208 = vsyncpa %s3207, 1
    %3209 = vsyncpa [#allocation6], 1
    %3210 = vsyncpa [#allocation4], 1
    %s3211 = scalar_lea.sflag [#allocation4], 1
    %3212 = vsyncpa %s3211, 1

</llo_original>
